<compile_context>
chip_gen: v6e
topology: v6e:2x2x1
jax: 0.10.0
libtpu: 0.0.40
codegen_flags: <defaults>
</compile_context>

<pallas_src>
import functools

import jax
import jax.numpy as jnp
from jax import lax
from jax.experimental import pallas as pl
from jax.experimental.pallas import tpu as pltpu

_LANE = 128                         # TPU vreg lane width -> lane-dense outputs
_TRUNK_DTYPE = jnp.bfloat16         # HBM-resident activations between fused layers
_MM_DTYPE = jnp.bfloat16            # MXU operand dtype (accumulation stays f32)
_EPS = 1e-5                         # nn.InstanceNorm1d default eps


def _pad_to_lane(n: int) -> int:
    return -(-n // _LANE) * _LANE


@functools.lru_cache(maxsize=None)
def _vmem_limit_bytes() -> int:
    """Per-generation scoped-VMEM budget (v7x: 64 MiB phys -> 48; v5e/v6e: 96)."""
    try:
        info = pltpu.get_tpu_info()
        cap = getattr(info, "vmem_capacity_bytes", None)
        if cap:
            return int(min(cap * 3 // 4, 112 * 1024 * 1024))
    except Exception:
        pass
    return 48 * 1024 * 1024


# --------------------------------------------------------------------------
# In-kernel math helpers (all f32)
# --------------------------------------------------------------------------
def _apply_act(y, act):
    if act == 'lrelu':
        return jnp.where(y > 0, y, 0.01 * y)      # nn.LeakyReLU default slope
    return jnp.maximum(y, 0.0)                    # nn.ReLU


def _instance_norm(y, eps=_EPS):
    """InstanceNorm1d(affine=False) over the time (sublane) axis of (T, C)."""
    mean = jnp.mean(y, axis=0, keepdims=True)
    var = jnp.mean(jnp.square(y - mean), axis=0, keepdims=True)
    return (y - mean) * lax.rsqrt(var + eps)


# --------------------------------------------------------------------------
# Kernel A: fused ConvBank + act + 1x1 in_conv + InstanceNorm + act
# --------------------------------------------------------------------------
def _bank_in_kernel(act):
    def kernel(xt_ref, x_ref, wb_ref, bb_ref, wib_ref, wix_ref, bi_ref, o_ref):
        # bank conv: all kernel sizes / taps folded into one K = k_max*c_in dot
        xt = xt_ref[0].astype(_MM_DTYPE)                          # (T, k_max*c_in)
        bank = jnp.dot(xt, wb_ref[...], preferred_element_type=jnp.float32)
        bank = _apply_act(bank + bb_ref[...].astype(jnp.float32), act)

        # 1x1 in_conv over cat([bank, x]) as two matmul operands (no concat in HBM)
        h = jnp.dot(bank.astype(_MM_DTYPE), wib_ref[...],
                    preferred_element_type=jnp.float32)
        h = h + jnp.dot(x_ref[0].astype(_MM_DTYPE), wix_ref[...],
                        preferred_element_type=jnp.float32)
        h = h + bi_ref[...].astype(jnp.float32)

        h = _apply_act(_instance_norm(h), act)                    # dropout = identity
        o_ref[0] = h.astype(o_ref.dtype)
    return kernel


def bank_in_conv(x_taps, x, params, *, act):
    B, T, _ = x.shape
    C_H = params['in_b'].shape[1]
    c_bank_tot = params['bank_b'].shape[1]
    flops = 2 * B * T * (x_taps.shape[-1] * c_bank_tot
                         + c_bank_tot * C_H + x.shape[-1] * C_H)
    bytes_accessed = (sum(int(a.size) * a.dtype.itemsize for a in
                          (x_taps, x, params['bank_w'], params['bank_b'],
                           params['in_w_bank'], params['in_w_x'], params['in_b']))
                      + B * T * C_H * jnp.dtype(_TRUNK_DTYPE).itemsize)
    return pl.pallas_call(
        _bank_in_kernel(act),
        out_shape=jax.ShapeDtypeStruct((B, T, C_H), _TRUNK_DTYPE),
        grid=(B,),
        in_specs=[
            pl.BlockSpec((1, T, x_taps.shape[-1]), lambda b: (b, 0, 0)),
            pl.BlockSpec((1, T, x.shape[-1]), lambda b: (b, 0, 0)),
            pl.BlockSpec(params['bank_w'].shape, lambda b: (0, 0)),
            pl.BlockSpec(params['bank_b'].shape, lambda b: (0, 0)),
            pl.BlockSpec(params['in_w_bank'].shape, lambda b: (0, 0)),
            pl.BlockSpec(params['in_w_x'].shape, lambda b: (0, 0)),
            pl.BlockSpec(params['in_b'].shape, lambda b: (0, 0)),
        ],
        out_specs=pl.BlockSpec((1, T, C_H), lambda b: (b, 0, 0)),
        compiler_params=pltpu.CompilerParams(
            dimension_semantics=("parallel",),
            vmem_limit_bytes=_vmem_limit_bytes()),
        cost_estimate=pl.CostEstimate(flops=int(flops),
                                      transcendentals=int(B * T * C_H),
                                      bytes_accessed=int(bytes_accessed)),
    )(x_taps, x, params['bank_w'], params['bank_b'],
      params['in_w_bank'], params['in_w_x'], params['in_b'])


# --------------------------------------------------------------------------
# Kernel B: fused conv block
#   first conv + IN + act + strided second conv + IN + act + avg_pool + residual
# --------------------------------------------------------------------------
def _block_kernel(*, T, k, sub, act):
    left = k // 2
    right = k - 1 - left                 # == k//2 - 1 + k%2 (ReflectionPad1d)
    t_next = -(-T // sub)                # ceil(T / sub)

    def _write_reflect_pad(pad_ref, v):
        """Write (T, C) value v into pad_ref with PyTorch reflection padding."""
        pad_ref[pl.ds(left, T), :] = v
        for i in range(left):
            pad_ref[pl.ds(i, 1), :] = v[left - i:left - i + 1]
        for i in range(right):
            pad_ref[pl.ds(left + T + i, 1), :] = v[T - 2 - i:T - 1 - i]

    def kernel(x_ref, w1_ref, b1_ref, w2_ref, b2_ref, o_ref, pad_ref):
        # ---- reflection-pad out_prev into the f32 scratch (no jnp.pad in HBM) ----
        xin = x_ref[0].astype(jnp.float32)                         # (T, C)
        _write_reflect_pad(pad_ref, xin)

        # ---- first conv: k taps concatenated into the contraction dim (one dot) ----
        wins = [pad_ref[pl.ds(j, T), :].astype(_MM_DTYPE) for j in range(k)]
        xcat = jnp.concatenate(wins, axis=-1)                      # (T, k*C)
        y = jnp.dot(xcat, w1_ref[...], preferred_element_type=jnp.float32)
        y = _apply_act(_instance_norm(y + b1_ref[...].astype(jnp.float32)), act)

        # ---- residual: avg_pool1d(out_prev, sub, ceil_mode=True), read from the
        #      scratch *before* it is reused for the second conv ----
        if sub == 1:
            pooled_main, pooled_last = xin, None
        else:
            rem = T - (t_next - 1) * sub           # valid elems in the last window
            pooled_main = None
            if t_next > 1:
                acc = pad_ref[pl.ds(left, t_next - 1, sub), :]
                for r in range(1, sub):
                    acc = acc + pad_ref[pl.ds(left + r, t_next - 1, sub), :]
                pooled_main = acc * (1.0 / sub)
            accl = pad_ref[pl.ds(left + (t_next - 1) * sub, 1), :]
            for r in range(1, rem):
                accl = accl + pad_ref[pl.ds(left + (t_next - 1) * sub + r, 1), :]
            pooled_last = accl * (1.0 / rem)

        # ---- reflection-pad first-conv output into the (reused) scratch ----
        _write_reflect_pad(pad_ref, y)

        # ---- second conv (stride = sub): strided tap reads, one dot ----
        if sub == 1:
            wins2 = [pad_ref[pl.ds(j, t_next), :].astype(_MM_DTYPE) for j in range(k)]
        else:
            wins2 = [pad_ref[pl.ds(j, t_next, sub), :].astype(_MM_DTYPE)
                     for j in range(k)]
        xcat2 = jnp.concatenate(wins2, axis=-1)                    # (t_next, k*C)
        y2 = jnp.dot(xcat2, w2_ref[...], preferred_element_type=jnp.float32)
        y2 = _apply_act(_instance_norm(y2 + b2_ref[...].astype(jnp.float32)), act)

        # ---- add pooled residual, lane-dense store ----
        if sub == 1:
            o_ref[0] = (y2 + pooled_main).astype(o_ref.dtype)
        else:
            if t_next > 1:
                o_ref[0, pl.ds(0, t_next - 1), :] = (
                    y2[:t_next - 1] + pooled_main).astype(o_ref.dtype)
            o_ref[0, pl.ds(t_next - 1, 1), :] = (
                y2[t_next - 1:t_next] + pooled_last).astype(o_ref.dtype)

    return kernel


def conv_block(out_prev, w1, b1, w2, b2, *, k, sub, act):
    B, T, C = out_prev.shape
    t_next = -(-T // sub)
    flops = 2 * B * (T + t_next) * k * C * C
    bytes_accessed = (out_prev.size * out_prev.dtype.itemsize
                      + w1.size * w1.dtype.itemsize + w2.size * w2.dtype.itemsize
                      + b1.size * b1.dtype.itemsize + b2.size * b2.dtype.itemsize
                      + B * t_next * C * jnp.dtype(_TRUNK_DTYPE).itemsize)
    return pl.pallas_call(
        _block_kernel(T=T, k=k, sub=sub, act=act),
        out_shape=jax.ShapeDtypeStruct((B, t_next, C), _TRUNK_DTYPE),
        grid=(B,),
        in_specs=[
            pl.BlockSpec((1, T, C), lambda b: (b, 0, 0)),
            pl.BlockSpec(w1.shape, lambda b: (0, 0)),
            pl.BlockSpec(b1.shape, lambda b: (0, 0)),
            pl.BlockSpec(w2.shape, lambda b: (0, 0)),
            pl.BlockSpec(b2.shape, lambda b: (0, 0)),
        ],
        out_specs=pl.BlockSpec((1, t_next, C), lambda b: (b, 0, 0)),
        scratch_shapes=[pltpu.VMEM((T + k - 1, C), jnp.float32)],
        compiler_params=pltpu.CompilerParams(
            dimension_semantics=("parallel",),
            vmem_limit_bytes=_vmem_limit_bytes()),
        cost_estimate=pl.CostEstimate(flops=int(flops),
                                      transcendentals=int(B * (T + t_next) * C),
                                      bytes_accessed=int(bytes_accessed)),
    )(out_prev, w1, b1, w2, b2)


# --------------------------------------------------------------------------
# Kernel C: fused mean / log_sigma 1x1 heads
# --------------------------------------------------------------------------
def _head_kernel():
    def kernel(x_ref, w_ref, b_ref, o_ref):
        h = jnp.dot(x_ref[0].astype(_MM_DTYPE), w_ref[...],
                    preferred_element_type=jnp.float32)
        o_ref[0] = (h + b_ref[...].astype(jnp.float32)).astype(o_ref.dtype)
    return kernel


def head_conv(out, head_w, head_b):
    B, T, C = out.shape
    C_HEAD = head_w.shape[1]
    flops = 2 * B * T * C * C_HEAD
    bytes_accessed = (out.size * out.dtype.itemsize + head_w.size * head_w.dtype.itemsize
                      + head_b.size * head_b.dtype.itemsize + B * T * C_HEAD * 4)
    return pl.pallas_call(
        _head_kernel(),
        out_shape=jax.ShapeDtypeStruct((B, T, C_HEAD), jnp.float32),
        grid=(B,),
        in_specs=[
            pl.BlockSpec((1, T, C), lambda b: (b, 0, 0)),
            pl.BlockSpec(head_w.shape, lambda b: (0, 0)),
            pl.BlockSpec(head_b.shape, lambda b: (0, 0)),
        ],
        out_specs=pl.BlockSpec((1, T, C_HEAD), lambda b: (b, 0, 0)),
        compiler_params=pltpu.CompilerParams(
            dimension_semantics=("parallel",),
            vmem_limit_bytes=_vmem_limit_bytes()),
        cost_estimate=pl.CostEstimate(flops=int(flops), transcendentals=0,
                                      bytes_accessed=int(bytes_accessed)),
    )(out, head_w, head_b)


# --------------------------------------------------------------------------
# Parameter init (PyTorch Conv1d layout) packed into fused / lane-padded tensors
# --------------------------------------------------------------------------
def _init_torch_conv(key, c_out, c_in, k):
    wk, bk = jax.random.split(key)
    bound = 1.0 / float(c_in * k) ** 0.5
    w = jax.random.uniform(wk, (c_out, c_in, k), jnp.float32, -bound, bound)
    b = jax.random.uniform(bk, (c_out,), jnp.float32, -bound, bound)
    return w, b


def init_params(key, *, c_in, c_h, c_out, kernel_size, bank_size, bank_scale,
                c_bank, n_conv_blocks):
    ks_bank = list(range(bank_scale, bank_size + 1, bank_scale))
    k_max = ks_bank[-1]
    n_bank = len(ks_bank)
    c_bank_tot = n_bank * c_bank
    C_H = _pad_to_lane(c_h)
    C_HEAD = _pad_to_lane(2 * c_out)

    keys = iter(jax.random.split(key, n_bank + 1 + 2 * n_conv_blocks + 2))
    p = {}

    # ---- ConvBank: all kernel sizes packed into ONE (k_max*c_in, c_bank_tot) weight ----
    wb = jnp.zeros((k_max * c_in, c_bank_tot), jnp.float32)
    bb = jnp.zeros((1, c_bank_tot), jnp.float32)
    for bi, k in enumerate(ks_bank):
        w, b = _init_torch_conv(next(keys), c_bank, c_in, k)      # (c_bank, c_in, k)
        j0 = k_max // 2 - k // 2        # tap offset so reflect-pad alignment matches
        for j in range(k):
            wb = wb.at[(j0 + j) * c_in:(j0 + j + 1) * c_in,
                       bi * c_bank:(bi + 1) * c_bank].set(jnp.transpose(w[:, :, j]))
        bb = bb.at[0, bi * c_bank:(bi + 1) * c_bank].set(b)
    p['bank_w'], p['bank_b'] = wb.astype(_MM_DTYPE), bb

    # ---- in_conv (1x1 over cat([bank, x])) split into two matmul operands ----
    in_channels = c_bank_tot + c_in
    w, b = _init_torch_conv(next(keys), c_h, in_channels, 1)
    w2d = jnp.transpose(w[:, :, 0])                                # (in_channels, c_h)
    p['in_w_bank'] = (jnp.zeros((c_bank_tot, C_H), jnp.float32)
                      .at[:, :c_h].set(w2d[:c_bank_tot]).astype(_MM_DTYPE))
    p['in_w_x'] = (jnp.zeros((c_in, C_H), jnp.float32)
                   .at[:, :c_h].set(w2d[c_bank_tot:]).astype(_MM_DTYPE))
    p['in_b'] = jnp.zeros((1, C_H), jnp.float32).at[0, :c_h].set(b)

    # ---- conv blocks: weights reshaped to (k*C_H, C_H) for the tap-concat dot ----
    def _packed_trunk_conv(k):
        w, b = _init_torch_conv(next(keys), c_h, c_h, k)
        wk_full = (jnp.zeros((k, C_H, C_H), jnp.float32)
                   .at[:, :c_h, :c_h].set(jnp.transpose(w, (2, 1, 0))))
        return (wk_full.reshape(k * C_H, C_H).astype(_MM_DTYPE),
                jnp.zeros((1, C_H), jnp.float32).at[0, :c_h].set(b))

    p['first_w'], p['first_b'], p['second_w'], p['second_b'] = [], [], [], []
    for _ in range(n_conv_blocks):
        wr, br = _packed_trunk_conv(kernel_size)
        p['first_w'].append(wr); p['first_b'].append(br)
    for _ in range(n_conv_blocks):
        wr, br = _packed_trunk_conv(kernel_size)
        p['second_w'].append(wr); p['second_b'].append(br)

    # ---- heads: mean & std 1x1 convs fused into one matmul ----
    wm, bm = _init_torch_conv(next(keys), c_out, c_h, 1)
    ws, bs = _init_torch_conv(next(keys), c_out, c_h, 1)
    head_w = jnp.zeros((C_H, C_HEAD), jnp.float32)
    head_w = head_w.at[:c_h, :c_out].set(jnp.transpose(wm[:, :, 0]))
    head_w = head_w.at[:c_h, c_out:2 * c_out].set(jnp.transpose(ws[:, :, 0]))
    head_b = (jnp.zeros((1, C_HEAD), jnp.float32)
              .at[0, :c_out].set(bm).at[0, c_out:2 * c_out].set(bs))
    p['head_w'], p['head_b'] = head_w.astype(_MM_DTYPE), head_b
    return p


# --------------------------------------------------------------------------
# Forward pass (matches ContentEncoder.forward, eval-mode dropout)
# --------------------------------------------------------------------------
def content_encoder_forward(x_bct, params, *, c_out, kernel_size, n_conv_blocks,
                            subsample, act):
    x = jnp.transpose(x_bct, (0, 2, 1)).astype(jnp.float32)       # (B, T, c_in)
    B, T, c_in = x.shape
    k_max = params['bank_w'].shape[0] // c_in                     # static

    # tiny im2col of the raw input for the fused bank (c_in is small; the wide
    # bank / trunk activations never touch HBM before the fused kernel)
    left, right = k_max // 2, k_max - 1 - k_max // 2
    xp = jnp.pad(x, ((0, 0), (left, right), (0, 0)), mode='reflect')
    x_taps = jnp.concatenate([xp[:, j:j + T, :] for j in range(k_max)], axis=-1)

    # ---- fused ConvBank + act + in_conv + InstanceNorm + act ----
    out = bank_in_conv(x_taps, x, params, act=act)                # (B, T, C_H) bf16

    # ---- fused conv blocks (first + second + pool + residual each) ----
    for idx in range(n_conv_blocks):
        out = conv_block(out, params['first_w'][idx], params['first_b'][idx],
                         params['second_w'][idx], params['second_b'][idx],
                         k=kernel_size, sub=subsample[idx], act=act)

    # ---- fused mean/std heads, slice lane padding off, back to NCT ----
    heads = head_conv(out, params['head_w'], params['head_b'])
    mu = jnp.transpose(heads[:, :, :c_out], (0, 2, 1))
    log_sigma = jnp.transpose(heads[:, :, c_out:2 * c_out], (0, 2, 1))
    return mu, log_sigma


# --------------------------------------------------------------------------
if __name__ == "__main__":
    B, c_in, T = 2, 4, 16
    c_h, c_out = 32, 8
    kernel_size = 3
    bank_size, bank_scale, c_bank = 4, 2, 4
    n_conv_blocks = 2
    subsample = (1, 2)
    act = 'relu'
    # dropout_rate = 0.0 -> identity (eval-mode semantics)

    key = jax.random.PRNGKey(0)
    kx, kp = jax.random.split(key)
    x = jax.random.normal(kx, (B, c_in, T), jnp.float32)
    params = init_params(kp, c_in=c_in, c_h=c_h, c_out=c_out, kernel_size=kernel_size,
                         bank_size=bank_size, bank_scale=bank_scale, c_bank=c_bank,
                         n_conv_blocks=n_conv_blocks)

    fwd = jax.jit(functools.partial(content_encoder_forward,
                                    c_out=c_out, kernel_size=kernel_size,
                                    n_conv_blocks=n_conv_blocks,
                                    subsample=subsample, act=act))
    mu, log_sigma = fwd(x, params)
    jax.block_until_ready((mu, log_sigma))

    t_final = T
    for s in subsample:
        t_final = -(-t_final // s)
    assert mu.shape == (B, c_out, t_final) and log_sigma.shape == (B, c_out, t_final)
    assert bool(jnp.all(jnp.isfinite(mu))) and bool(jnp.all(jnp.isfinite(log_sigma)))
    print("KERNEL_OK")
</pallas_src>

<mosaic_0001>
module attributes {stable_mosaic.version = 11 : i64} {
  func.func @kernel(%arg0: i32, %arg1: memref<1x16x16xf32, #tpu.memory_space<vmem>>, %arg2: memref<1x16x4xf32, #tpu.memory_space<vmem>>, %arg3: memref<16x8xbf16, #tpu.memory_space<vmem>>, %arg4: memref<1x8xf32, #tpu.memory_space<vmem>>, %arg5: memref<8x128xbf16, #tpu.memory_space<vmem>>, %arg6: memref<4x128xbf16, #tpu.memory_space<vmem>>, %arg7: memref<1x128xf32, #tpu.memory_space<vmem>>, %arg8: memref<1x16x128xbf16, #tpu.memory_space<vmem>>) attributes {dimension_semantics = [#tpu.dimension_semantics<parallel>], iteration_bounds = array<i64: 2>, scalar_prefetch = 0 : i64, scratch_operands = 0 : i64, tpu.core_type = #tpu.core_type<tc>, window_params = [{transform_indices = @transform_0, window_bounds = array<i64: 1, 16, 16>}, {transform_indices = @transform_1, window_bounds = array<i64: 1, 16, 4>}, {pipeline_mode = #tpu.pipeline_mode<synchronous>, transform_indices = @transform_2, window_bounds = array<i64: 16, 8>}, {pipeline_mode = #tpu.pipeline_mode<synchronous>, transform_indices = @transform_3, window_bounds = array<i64: 1, 8>}, {pipeline_mode = #tpu.pipeline_mode<synchronous>, transform_indices = @transform_4, window_bounds = array<i64: 8, 128>}, {pipeline_mode = #tpu.pipeline_mode<synchronous>, transform_indices = @transform_5, window_bounds = array<i64: 4, 128>}, {pipeline_mode = #tpu.pipeline_mode<synchronous>, transform_indices = @transform_6, window_bounds = array<i64: 1, 128>}, {transform_indices = @transform_7, window_bounds = array<i64: 1, 16, 128>}]} {
    %c0 = arith.constant 0 : index
    %c0_0 = arith.constant 0 : index
    %c0_1 = arith.constant 0 : index
    %0 = vector.load %arg1[%c0, %c0_0, %c0_1] : memref<1x16x16xf32, #tpu.memory_space<vmem>>, vector<1x16x16xf32>
    %1 = vector.shape_cast %0 : vector<1x16x16xf32> to vector<16x16xf32>
    %2 = arith.truncf %1 : vector<16x16xf32> to vector<16x16xbf16>
    %c0_2 = arith.constant 0 : index
    %c0_3 = arith.constant 0 : index
    %3 = vector.load %arg3[%c0_2, %c0_3] : memref<16x8xbf16, #tpu.memory_space<vmem>>, vector<16x8xbf16>
    %cst = arith.constant dense<0.000000e+00> : vector<16x8xf32>
    %4 = tpu.matmul %2, %3, %cst {dimension_numbers = #tpu.dot_dimension_numbers<[1], [0], [0], [1], [0, 0, 1, 1], [], []>} : vector<16x16xbf16>, vector<16x8xbf16>, vector<16x8xf32> -> vector<16x8xf32>
    %c0_4 = arith.constant 0 : index
    %c0_5 = arith.constant 0 : index
    %5 = vector.load %arg4[%c0_4, %c0_5] : memref<1x8xf32, #tpu.memory_space<vmem>>, vector<1x8xf32>
    %6 = vector.broadcast %5 : vector<1x8xf32> to vector<16x8xf32>
    %7 = arith.addf %4, %6 : vector<16x8xf32>
    %cst_6 = arith.constant 0.000000e+00 : f32
    %8 = vector.broadcast %cst_6 : f32 to vector<16x8xf32>
    %9 = arith.maximumf %7, %8 : vector<16x8xf32>
    %10 = arith.truncf %9 : vector<16x8xf32> to vector<16x8xbf16>
    %c0_7 = arith.constant 0 : index
    %c0_8 = arith.constant 0 : index
    %11 = vector.load %arg5[%c0_7, %c0_8] : memref<8x128xbf16, #tpu.memory_space<vmem>>, vector<8x128xbf16>
    %cst_9 = arith.constant dense<0.000000e+00> : vector<16x128xf32>
    %12 = tpu.matmul %10, %11, %cst_9 {dimension_numbers = #tpu.dot_dimension_numbers<[1], [0], [0], [1], [0, 0, 1, 1], [], []>} : vector<16x8xbf16>, vector<8x128xbf16>, vector<16x128xf32> -> vector<16x128xf32>
    %c0_10 = arith.constant 0 : index
    %c0_11 = arith.constant 0 : index
    %c0_12 = arith.constant 0 : index
    %13 = vector.load %arg2[%c0_10, %c0_11, %c0_12] : memref<1x16x4xf32, #tpu.memory_space<vmem>>, vector<1x16x4xf32>
    %14 = vector.shape_cast %13 : vector<1x16x4xf32> to vector<16x4xf32>
    %15 = arith.truncf %14 : vector<16x4xf32> to vector<16x4xbf16>
    %c0_13 = arith.constant 0 : index
    %c0_14 = arith.constant 0 : index
    %16 = vector.load %arg6[%c0_13, %c0_14] : memref<4x128xbf16, #tpu.memory_space<vmem>>, vector<4x128xbf16>
    %cst_15 = arith.constant dense<0.000000e+00> : vector<16x128xf32>
    %17 = tpu.matmul %15, %16, %cst_15 {dimension_numbers = #tpu.dot_dimension_numbers<[1], [0], [0], [1], [0, 0, 1, 1], [], []>} : vector<16x4xbf16>, vector<4x128xbf16>, vector<16x128xf32> -> vector<16x128xf32>
    %18 = arith.addf %12, %17 : vector<16x128xf32>
    %c0_16 = arith.constant 0 : index
    %c0_17 = arith.constant 0 : index
    %19 = vector.load %arg7[%c0_16, %c0_17] : memref<1x128xf32, #tpu.memory_space<vmem>>, vector<1x128xf32>
    %20 = vector.broadcast %19 : vector<1x128xf32> to vector<16x128xf32>
    %21 = arith.addf %18, %20 : vector<16x128xf32>
    %cst_18 = arith.constant dense<0.000000e+00> : vector<128xf32>
    %22 = vector.multi_reduction <add>, %21, %cst_18 [0] : vector<16x128xf32> to vector<128xf32>
    %23 = vector.shape_cast %22 : vector<128xf32> to vector<1x128xf32>
    %cst_19 = arith.constant 1.600000e+01 : f32
    %24 = vector.broadcast %cst_19 : f32 to vector<1x128xf32>
    %25 = arith.divf %23, %24 : vector<1x128xf32>
    %26 = vector.broadcast %25 : vector<1x128xf32> to vector<16x128xf32>
    %27 = arith.subf %21, %26 : vector<16x128xf32>
    %28 = arith.mulf %27, %27 : vector<16x128xf32>
    %cst_20 = arith.constant dense<0.000000e+00> : vector<128xf32>
    %29 = vector.multi_reduction <add>, %28, %cst_20 [0] : vector<16x128xf32> to vector<128xf32>
    %30 = vector.shape_cast %29 : vector<128xf32> to vector<1x128xf32>
    %cst_21 = arith.constant 1.600000e+01 : f32
    %31 = vector.broadcast %cst_21 : f32 to vector<1x128xf32>
    %32 = arith.divf %30, %31 : vector<1x128xf32>
    %33 = vector.broadcast %25 : vector<1x128xf32> to vector<16x128xf32>
    %34 = arith.subf %21, %33 : vector<16x128xf32>
    %cst_22 = arith.constant 9.99999974E-6 : f32
    %35 = vector.broadcast %cst_22 : f32 to vector<1x128xf32>
    %36 = arith.addf %32, %35 : vector<1x128xf32>
    %37 = math.rsqrt %36 : vector<1x128xf32>
    %38 = vector.broadcast %37 : vector<1x128xf32> to vector<16x128xf32>
    %39 = arith.mulf %34, %38 : vector<16x128xf32>
    %cst_23 = arith.constant 0.000000e+00 : f32
    %40 = vector.broadcast %cst_23 : f32 to vector<16x128xf32>
    %41 = arith.maximumf %39, %40 : vector<16x128xf32>
    %42 = arith.truncf %41 : vector<16x128xf32> to vector<16x128xbf16>
    %c0_24 = arith.constant 0 : index
    %c0_25 = arith.constant 0 : index
    %c0_26 = arith.constant 0 : index
    %43 = vector.load %arg8[%c0_24, %c0_25, %c0_26] : memref<1x16x128xbf16, #tpu.memory_space<vmem>>, vector<1x16x128xbf16>
    %44 = vector.shape_cast %43 : vector<1x16x128xbf16> to vector<16x128xbf16>
    %45 = vector.shape_cast %42 : vector<16x128xbf16> to vector<1x16x128xbf16>
    tpu.vector_store %arg8[%c0_24, %c0_25, %c0_26], %45 {strides = array<i32>} : memref<1x16x128xbf16, #tpu.memory_space<vmem>>, vector<1x16x128xbf16>,
    return
  }
  func.func @transform_0(%arg0: i32) -> (i32, i32, i32) {
    %c0_i32 = arith.constant 0 : i32
    %c0_i32_0 = arith.constant 0 : i32
    %c0_i32_1 = arith.constant 0 : i32
    return %arg0, %c0_i32, %c0_i32_0 : i32, i32, i32
  }
  func.func @transform_1(%arg0: i32) -> (i32, i32, i32) {
    %c0_i32 = arith.constant 0 : i32
    %c0_i32_0 = arith.constant 0 : i32
    %c0_i32_1 = arith.constant 0 : i32
    return %arg0, %c0_i32, %c0_i32_0 : i32, i32, i32
  }
  func.func @transform_2(%arg0: i32) -> (i32, i32) {
    %c0_i32 = arith.constant 0 : i32
    %c0_i32_0 = arith.constant 0 : i32
    %c0_i32_1 = arith.constant 0 : i32
    return %c0_i32, %c0_i32_0 : i32, i32
  }
  func.func @transform_3(%arg0: i32) -> (i32, i32) {
    %c0_i32 = arith.constant 0 : i32
    %c0_i32_0 = arith.constant 0 : i32
    %c0_i32_1 = arith.constant 0 : i32
    return %c0_i32, %c0_i32_0 : i32, i32
  }
  func.func @transform_4(%arg0: i32) -> (i32, i32) {
    %c0_i32 = arith.constant 0 : i32
    %c0_i32_0 = arith.constant 0 : i32
    %c0_i32_1 = arith.constant 0 : i32
    return %c0_i32, %c0_i32_0 : i32, i32
  }
  func.func @transform_5(%arg0: i32) -> (i32, i32) {
    %c0_i32 = arith.constant 0 : i32
    %c0_i32_0 = arith.constant 0 : i32
    %c0_i32_1 = arith.constant 0 : i32
    return %c0_i32, %c0_i32_0 : i32, i32
  }
  func.func @transform_6(%arg0: i32) -> (i32, i32) {
    %c0_i32 = arith.constant 0 : i32
    %c0_i32_0 = arith.constant 0 : i32
    %c0_i32_1 = arith.constant 0 : i32
    return %c0_i32, %c0_i32_0 : i32, i32
  }
  func.func @transform_7(%arg0: i32) -> (i32, i32, i32) {
    %c0_i32 = arith.constant 0 : i32
    %c0_i32_0 = arith.constant 0 : i32
    %c0_i32_1 = arith.constant 0 : i32
    return %arg0, %c0_i32, %c0_i32_0 : i32, i32, i32
  }
}

module attributes {stable_mosaic.version = 11 : i64} {
  func.func @kernel(%arg0: i32, %arg1: memref<1x8x128xbf16, #tpu.memory_space<vmem>>, %arg2: memref<128x128xbf16, #tpu.memory_space<vmem>>, %arg3: memref<1x128xf32, #tpu.memory_space<vmem>>, %arg4: memref<1x8x128xf32, #tpu.memory_space<vmem>>) attributes {dimension_semantics = [#tpu.dimension_semantics<parallel>], iteration_bounds = array<i64: 2>, scalar_prefetch = 0 : i64, scratch_operands = 0 : i64, tpu.core_type = #tpu.core_type<tc>, window_params = [{transform_indices = @transform_0, window_bounds = array<i64: 1, 8, 128>}, {pipeline_mode = #tpu.pipeline_mode<synchronous>, transform_indices = @transform_1, window_bounds = array<i64: 128, 128>}, {pipeline_mode = #tpu.pipeline_mode<synchronous>, transform_indices = @transform_2, window_bounds = array<i64: 1, 128>}, {transform_indices = @transform_3, window_bounds = array<i64: 1, 8, 128>}]} {
    %c0 = arith.constant 0 : index
    %c0_0 = arith.constant 0 : index
    %c0_1 = arith.constant 0 : index
    %0 = vector.load %arg1[%c0, %c0_0, %c0_1] : memref<1x8x128xbf16, #tpu.memory_space<vmem>>, vector<1x8x128xbf16>
    %1 = vector.shape_cast %0 : vector<1x8x128xbf16> to vector<8x128xbf16>
    %c0_2 = arith.constant 0 : index
    %c0_3 = arith.constant 0 : index
    %2 = vector.load %arg2[%c0_2, %c0_3] : memref<128x128xbf16, #tpu.memory_space<vmem>>, vector<128x128xbf16>
    %cst = arith.constant dense<0.000000e+00> : vector<8x128xf32>
    %3 = tpu.matmul %1, %2, %cst {dimension_numbers = #tpu.dot_dimension_numbers<[1], [0], [0], [1], [0, 0, 1, 1], [], []>} : vector<8x128xbf16>, vector<128x128xbf16>, vector<8x128xf32> -> vector<8x128xf32>
    %c0_4 = arith.constant 0 : index
    %c0_5 = arith.constant 0 : index
    %4 = vector.load %arg3[%c0_4, %c0_5] : memref<1x128xf32, #tpu.memory_space<vmem>>, vector<1x128xf32>
    %5 = vector.broadcast %4 : vector<1x128xf32> to vector<8x128xf32>
    %6 = arith.addf %3, %5 : vector<8x128xf32>
    %c0_6 = arith.constant 0 : index
    %c0_7 = arith.constant 0 : index
    %c0_8 = arith.constant 0 : index
    %7 = vector.load %arg4[%c0_6, %c0_7, %c0_8] : memref<1x8x128xf32, #tpu.memory_space<vmem>>, vector<1x8x128xf32>
    %8 = vector.shape_cast %7 : vector<1x8x128xf32> to vector<8x128xf32>
    %9 = vector.shape_cast %6 : vector<8x128xf32> to vector<1x8x128xf32>
    tpu.vector_store %arg4[%c0_6, %c0_7, %c0_8], %9 {strides = array<i32>} : memref<1x8x128xf32, #tpu.memory_space<vmem>>, vector<1x8x128xf32>,
    return
  }
  func.func @transform_0(%arg0: i32) -> (i32, i32, i32) {
    %c0_i32 = arith.constant 0 : i32
    %c0_i32_0 = arith.constant 0 : i32
    %c0_i32_1 = arith.constant 0 : i32
    return %arg0, %c0_i32, %c0_i32_0 : i32, i32, i32
  }
  func.func @transform_1(%arg0: i32) -> (i32, i32) {
    %c0_i32 = arith.constant 0 : i32
    %c0_i32_0 = arith.constant 0 : i32
    %c0_i32_1 = arith.constant 0 : i32
    return %c0_i32, %c0_i32_0 : i32, i32
  }
  func.func @transform_2(%arg0: i32) -> (i32, i32) {
    %c0_i32 = arith.constant 0 : i32
    %c0_i32_0 = arith.constant 0 : i32
    %c0_i32_1 = arith.constant 0 : i32
    return %c0_i32, %c0_i32_0 : i32, i32
  }
  func.func @transform_3(%arg0: i32) -> (i32, i32, i32) {
    %c0_i32 = arith.constant 0 : i32
    %c0_i32_0 = arith.constant 0 : i32
    %c0_i32_1 = arith.constant 0 : i32
    return %arg0, %c0_i32, %c0_i32_0 : i32, i32, i32
  }
}

module attributes {stable_mosaic.version = 11 : i64} {
  func.func @kernel(%arg0: i32, %arg1: memref<1x16x128xbf16, #tpu.memory_space<vmem>>, %arg2: memref<384x128xbf16, #tpu.memory_space<vmem>>, %arg3: memref<1x128xf32, #tpu.memory_space<vmem>>, %arg4: memref<384x128xbf16, #tpu.memory_space<vmem>>, %arg5: memref<1x128xf32, #tpu.memory_space<vmem>>, %arg6: memref<1x8x128xbf16, #tpu.memory_space<vmem>>, %arg7: memref<18x128xf32, #tpu.memory_space<vmem>>) attributes {dimension_semantics = [#tpu.dimension_semantics<parallel>], iteration_bounds = array<i64: 2>, scalar_prefetch = 0 : i64, scratch_operands = 1 : i64, tpu.core_type = #tpu.core_type<tc>, window_params = [{transform_indices = @transform_0, window_bounds = array<i64: 1, 16, 128>}, {pipeline_mode = #tpu.pipeline_mode<synchronous>, transform_indices = @transform_1, window_bounds = array<i64: 384, 128>}, {pipeline_mode = #tpu.pipeline_mode<synchronous>, transform_indices = @transform_2, window_bounds = array<i64: 1, 128>}, {pipeline_mode = #tpu.pipeline_mode<synchronous>, transform_indices = @transform_3, window_bounds = array<i64: 384, 128>}, {pipeline_mode = #tpu.pipeline_mode<synchronous>, transform_indices = @transform_4, window_bounds = array<i64: 1, 128>}, {transform_indices = @transform_5, window_bounds = array<i64: 1, 8, 128>}]} {
    %c0 = arith.constant 0 : index
    %c0_0 = arith.constant 0 : index
    %c0_1 = arith.constant 0 : index
    %0 = vector.load %arg1[%c0, %c0_0, %c0_1] : memref<1x16x128xbf16, #tpu.memory_space<vmem>>, vector<1x16x128xbf16>
    %1 = vector.shape_cast %0 : vector<1x16x128xbf16> to vector<16x128xbf16>
    %2 = arith.extf %1 : vector<16x128xbf16> to vector<16x128xf32>
    %c1 = arith.constant 1 : index
    %c0_2 = arith.constant 0 : index
    %3 = vector.load %arg7[%c1, %c0_2] : memref<18x128xf32, #tpu.memory_space<vmem>>, vector<16x128xf32>
    tpu.vector_store %arg7[%c1, %c0_2], %2 {strides = array<i32>} : memref<18x128xf32, #tpu.memory_space<vmem>>, vector<16x128xf32>,
    %4 = vector.extract_strided_slice %2 {offsets = [1, 0], sizes = [1, 128], strides = [1, 1]} : vector<16x128xf32> to vector<1x128xf32>
    %c0_3 = arith.constant 0 : index
    %c0_4 = arith.constant 0 : index
    %5 = vector.load %arg7[%c0_3, %c0_4] : memref<18x128xf32, #tpu.memory_space<vmem>>, vector<1x128xf32>
    tpu.vector_store %arg7[%c0_3, %c0_4], %4 {strides = array<i32>} : memref<18x128xf32, #tpu.memory_space<vmem>>, vector<1x128xf32>,
    %6 = vector.extract_strided_slice %2 {offsets = [14, 0], sizes = [1, 128], strides = [1, 1]} : vector<16x128xf32> to vector<1x128xf32>
    %c17 = arith.constant 17 : index
    %c0_5 = arith.constant 0 : index
    %7 = vector.load %arg7[%c17, %c0_5] : memref<18x128xf32, #tpu.memory_space<vmem>>, vector<1x128xf32>
    tpu.vector_store %arg7[%c17, %c0_5], %6 {strides = array<i32>} : memref<18x128xf32, #tpu.memory_space<vmem>>, vector<1x128xf32>,
    %c0_6 = arith.constant 0 : index
    %c0_7 = arith.constant 0 : index
    %8 = vector.load %arg7[%c0_6, %c0_7] : memref<18x128xf32, #tpu.memory_space<vmem>>, vector<16x128xf32>
    %9 = arith.truncf %8 : vector<16x128xf32> to vector<16x128xbf16>
    %c1_8 = arith.constant 1 : index
    %c0_9 = arith.constant 0 : index
    %10 = vector.load %arg7[%c1_8, %c0_9] : memref<18x128xf32, #tpu.memory_space<vmem>>, vector<16x128xf32>
    %11 = arith.truncf %10 : vector<16x128xf32> to vector<16x128xbf16>
    %c2 = arith.constant 2 : index
    %c0_10 = arith.constant 0 : index
    %12 = vector.load %arg7[%c2, %c0_10] : memref<18x128xf32, #tpu.memory_space<vmem>>, vector<16x128xf32>
    %13 = arith.truncf %12 : vector<16x128xf32> to vector<16x128xbf16>
    %14 = tpu.concatenate %9, %11, %13 in 1 : vector<16x128xbf16>, vector<16x128xbf16>, vector<16x128xbf16> -> vector<16x384xbf16>
    %c0_11 = arith.constant 0 : index
    %c0_12 = arith.constant 0 : index
    %15 = vector.load %arg2[%c0_11, %c0_12] : memref<384x128xbf16, #tpu.memory_space<vmem>>, vector<384x128xbf16>
    %cst = arith.constant dense<0.000000e+00> : vector<16x128xf32>
    %16 = tpu.matmul %14, %15, %cst {dimension_numbers = #tpu.dot_dimension_numbers<[1], [0], [0], [1], [0, 0, 1, 1], [], []>} : vector<16x384xbf16>, vector<384x128xbf16>, vector<16x128xf32> -> vector<16x128xf32>
    %c0_13 = arith.constant 0 : index
    %c0_14 = arith.constant 0 : index
    %17 = vector.load %arg3[%c0_13, %c0_14] : memref<1x128xf32, #tpu.memory_space<vmem>>, vector<1x128xf32>
    %18 = vector.broadcast %17 : vector<1x128xf32> to vector<16x128xf32>
    %19 = arith.addf %16, %18 : vector<16x128xf32>
    %cst_15 = arith.constant dense<0.000000e+00> : vector<128xf32>
    %20 = vector.multi_reduction <add>, %19, %cst_15 [0] : vector<16x128xf32> to vector<128xf32>
    %21 = vector.shape_cast %20 : vector<128xf32> to vector<1x128xf32>
    %cst_16 = arith.constant 1.600000e+01 : f32
    %22 = vector.broadcast %cst_16 : f32 to vector<1x128xf32>
    %23 = arith.divf %21, %22 : vector<1x128xf32>
    %24 = vector.broadcast %23 : vector<1x128xf32> to vector<16x128xf32>
    %25 = arith.subf %19, %24 : vector<16x128xf32>
    %26 = arith.mulf %25, %25 : vector<16x128xf32>
    %cst_17 = arith.constant dense<0.000000e+00> : vector<128xf32>
    %27 = vector.multi_reduction <add>, %26, %cst_17 [0] : vector<16x128xf32> to vector<128xf32>
    %28 = vector.shape_cast %27 : vector<128xf32> to vector<1x128xf32>
    %cst_18 = arith.constant 1.600000e+01 : f32
    %29 = vector.broadcast %cst_18 : f32 to vector<1x128xf32>
    %30 = arith.divf %28, %29 : vector<1x128xf32>
    %31 = vector.broadcast %23 : vector<1x128xf32> to vector<16x128xf32>
    %32 = arith.subf %19, %31 : vector<16x128xf32>
    %cst_19 = arith.constant 9.99999974E-6 : f32
    %33 = vector.broadcast %cst_19 : f32 to vector<1x128xf32>
    %34 = arith.addf %30, %33 : vector<1x128xf32>
    %35 = math.rsqrt %34 : vector<1x128xf32>
    %36 = vector.broadcast %35 : vector<1x128xf32> to vector<16x128xf32>
    %37 = arith.mulf %32, %36 : vector<16x128xf32>
    %cst_20 = arith.constant 0.000000e+00 : f32
    %38 = vector.broadcast %cst_20 : f32 to vector<16x128xf32>
    %39 = arith.maximumf %37, %38 : vector<16x128xf32>
    %c1_21 = arith.constant 1 : index
    %c0_22 = arith.constant 0 : index
    %40 = tpu.strided_load %arg7[%c1_21, %c0_22] {strides = array<i32: 2, 1>} : memref<18x128xf32, #tpu.memory_space<vmem>>, vector<7x128xf32>
    %c2_23 = arith.constant 2 : index
    %c0_24 = arith.constant 0 : index
    %41 = tpu.strided_load %arg7[%c2_23, %c0_24] {strides = array<i32: 2, 1>} : memref<18x128xf32, #tpu.memory_space<vmem>>, vector<7x128xf32>
    %42 = arith.addf %40, %41 : vector<7x128xf32>
    %cst_25 = arith.constant 5.000000e-01 : f32
    %43 = vector.broadcast %cst_25 : f32 to vector<7x128xf32>
    %44 = arith.mulf %42, %43 : vector<7x128xf32>
    %c15 = arith.constant 15 : index
    %c0_26 = arith.constant 0 : index
    %45 = vector.load %arg7[%c15, %c0_26] : memref<18x128xf32, #tpu.memory_space<vmem>>, vector<1x128xf32>
    %c16 = arith.constant 16 : index
    %c0_27 = arith.constant 0 : index
    %46 = vector.load %arg7[%c16, %c0_27] : memref<18x128xf32, #tpu.memory_space<vmem>>, vector<1x128xf32>
    %47 = arith.addf %45, %46 : vector<1x128xf32>
    %cst_28 = arith.constant 5.000000e-01 : f32
    %48 = vector.broadcast %cst_28 : f32 to vector<1x128xf32>
    %49 = arith.mulf %47, %48 : vector<1x128xf32>
    %c1_29 = arith.constant 1 : index
    %c0_30 = arith.constant 0 : index
    %50 = vector.load %arg7[%c1_29, %c0_30] : memref<18x128xf32, #tpu.memory_space<vmem>>, vector<16x128xf32>
    tpu.vector_store %arg7[%c1_29, %c0_30], %39 {strides = array<i32>} : memref<18x128xf32, #tpu.memory_space<vmem>>, vector<16x128xf32>,
    %51 = vector.extract_strided_slice %39 {offsets = [1, 0], sizes = [1, 128], strides = [1, 1]} : vector<16x128xf32> to vector<1x128xf32>
    %c0_31 = arith.constant 0 : index
    %c0_32 = arith.constant 0 : index
    %52 = vector.load %arg7[%c0_31, %c0_32] : memref<18x128xf32, #tpu.memory_space<vmem>>, vector<1x128xf32>
    tpu.vector_store %arg7[%c0_31, %c0_32], %51 {strides = array<i32>} : memref<18x128xf32, #tpu.memory_space<vmem>>, vector<1x128xf32>,
    %53 = vector.extract_strided_slice %39 {offsets = [14, 0], sizes = [1, 128], strides = [1, 1]} : vector<16x128xf32> to vector<1x128xf32>
    %c17_33 = arith.constant 17 : index
    %c0_34 = arith.constant 0 : index
    %54 = vector.load %arg7[%c17_33, %c0_34] : memref<18x128xf32, #tpu.memory_space<vmem>>, vector<1x128xf32>
    tpu.vector_store %arg7[%c17_33, %c0_34], %53 {strides = array<i32>} : memref<18x128xf32, #tpu.memory_space<vmem>>, vector<1x128xf32>,
    %c0_35 = arith.constant 0 : index
    %c0_36 = arith.constant 0 : index
    %55 = tpu.strided_load %arg7[%c0_35, %c0_36] {strides = array<i32: 2, 1>} : memref<18x128xf32, #tpu.memory_space<vmem>>, vector<8x128xf32>
    %56 = arith.truncf %55 : vector<8x128xf32> to vector<8x128xbf16>
    %c1_37 = arith.constant 1 : index
    %c0_38 = arith.constant 0 : index
    %57 = tpu.strided_load %arg7[%c1_37, %c0_38] {strides = array<i32: 2, 1>} : memref<18x128xf32, #tpu.memory_space<vmem>>, vector<8x128xf32>
    %58 = arith.truncf %57 : vector<8x128xf32> to vector<8x128xbf16>
    %c2_39 = arith.constant 2 : index
    %c0_40 = arith.constant 0 : index
    %59 = tpu.strided_load %arg7[%c2_39, %c0_40] {strides = array<i32: 2, 1>} : memref<18x128xf32, #tpu.memory_space<vmem>>, vector<8x128xf32>
    %60 = arith.truncf %59 : vector<8x128xf32> to vector<8x128xbf16>
    %61 = tpu.concatenate %56, %58, %60 in 1 : vector<8x128xbf16>, vector<8x128xbf16>, vector<8x128xbf16> -> vector<8x384xbf16>
    %c0_41 = arith.constant 0 : index
    %c0_42 = arith.constant 0 : index
    %62 = vector.load %arg4[%c0_41, %c0_42] : memref<384x128xbf16, #tpu.memory_space<vmem>>, vector<384x128xbf16>
    %cst_43 = arith.constant dense<0.000000e+00> : vector<8x128xf32>
    %63 = tpu.matmul %61, %62, %cst_43 {dimension_numbers = #tpu.dot_dimension_numbers<[1], [0], [0], [1], [0, 0, 1, 1], [], []>} : vector<8x384xbf16>, vector<384x128xbf16>, vector<8x128xf32> -> vector<8x128xf32>
    %c0_44 = arith.constant 0 : index
    %c0_45 = arith.constant 0 : index
    %64 = vector.load %arg5[%c0_44, %c0_45] : memref<1x128xf32, #tpu.memory_space<vmem>>, vector<1x128xf32>
    %65 = vector.broadcast %64 : vector<1x128xf32> to vector<8x128xf32>
    %66 = arith.addf %63, %65 : vector<8x128xf32>
    %cst_46 = arith.constant dense<0.000000e+00> : vector<128xf32>
    %67 = vector.multi_reduction <add>, %66, %cst_46 [0] : vector<8x128xf32> to vector<128xf32>
    %68 = vector.shape_cast %67 : vector<128xf32> to vector<1x128xf32>
    %cst_47 = arith.constant 8.000000e+00 : f32
    %69 = vector.broadcast %cst_47 : f32 to vector<1x128xf32>
    %70 = arith.divf %68, %69 : vector<1x128xf32>
    %71 = vector.broadcast %70 : vector<1x128xf32> to vector<8x128xf32>
    %72 = arith.subf %66, %71 : vector<8x128xf32>
    %73 = arith.mulf %72, %72 : vector<8x128xf32>
    %cst_48 = arith.constant dense<0.000000e+00> : vector<128xf32>
    %74 = vector.multi_reduction <add>, %73, %cst_48 [0] : vector<8x128xf32> to vector<128xf32>
    %75 = vector.shape_cast %74 : vector<128xf32> to vector<1x128xf32>
    %cst_49 = arith.constant 8.000000e+00 : f32
    %76 = vector.broadcast %cst_49 : f32 to vector<1x128xf32>
    %77 = arith.divf %75, %76 : vector<1x128xf32>
    %78 = vector.broadcast %70 : vector<1x128xf32> to vector<8x128xf32>
    %79 = arith.subf %66, %78 : vector<8x128xf32>
    %cst_50 = arith.constant 9.99999974E-6 : f32
    %80 = vector.broadcast %cst_50 : f32 to vector<1x128xf32>
    %81 = arith.addf %77, %80 : vector<1x128xf32>
    %82 = math.rsqrt %81 : vector<1x128xf32>
    %83 = vector.broadcast %82 : vector<1x128xf32> to vector<8x128xf32>
    %84 = arith.mulf %79, %83 : vector<8x128xf32>
    %cst_51 = arith.constant 0.000000e+00 : f32
    %85 = vector.broadcast %cst_51 : f32 to vector<8x128xf32>
    %86 = arith.maximumf %84, %85 : vector<8x128xf32>
    %87 = vector.extract_strided_slice %86 {offsets = [0, 0], sizes = [7, 128], strides = [1, 1]} : vector<8x128xf32> to vector<7x128xf32>
    %88 = arith.addf %87, %44 : vector<7x128xf32>
    %89 = arith.truncf %88 : vector<7x128xf32> to vector<7x128xbf16>
    %c0_52 = arith.constant 0 : index
    %c0_53 = arith.constant 0 : index
    %c0_54 = arith.constant 0 : index
    %90 = vector.load %arg6[%c0_52, %c0_53, %c0_54] : memref<1x8x128xbf16, #tpu.memory_space<vmem>>, vector<1x7x128xbf16>
    %91 = vector.shape_cast %90 : vector<1x7x128xbf16> to vector<7x128xbf16>
    %92 = vector.shape_cast %89 : vector<7x128xbf16> to vector<1x7x128xbf16>
    tpu.vector_store %arg6[%c0_52, %c0_53, %c0_54], %92 {strides = array<i32>} : memref<1x8x128xbf16, #tpu.memory_space<vmem>>, vector<1x7x128xbf16>,
    %93 = vector.extract_strided_slice %86 {offsets = [7, 0], sizes = [1, 128], strides = [1, 1]} : vector<8x128xf32> to vector<1x128xf32>
    %94 = arith.addf %93, %49 : vector<1x128xf32>
    %95 = arith.truncf %94 : vector<1x128xf32> to vector<1x128xbf16>
    %c0_55 = arith.constant 0 : index
    %c7 = arith.constant 7 : index
    %c0_56 = arith.constant 0 : index
    %96 = vector.load %arg6[%c0_55, %c7, %c0_56] : memref<1x8x128xbf16, #tpu.memory_space<vmem>>, vector<1x1x128xbf16>
    %97 = vector.shape_cast %96 : vector<1x1x128xbf16> to vector<1x128xbf16>
    %98 = vector.shape_cast %95 : vector<1x128xbf16> to vector<1x1x128xbf16>
    tpu.vector_store %arg6[%c0_55, %c7, %c0_56], %98 {strides = array<i32>} : memref<1x8x128xbf16, #tpu.memory_space<vmem>>, vector<1x1x128xbf16>,
    return
  }
  func.func @transform_0(%arg0: i32) -> (i32, i32, i32) {
    %c0_i32 = arith.constant 0 : i32
    %c0_i32_0 = arith.constant 0 : i32
    %c0_i32_1 = arith.constant 0 : i32
    return %arg0, %c0_i32, %c0_i32_0 : i32, i32, i32
  }
  func.func @transform_1(%arg0: i32) -> (i32, i32) {
    %c0_i32 = arith.constant 0 : i32
    %c0_i32_0 = arith.constant 0 : i32
    %c0_i32_1 = arith.constant 0 : i32
    return %c0_i32, %c0_i32_0 : i32, i32
  }
  func.func @transform_2(%arg0: i32) -> (i32, i32) {
    %c0_i32 = arith.constant 0 : i32
    %c0_i32_0 = arith.constant 0 : i32
    %c0_i32_1 = arith.constant 0 : i32
    return %c0_i32, %c0_i32_0 : i32, i32
  }
  func.func @transform_3(%arg0: i32) -> (i32, i32) {
    %c0_i32 = arith.constant 0 : i32
    %c0_i32_0 = arith.constant 0 : i32
    %c0_i32_1 = arith.constant 0 : i32
    return %c0_i32, %c0_i32_0 : i32, i32
  }
  func.func @transform_4(%arg0: i32) -> (i32, i32) {
    %c0_i32 = arith.constant 0 : i32
    %c0_i32_0 = arith.constant 0 : i32
    %c0_i32_1 = arith.constant 0 : i32
    return %c0_i32, %c0_i32_0 : i32, i32
  }
  func.func @transform_5(%arg0: i32) -> (i32, i32, i32) {
    %c0_i32 = arith.constant 0 : i32
    %c0_i32_0 = arith.constant 0 : i32
    %c0_i32_1 = arith.constant 0 : i32
    return %arg0, %c0_i32, %c0_i32_0 : i32, i32, i32
  }
}

module attributes {stable_mosaic.version = 11 : i64} {
  func.func @kernel(%arg0: i32, %arg1: memref<1x16x128xbf16, #tpu.memory_space<vmem>>, %arg2: memref<384x128xbf16, #tpu.memory_space<vmem>>, %arg3: memref<1x128xf32, #tpu.memory_space<vmem>>, %arg4: memref<384x128xbf16, #tpu.memory_space<vmem>>, %arg5: memref<1x128xf32, #tpu.memory_space<vmem>>, %arg6: memref<1x16x128xbf16, #tpu.memory_space<vmem>>, %arg7: memref<18x128xf32, #tpu.memory_space<vmem>>) attributes {dimension_semantics = [#tpu.dimension_semantics<parallel>], iteration_bounds = array<i64: 2>, scalar_prefetch = 0 : i64, scratch_operands = 1 : i64, tpu.core_type = #tpu.core_type<tc>, window_params = [{transform_indices = @transform_0, window_bounds = array<i64: 1, 16, 128>}, {pipeline_mode = #tpu.pipeline_mode<synchronous>, transform_indices = @transform_1, window_bounds = array<i64: 384, 128>}, {pipeline_mode = #tpu.pipeline_mode<synchronous>, transform_indices = @transform_2, window_bounds = array<i64: 1, 128>}, {pipeline_mode = #tpu.pipeline_mode<synchronous>, transform_indices = @transform_3, window_bounds = array<i64: 384, 128>}, {pipeline_mode = #tpu.pipeline_mode<synchronous>, transform_indices = @transform_4, window_bounds = array<i64: 1, 128>}, {transform_indices = @transform_5, window_bounds = array<i64: 1, 16, 128>}]} {
    %c0 = arith.constant 0 : index
    %c0_0 = arith.constant 0 : index
    %c0_1 = arith.constant 0 : index
    %0 = vector.load %arg1[%c0, %c0_0, %c0_1] : memref<1x16x128xbf16, #tpu.memory_space<vmem>>, vector<1x16x128xbf16>
    %1 = vector.shape_cast %0 : vector<1x16x128xbf16> to vector<16x128xbf16>
    %2 = arith.extf %1 : vector<16x128xbf16> to vector<16x128xf32>
    %c1 = arith.constant 1 : index
    %c0_2 = arith.constant 0 : index
    %3 = vector.load %arg7[%c1, %c0_2] : memref<18x128xf32, #tpu.memory_space<vmem>>, vector<16x128xf32>
    tpu.vector_store %arg7[%c1, %c0_2], %2 {strides = array<i32>} : memref<18x128xf32, #tpu.memory_space<vmem>>, vector<16x128xf32>,
    %4 = vector.extract_strided_slice %2 {offsets = [1, 0], sizes = [1, 128], strides = [1, 1]} : vector<16x128xf32> to vector<1x128xf32>
    %c0_3 = arith.constant 0 : index
    %c0_4 = arith.constant 0 : index
    %5 = vector.load %arg7[%c0_3, %c0_4] : memref<18x128xf32, #tpu.memory_space<vmem>>, vector<1x128xf32>
    tpu.vector_store %arg7[%c0_3, %c0_4], %4 {strides = array<i32>} : memref<18x128xf32, #tpu.memory_space<vmem>>, vector<1x128xf32>,
    %6 = vector.extract_strided_slice %2 {offsets = [14, 0], sizes = [1, 128], strides = [1, 1]} : vector<16x128xf32> to vector<1x128xf32>
    %c17 = arith.constant 17 : index
    %c0_5 = arith.constant 0 : index
    %7 = vector.load %arg7[%c17, %c0_5] : memref<18x128xf32, #tpu.memory_space<vmem>>, vector<1x128xf32>
    tpu.vector_store %arg7[%c17, %c0_5], %6 {strides = array<i32>} : memref<18x128xf32, #tpu.memory_space<vmem>>, vector<1x128xf32>,
    %c0_6 = arith.constant 0 : index
    %c0_7 = arith.constant 0 : index
    %8 = vector.load %arg7[%c0_6, %c0_7] : memref<18x128xf32, #tpu.memory_space<vmem>>, vector<16x128xf32>
    %9 = arith.truncf %8 : vector<16x128xf32> to vector<16x128xbf16>
    %c1_8 = arith.constant 1 : index
    %c0_9 = arith.constant 0 : index
    %10 = vector.load %arg7[%c1_8, %c0_9] : memref<18x128xf32, #tpu.memory_space<vmem>>, vector<16x128xf32>
    %11 = arith.truncf %10 : vector<16x128xf32> to vector<16x128xbf16>
    %c2 = arith.constant 2 : index
    %c0_10 = arith.constant 0 : index
    %12 = vector.load %arg7[%c2, %c0_10] : memref<18x128xf32, #tpu.memory_space<vmem>>, vector<16x128xf32>
    %13 = arith.truncf %12 : vector<16x128xf32> to vector<16x128xbf16>
    %14 = tpu.concatenate %9, %11, %13 in 1 : vector<16x128xbf16>, vector<16x128xbf16>, vector<16x128xbf16> -> vector<16x384xbf16>
    %c0_11 = arith.constant 0 : index
    %c0_12 = arith.constant 0 : index
    %15 = vector.load %arg2[%c0_11, %c0_12] : memref<384x128xbf16, #tpu.memory_space<vmem>>, vector<384x128xbf16>
    %cst = arith.constant dense<0.000000e+00> : vector<16x128xf32>
    %16 = tpu.matmul %14, %15, %cst {dimension_numbers = #tpu.dot_dimension_numbers<[1], [0], [0], [1], [0, 0, 1, 1], [], []>} : vector<16x384xbf16>, vector<384x128xbf16>, vector<16x128xf32> -> vector<16x128xf32>
    %c0_13 = arith.constant 0 : index
    %c0_14 = arith.constant 0 : index
    %17 = vector.load %arg3[%c0_13, %c0_14] : memref<1x128xf32, #tpu.memory_space<vmem>>, vector<1x128xf32>
    %18 = vector.broadcast %17 : vector<1x128xf32> to vector<16x128xf32>
    %19 = arith.addf %16, %18 : vector<16x128xf32>
    %cst_15 = arith.constant dense<0.000000e+00> : vector<128xf32>
    %20 = vector.multi_reduction <add>, %19, %cst_15 [0] : vector<16x128xf32> to vector<128xf32>
    %21 = vector.shape_cast %20 : vector<128xf32> to vector<1x128xf32>
    %cst_16 = arith.constant 1.600000e+01 : f32
    %22 = vector.broadcast %cst_16 : f32 to vector<1x128xf32>
    %23 = arith.divf %21, %22 : vector<1x128xf32>
    %24 = vector.broadcast %23 : vector<1x128xf32> to vector<16x128xf32>
    %25 = arith.subf %19, %24 : vector<16x128xf32>
    %26 = arith.mulf %25, %25 : vector<16x128xf32>
    %cst_17 = arith.constant dense<0.000000e+00> : vector<128xf32>
    %27 = vector.multi_reduction <add>, %26, %cst_17 [0] : vector<16x128xf32> to vector<128xf32>
    %28 = vector.shape_cast %27 : vector<128xf32> to vector<1x128xf32>
    %cst_18 = arith.constant 1.600000e+01 : f32
    %29 = vector.broadcast %cst_18 : f32 to vector<1x128xf32>
    %30 = arith.divf %28, %29 : vector<1x128xf32>
    %31 = vector.broadcast %23 : vector<1x128xf32> to vector<16x128xf32>
    %32 = arith.subf %19, %31 : vector<16x128xf32>
    %cst_19 = arith.constant 9.99999974E-6 : f32
    %33 = vector.broadcast %cst_19 : f32 to vector<1x128xf32>
    %34 = arith.addf %30, %33 : vector<1x128xf32>
    %35 = math.rsqrt %34 : vector<1x128xf32>
    %36 = vector.broadcast %35 : vector<1x128xf32> to vector<16x128xf32>
    %37 = arith.mulf %32, %36 : vector<16x128xf32>
    %cst_20 = arith.constant 0.000000e+00 : f32
    %38 = vector.broadcast %cst_20 : f32 to vector<16x128xf32>
    %39 = arith.maximumf %37, %38 : vector<16x128xf32>
    %c1_21 = arith.constant 1 : index
    %c0_22 = arith.constant 0 : index
    %40 = vector.load %arg7[%c1_21, %c0_22] : memref<18x128xf32, #tpu.memory_space<vmem>>, vector<16x128xf32>
    tpu.vector_store %arg7[%c1_21, %c0_22], %39 {strides = array<i32>} : memref<18x128xf32, #tpu.memory_space<vmem>>, vector<16x128xf32>,
    %41 = vector.extract_strided_slice %39 {offsets = [1, 0], sizes = [1, 128], strides = [1, 1]} : vector<16x128xf32> to vector<1x128xf32>
    %c0_23 = arith.constant 0 : index
    %c0_24 = arith.constant 0 : index
    %42 = vector.load %arg7[%c0_23, %c0_24] : memref<18x128xf32, #tpu.memory_space<vmem>>, vector<1x128xf32>
    tpu.vector_store %arg7[%c0_23, %c0_24], %41 {strides = array<i32>} : memref<18x128xf32, #tpu.memory_space<vmem>>, vector<1x128xf32>,
    %43 = vector.extract_strided_slice %39 {offsets = [14, 0], sizes = [1, 128], strides = [1, 1]} : vector<16x128xf32> to vector<1x128xf32>
    %c17_25 = arith.constant 17 : index
    %c0_26 = arith.constant 0 : index
    %44 = vector.load %arg7[%c17_25, %c0_26] : memref<18x128xf32, #tpu.memory_space<vmem>>, vector<1x128xf32>
    tpu.vector_store %arg7[%c17_25, %c0_26], %43 {strides = array<i32>} : memref<18x128xf32, #tpu.memory_space<vmem>>, vector<1x128xf32>,
    %c0_27 = arith.constant 0 : index
    %c0_28 = arith.constant 0 : index
    %45 = vector.load %arg7[%c0_27, %c0_28] : memref<18x128xf32, #tpu.memory_space<vmem>>, vector<16x128xf32>
    %46 = arith.truncf %45 : vector<16x128xf32> to vector<16x128xbf16>
    %c1_29 = arith.constant 1 : index
    %c0_30 = arith.constant 0 : index
    %47 = vector.load %arg7[%c1_29, %c0_30] : memref<18x128xf32, #tpu.memory_space<vmem>>, vector<16x128xf32>
    %48 = arith.truncf %47 : vector<16x128xf32> to vector<16x128xbf16>
    %c2_31 = arith.constant 2 : index
    %c0_32 = arith.constant 0 : index
    %49 = vector.load %arg7[%c2_31, %c0_32] : memref<18x128xf32, #tpu.memory_space<vmem>>, vector<16x128xf32>
    %50 = arith.truncf %49 : vector<16x128xf32> to vector<16x128xbf16>
    %51 = tpu.concatenate %46, %48, %50 in 1 : vector<16x128xbf16>, vector<16x128xbf16>, vector<16x128xbf16> -> vector<16x384xbf16>
    %c0_33 = arith.constant 0 : index
    %c0_34 = arith.constant 0 : index
    %52 = vector.load %arg4[%c0_33, %c0_34] : memref<384x128xbf16, #tpu.memory_space<vmem>>, vector<384x128xbf16>
    %cst_35 = arith.constant dense<0.000000e+00> : vector<16x128xf32>
    %53 = tpu.matmul %51, %52, %cst_35 {dimension_numbers = #tpu.dot_dimension_numbers<[1], [0], [0], [1], [0, 0, 1, 1], [], []>} : vector<16x384xbf16>, vector<384x128xbf16>, vector<16x128xf32> -> vector<16x128xf32>
    %c0_36 = arith.constant 0 : index
    %c0_37 = arith.constant 0 : index
    %54 = vector.load %arg5[%c0_36, %c0_37] : memref<1x128xf32, #tpu.memory_space<vmem>>, vector<1x128xf32>
    %55 = vector.broadcast %54 : vector<1x128xf32> to vector<16x128xf32>
    %56 = arith.addf %53, %55 : vector<16x128xf32>
    %cst_38 = arith.constant dense<0.000000e+00> : vector<128xf32>
    %57 = vector.multi_reduction <add>, %56, %cst_38 [0] : vector<16x128xf32> to vector<128xf32>
    %58 = vector.shape_cast %57 : vector<128xf32> to vector<1x128xf32>
    %cst_39 = arith.constant 1.600000e+01 : f32
    %59 = vector.broadcast %cst_39 : f32 to vector<1x128xf32>
    %60 = arith.divf %58, %59 : vector<1x128xf32>
    %61 = vector.broadcast %60 : vector<1x128xf32> to vector<16x128xf32>
    %62 = arith.subf %56, %61 : vector<16x128xf32>
    %63 = arith.mulf %62, %62 : vector<16x128xf32>
    %cst_40 = arith.constant dense<0.000000e+00> : vector<128xf32>
    %64 = vector.multi_reduction <add>, %63, %cst_40 [0] : vector<16x128xf32> to vector<128xf32>
    %65 = vector.shape_cast %64 : vector<128xf32> to vector<1x128xf32>
    %cst_41 = arith.constant 1.600000e+01 : f32
    %66 = vector.broadcast %cst_41 : f32 to vector<1x128xf32>
    %67 = arith.divf %65, %66 : vector<1x128xf32>
    %68 = vector.broadcast %60 : vector<1x128xf32> to vector<16x128xf32>
    %69 = arith.subf %56, %68 : vector<16x128xf32>
    %cst_42 = arith.constant 9.99999974E-6 : f32
    %70 = vector.broadcast %cst_42 : f32 to vector<1x128xf32>
    %71 = arith.addf %67, %70 : vector<1x128xf32>
    %72 = math.rsqrt %71 : vector<1x128xf32>
    %73 = vector.broadcast %72 : vector<1x128xf32> to vector<16x128xf32>
    %74 = arith.mulf %69, %73 : vector<16x128xf32>
    %cst_43 = arith.constant 0.000000e+00 : f32
    %75 = vector.broadcast %cst_43 : f32 to vector<16x128xf32>
    %76 = arith.maximumf %74, %75 : vector<16x128xf32>
    %77 = arith.addf %76, %2 : vector<16x128xf32>
    %78 = arith.truncf %77 : vector<16x128xf32> to vector<16x128xbf16>
    %c0_44 = arith.constant 0 : index
    %c0_45 = arith.constant 0 : index
    %c0_46 = arith.constant 0 : index
    %79 = vector.load %arg6[%c0_44, %c0_45, %c0_46] : memref<1x16x128xbf16, #tpu.memory_space<vmem>>, vector<1x16x128xbf16>
    %80 = vector.shape_cast %79 : vector<1x16x128xbf16> to vector<16x128xbf16>
    %81 = vector.shape_cast %78 : vector<16x128xbf16> to vector<1x16x128xbf16>
    tpu.vector_store %arg6[%c0_44, %c0_45, %c0_46], %81 {strides = array<i32>} : memref<1x16x128xbf16, #tpu.memory_space<vmem>>, vector<1x16x128xbf16>,
    return
  }
  func.func @transform_0(%arg0: i32) -> (i32, i32, i32) {
    %c0_i32 = arith.constant 0 : i32
    %c0_i32_0 = arith.constant 0 : i32
    %c0_i32_1 = arith.constant 0 : i32
    return %arg0, %c0_i32, %c0_i32_0 : i32, i32, i32
  }
  func.func @transform_1(%arg0: i32) -> (i32, i32) {
    %c0_i32 = arith.constant 0 : i32
    %c0_i32_0 = arith.constant 0 : i32
    %c0_i32_1 = arith.constant 0 : i32
    return %c0_i32, %c0_i32_0 : i32, i32
  }
  func.func @transform_2(%arg0: i32) -> (i32, i32) {
    %c0_i32 = arith.constant 0 : i32
    %c0_i32_0 = arith.constant 0 : i32
    %c0_i32_1 = arith.constant 0 : i32
    return %c0_i32, %c0_i32_0 : i32, i32
  }
  func.func @transform_3(%arg0: i32) -> (i32, i32) {
    %c0_i32 = arith.constant 0 : i32
    %c0_i32_0 = arith.constant 0 : i32
    %c0_i32_1 = arith.constant 0 : i32
    return %c0_i32, %c0_i32_0 : i32, i32
  }
  func.func @transform_4(%arg0: i32) -> (i32, i32) {
    %c0_i32 = arith.constant 0 : i32
    %c0_i32_0 = arith.constant 0 : i32
    %c0_i32_1 = arith.constant 0 : i32
    return %c0_i32, %c0_i32_0 : i32, i32
  }
  func.func @transform_5(%arg0: i32) -> (i32, i32, i32) {
    %c0_i32 = arith.constant 0 : i32
    %c0_i32_0 = arith.constant 0 : i32
    %c0_i32_1 = arith.constant 0 : i32
    return %arg0, %c0_i32, %c0_i32_0 : i32, i32, i32
  }
}

</mosaic_0001>

<llo_original>
// kernel: content_encoder_forward.7
$region0: #{content_encoder_forward.7}
  #allocation0 [shape = 'u32[]', space=smem, size = 0x4, offset = 0x4, fixed_abs, tag = 'smem constant byte address 0x4 - core index']
  #allocation1 [shape = 'u32[144,128]{1,0:T(1,128)}', space=vmem, size = 0x12000, scoped, tag = 'internal scratch']
  %s0 = inlined_call_operand.vmem [shape: bf16[2,8,128], index: 0, kind: input, shape index: {}]
  %s1 = inlined_call_operand.vmem [shape: bf16[128,128], index: 1, kind: input, shape index: {}]
  %s2 = inlined_call_operand.vmem [shape: f32[1,128], index: 2, kind: input, shape index: {}]
  %s3 = inlined_call_operand.vmem [shape: f32[2,8,128], index: 3, kind: output, shape index: {}]
  %s4 = sld [smem:[#allocation0]]
  $region45: #{content_encoder_forward.7} parent=0
    _
  %s6 = ssub.s32 1, %s4
  %s7 = scalar_select 0, %s6, %s4
  loop: start=0, step=1, limit=4
  $region2: #{content_encoder_forward.7} parent=0 // loop_pre_header
    _
  $region3: #{content_encoder_forward.7} parent=0 // loop_header
    %s9 = sphi 0, %s13
    %p10 = scmp.ge.s32.totalorder %s9, 4
    %s19 = sphi 0, %s21
    %s22 = sphi 0, %s19
    %s23 = sphi 0, %s22
    %s39 = sphi 0, %s23
    %s43 = sphi 0, %s43
    %s45 = sphi 0, %s43
    %s46 = sphi 0, %s45
    %s60 = sphi 0, %s46
    %s64 = sphi 0, %s64
    %s66 = sphi 0, %s64
    %s67 = sphi 0, %s66
    %s81 = sphi 0, %s67
    %s87 = sphi 0, %s89
    %s90 = sphi 0, %s87
    %s91 = sphi 0, %s90
    %s107 = sphi 0, %s91
  $region4: #{content_encoder_forward.7} parent=0 // loop_header_branch
    %12 = sbr.rel (%p10) target = $region8
  $region5: #{content_encoder_forward.7} parent=0 // loop_body
    %s14 = ssub.s32 %s9, 1
    %s15 = ssub.s32 %s9, 2
    %s16 = sadd.s32 %s9, 1
    %s17 = ssub.s32 %s9, %s16
    %p18 = scmp.eq.s32.totalorder %s17, 0
    %s20 = sadd.s32 %s19, 1
    %s21 = scalar_select %p18, %s19, %s20
    %p24 = pneg %p18
    %p25 = scmp.eq.s32.totalorder %s9, 1
    %p26 = por %p24, %p25
    %p27 = scmp.ne.s32.totalorder %s19, %s22
    %p28 = scmp.eq.s32.totalorder %s9, 0
    %p29 = por %p27, %p28
    %p30 = scmp.ne.s32.totalorder %s19, %s22
    %p31 = scmp.eq.s32.totalorder %s14, 1
    %p32 = por %p30, %p31
    %p33 = scmp.ne.s32.totalorder %s22, %s23
    %p34 = scmp.eq.s32.totalorder %s14, 0
    %p35 = por %p33, %p34
    %p36 = scmp.ne.s32.totalorder %s22, %s23
    %p37 = scmp.eq.s32.totalorder %s15, 1
    %p38 = por %p36, %p37
    %p40 = scmp.ne.s32.totalorder %s23, %s39
    %p41 = scmp.eq.s32.totalorder %s15, 0
    %p42 = por %p40, %p41
    %s44 = sadd.s32 %s43, 1
    %p47 = scmp.eq.s32.totalorder %s9, 1
    %p48 = scmp.ne.s32.totalorder %s43, %s45
    %p49 = scmp.eq.s32.totalorder %s9, 0
    %p50 = por %p48, %p49
    %p51 = scmp.ne.s32.totalorder %s43, %s45
    %p52 = scmp.eq.s32.totalorder %s14, 1
    %p53 = por %p51, %p52
    %p54 = scmp.ne.s32.totalorder %s45, %s46
    %p55 = scmp.eq.s32.totalorder %s14, 0
    %p56 = por %p54, %p55
    %p57 = scmp.ne.s32.totalorder %s45, %s46
    %p58 = scmp.eq.s32.totalorder %s15, 1
    %p59 = por %p57, %p58
    %p61 = scmp.ne.s32.totalorder %s46, %s60
    %p62 = scmp.eq.s32.totalorder %s15, 0
    %p63 = por %p61, %p62
    %s65 = sadd.s32 %s64, 1
    %p68 = scmp.eq.s32.totalorder %s9, 1
    %p69 = scmp.ne.s32.totalorder %s64, %s66
    %p70 = scmp.eq.s32.totalorder %s9, 0
    %p71 = por %p69, %p70
    %p72 = scmp.ne.s32.totalorder %s64, %s66
    %p73 = scmp.eq.s32.totalorder %s14, 1
    %p74 = por %p72, %p73
    %p75 = scmp.ne.s32.totalorder %s66, %s67
    %p76 = scmp.eq.s32.totalorder %s14, 0
    %p77 = por %p75, %p76
    %p78 = scmp.ne.s32.totalorder %s66, %s67
    %p79 = scmp.eq.s32.totalorder %s15, 1
    %p80 = por %p78, %p79
    %p82 = scmp.ne.s32.totalorder %s67, %s81
    %p83 = scmp.eq.s32.totalorder %s15, 0
    %p84 = por %p82, %p83
    %s85 = ssub.s32 %s9, %s16
    %p86 = scmp.eq.s32.totalorder %s85, 0
    %s88 = sadd.s32 %s87, 1
    %s89 = scalar_select %p86, %s87, %s88
    %p92 = pneg %p86
    %p93 = scmp.eq.s32.totalorder %s9, 1
    %p94 = por %p92, %p93
    %p95 = scmp.ne.s32.totalorder %s87, %s90
    %p96 = scmp.eq.s32.totalorder %s9, 0
    %p97 = por %p95, %p96
    %p98 = scmp.ne.s32.totalorder %s87, %s90
    %p99 = scmp.eq.s32.totalorder %s14, 1
    %p100 = por %p98, %p99
    %p101 = scmp.ne.s32.totalorder %s90, %s91
    %p102 = scmp.eq.s32.totalorder %s14, 0
    %p103 = por %p101, %p102
    %p104 = scmp.ne.s32.totalorder %s90, %s91
    %p105 = scmp.eq.s32.totalorder %s15, 1
    %p106 = por %p104, %p105
    %p108 = scmp.ne.s32.totalorder %s91, %s107
    %p109 = scmp.eq.s32.totalorder %s15, 0
    %p110 = por %p108, %p109
    %p111 = scmp.le.s32.totalorder 1, %s9
    %p112 = scmp.lt.s32.totalorder %s9, 3
    %p113 = pnand %p111, %p112
    %p114 = pneg %p113
    // Predicated region
    $region9: #{content_encoder_forward.7} parent=5 // pred_check
      _
    $region10: #{content_encoder_forward.7} parent=5 // pred_check_branch
      %116 = sbr.rel (%p113) target = $region12
    $region11: #{content_encoder_forward.7} parent=5 // pred_region
      %s117 = ssub.s32 %s9, 1
      // Predicated region
      $region13: #{content_encoder_forward.7} parent=11 // pred_check
        %p118 = pneg %p56
      $region14: #{content_encoder_forward.7} parent=11 // pred_check_branch
        %120 = sbr.rel (%p118) target = $region16
      $region15: #{content_encoder_forward.7} parent=11 // pred_region
        _
      $region16: #{content_encoder_forward.7} parent=11 // pred_fallthru
        _
      // Predicated region
      $region17: #{content_encoder_forward.7} parent=11 // pred_check
        %p121 = pneg %p77
      $region18: #{content_encoder_forward.7} parent=11 // pred_check_branch
        %123 = sbr.rel (%p121) target = $region20
      $region19: #{content_encoder_forward.7} parent=11 // pred_region
        _
      $region20: #{content_encoder_forward.7} parent=11 // pred_fallthru
        _
    $region12: #{content_encoder_forward.7} parent=5 // pred_fallthru
      _
    %p124 = scmp.lt.s32.totalorder %s9, 2
    // Predicated region
    $region21: #{content_encoder_forward.7} parent=5 // pred_check
      %p125 = pneg %p124
    $region22: #{content_encoder_forward.7} parent=5 // pred_check_branch
      %127 = sbr.rel (%p125) target = $region24
    $region23: #{content_encoder_forward.7} parent=5 // pred_region
      // Predicated region
      $region25: #{content_encoder_forward.7} parent=23 // pred_check
        %p128 = pneg %p29
      $region26: #{content_encoder_forward.7} parent=23 // pred_check_branch
        %130 = sbr.rel (%p128) target = $region28
      $region27: #{content_encoder_forward.7} parent=23 // pred_region
        %p131 = scmp.lt.s32.totalorder %s9, 1
        %s132 = scalar_select %p131, %s9, 1
        %s133 = smul.addr %s132, 4
        %s134 = scalar_lea.vmem %s0, %s133
      $region28: #{content_encoder_forward.7} parent=23 // pred_fallthru
        _
    $region24: #{content_encoder_forward.7} parent=5 // pred_fallthru
      _
    %p135 = scmp.le.s32.totalorder 1, %s9
    %p136 = scmp.lt.s32.totalorder %s9, 3
    %p137 = pnand %p135, %p136
    %p138 = pneg %p137
    // Predicated region
    $region29: #{content_encoder_forward.7} parent=5 // pred_check
      _
    $region30: #{content_encoder_forward.7} parent=5 // pred_check_branch
      %140 = sbr.rel (%p137) target = $region32
    $region31: #{content_encoder_forward.7} parent=5 // pred_region
      %s141 = ssub.s32 %s9, 1
      %p142 = scmp.lt.s32.totalorder %s14, 1
      %s143 = scalar_select %p142, %s14, 1
      %s144 = smul.addr %s143, 4
      %s145 = scalar_lea.vmem %s0, %s144
      %p146 = pneg %p35
      %p147 = pneg %p32
      %p148 = pneg %p56
      %p149 = pneg %p53
      %p150 = pneg %p77
      %p151 = pneg %p74
      %p152 = pneg %p103
      %p153 = pneg %p100
      %p154 = scmp.lt.s32.totalorder %s14, 1
      %s155 = scalar_select %p154, %s14, 1
      %s156 = smul.addr %s155, 8
      %s157 = scalar_lea.vmem %s3, %s156
      %p158 = scmp.lt.s32.totalorder %s14, 1
      %s159 = scalar_select %p158, %s14, 1
      %s160 = smul.addr %s159, 4
      %s161 = scalar_lea.vmem %s0, %s160
      %p162 = scmp.lt.s32.totalorder %s14, 1
      %s163 = scalar_select %p162, %s14, 1
      %s164 = smul.addr %s163, 8
      %s165 = scalar_lea.vmem %s3, %s164
      %v167 = vld [vmem:[%s161] sm:$0xf]
      %v168 = vld [vmem:[%s1] sm:$0xf]
      %v169 = vld [vmem:[%s1 + $0x4] sm:$0xf]
      %v170 = vld [vmem:[%s1 + $0x8] sm:$0xf]
      %v171 = vld [vmem:[%s1 + $0xc] sm:$0xf]
      %v172 = vld [vmem:[%s1 + $0x10] sm:$0xf]
      %v173 = vld [vmem:[%s1 + $0x14] sm:$0xf]
      %v174 = vld [vmem:[%s1 + $0x18] sm:$0xf]
      %v175 = vld [vmem:[%s1 + $0x1c] sm:$0xf]
      %v176 = vld [vmem:[%s1 + $0x20] sm:$0xf]
      %v177 = vld [vmem:[%s1 + $0x24] sm:$0xf]
      %v178 = vld [vmem:[%s1 + $0x28] sm:$0xf]
      %v179 = vld [vmem:[%s1 + $0x2c] sm:$0xf]
      %v180 = vld [vmem:[%s1 + $0x30] sm:$0xf]
      %v181 = vld [vmem:[%s1 + $0x34] sm:$0xf]
      %v182 = vld [vmem:[%s1 + $0x38] sm:$0xf]
      %v183 = vld [vmem:[%s1 + $0x3c] sm:$0xf]
      %v184 = vld [vmem:[%s2] sm:$0x1]
      %v186 = vlaneseq
      %v187 = vshrl.u32 %v186, 7
      %v188 = vsub.s32 0, %v187
      %v189 = vrot.slane %v184, %v188
      %v207 = vunpack.c.l.b16 %v168
      %v208 = vunpack.c.l.b16 %v169
      %v209 = vunpack.c.l.b16 %v170
      %v210 = vunpack.c.l.b16 %v171
      %v211 = vunpack.c.l.b16 %v172
      %v212 = vunpack.c.l.b16 %v173
      %v213 = vunpack.c.l.b16 %v174
      %v214 = vunpack.c.l.b16 %v175
      %v215 = vunpack.c.l.b16 %v176
      %v216 = vunpack.c.l.b16 %v177
      %v217 = vunpack.c.l.b16 %v178
      %v218 = vunpack.c.l.b16 %v179
      %v219 = vunpack.c.l.b16 %v180
      %v220 = vunpack.c.l.b16 %v181
      %v221 = vunpack.c.l.b16 %v182
      %v222 = vunpack.c.l.b16 %v183
      %v223 = vpack.c.b16 %v208, %v207
      %v224 = vpack.c.b16 %v210, %v209
      %v225 = vpack.c.b16 %v212, %v211
      %v226 = vpack.c.b16 %v214, %v213
      %v227 = vpack.c.b16 %v216, %v215
      %v228 = vpack.c.b16 %v218, %v217
      %v229 = vpack.c.b16 %v220, %v219
      %v230 = vpack.c.b16 %v222, %v221
      %239 = vmatprep.subr.bf16.mxu0 0
      %240 = vmatpush1.bf16.msra.mxu0 %v230
      %241 = vmatprep.subr.bf16.mxu0 0
      %242 = vmatpush1.bf16.msra.mxu0 %v229
      %243 = vmatprep.subr.bf16.mxu0 0
      %244 = vmatpush1.bf16.msra.mxu0 %v228
      %245 = vmatprep.subr.bf16.mxu0 0
      %246 = vmatpush1.bf16.msra.mxu0 %v227
      %247 = vmatprep.subr.bf16.mxu0 0
      %248 = vmatpush1.bf16.msra.mxu0 %v226
      %249 = vmatprep.subr.bf16.mxu0 0
      %250 = vmatpush1.bf16.msra.mxu0 %v225
      %251 = vmatprep.subr.bf16.mxu0 0
      %252 = vmatpush1.bf16.msra.mxu0 %v224
      %253 = vmatprep.subr.bf16.mxu0 0
      %254 = vmatpush1.bf16.msra.mxu0 %v223
      %255 = vmatprep.subr.bf16.mxu0 0
      %256 = vmatpush2.bf16.msra.mxu0 0
      %257 = vmatprep.subr.bf16.mxu0 0
      %258 = vmatpush2.bf16.msra.mxu0 0
      %259 = vmatprep.subr.bf16.mxu0 0
      %260 = vmatpush2.bf16.msra.mxu0 0
      %261 = vmatprep.subr.bf16.mxu0 0
      %262 = vmatpush2.bf16.msra.mxu0 0
      %263 = vmatprep.subr.bf16.mxu0 0
      %264 = vmatpush2.bf16.msra.mxu0 0
      %265 = vmatprep.subr.bf16.mxu0 0
      %266 = vmatpush2.bf16.msra.mxu0 0
      %267 = vmatprep.subr.bf16.mxu0 0
      %268 = vmatpush2.bf16.msra.mxu0 0
      %269 = vmatprep.subr.bf16.mxu0 0
      %270 = vmatpush2.bf16.msra.mxu0 0
      %271 = vmatprep.mubr.bf16.mxu0 0
      %272 = vmatmul.mubr.bf16.gmra.mxu0 %v167
      %v273 = vpop.f32.mrf.mxu0
      %v274 = vadd.f32 %v189, %v273
      %v275 = vpop.f32.mrf.mxu0
      %v276 = vpop.f32.mrf.mxu0
      %v277 = vpop.f32.mrf.mxu0
      %278 = vdwg.mxu0
      %279 = vst [vmem:[%s165] sm:$0xff] %v274
      %p280 = scmp.lt.s32.totalorder %s14, 1
      %s281 = scalar_select %p280, %s14, 1
      %s282 = smul.addr %s281, 8
      %s283 = scalar_lea.vmem %s3, %s282
      // Predicated region
      $region33: #{content_encoder_forward.7} parent=31 // pred_check
        %p284 = pneg %p100
      $region34: #{content_encoder_forward.7} parent=31 // pred_check_branch
        %286 = sbr.rel (%p284) target = $region36
      $region35: #{content_encoder_forward.7} parent=31 // pred_region
        _
      $region36: #{content_encoder_forward.7} parent=31 // pred_fallthru
        _
    $region32: #{content_encoder_forward.7} parent=5 // pred_fallthru
      _
    %p287 = scmp.le.s32.totalorder 2, %s9
    // Predicated region
    $region37: #{content_encoder_forward.7} parent=5 // pred_check
      %p288 = pneg %p287
    $region38: #{content_encoder_forward.7} parent=5 // pred_check_branch
      %290 = sbr.rel (%p288) target = $region40
    $region39: #{content_encoder_forward.7} parent=5 // pred_region
      %s291 = ssub.s32 %s9, 2
      // Predicated region
      $region41: #{content_encoder_forward.7} parent=39 // pred_check
        %p292 = pneg %p106
      $region42: #{content_encoder_forward.7} parent=39 // pred_check_branch
        %294 = sbr.rel (%p292) target = $region44
      $region43: #{content_encoder_forward.7} parent=39 // pred_region
        %p295 = scmp.lt.s32.totalorder %s15, 1
        %s296 = scalar_select %p295, %s15, 1
        %s297 = smul.addr %s296, 8
        %s298 = scalar_lea.vmem %s3, %s297
      $region44: #{content_encoder_forward.7} parent=39 // pred_fallthru
        _
    $region40: #{content_encoder_forward.7} parent=5 // pred_fallthru
      _
  $region6: #{content_encoder_forward.7} parent=0 // loop_footer
    %s13 = sadd.s32 1, %s9
  $region7: #{content_encoder_forward.7} parent=0 // loop_footer_branch
    %8 = sbr.rel target = $region3
  $region8: #{content_encoder_forward.7} parent=0 // loop_exit
    _

// kernel: content_encoder_forward.4
$region0: #{content_encoder_forward.4}
  #allocation0 [shape = 'u32[]', space=smem, size = 0x4, offset = 0x4, fixed_abs, tag = 'smem constant byte address 0x4 - core index']
  #allocation1 [shape = 'u32[144,128]{1,0:T(1,128)}', space=vmem, size = 0x12000, scoped, tag = 'internal scratch']
  %s0 = inlined_call_operand.vmem [shape: f32[2,16,16], index: 0, kind: input, shape index: {}]
  %s1 = inlined_call_operand.vmem [shape: f32[2,16,4], index: 1, kind: input, shape index: {}]
  %s2 = inlined_call_operand.vmem [shape: bf16[16,8], index: 2, kind: input, shape index: {}]
  %s3 = inlined_call_operand.vmem [shape: f32[1,8], index: 3, kind: input, shape index: {}]
  %s4 = inlined_call_operand.vmem [shape: bf16[8,128], index: 4, kind: input, shape index: {}]
  %s5 = inlined_call_operand.vmem [shape: bf16[4,128], index: 5, kind: input, shape index: {}]
  %s6 = inlined_call_operand.vmem [shape: f32[1,128], index: 6, kind: input, shape index: {}]
  %s7 = inlined_call_operand.vmem [shape: bf16[2,16,128], index: 7, kind: output, shape index: {}]
  %s8 = sld [smem:[#allocation0]]
  $region61: #{content_encoder_forward.4} parent=0
    _
  %s10 = ssub.s32 1, %s8
  %s11 = scalar_select 0, %s10, %s8
  loop: start=0, step=1, limit=4
  $region2: #{content_encoder_forward.4} parent=0 // loop_pre_header
    _
  $region3: #{content_encoder_forward.4} parent=0 // loop_header
    %s13 = sphi 0, %s17
    %p14 = scmp.ge.s32.totalorder %s13, 4
    %s23 = sphi 0, %s25
    %s26 = sphi 0, %s23
    %s27 = sphi 0, %s26
    %s43 = sphi 0, %s27
    %s49 = sphi 0, %s51
    %s52 = sphi 0, %s49
    %s53 = sphi 0, %s52
    %s69 = sphi 0, %s53
    %s73 = sphi 0, %s73
    %s75 = sphi 0, %s73
    %s76 = sphi 0, %s75
    %s90 = sphi 0, %s76
    %s94 = sphi 0, %s94
    %s96 = sphi 0, %s94
    %s97 = sphi 0, %s96
    %s111 = sphi 0, %s97
    %s115 = sphi 0, %s115
    %s117 = sphi 0, %s115
    %s118 = sphi 0, %s117
    %s132 = sphi 0, %s118
    %s136 = sphi 0, %s136
    %s138 = sphi 0, %s136
    %s139 = sphi 0, %s138
    %s153 = sphi 0, %s139
    %s157 = sphi 0, %s157
    %s159 = sphi 0, %s157
    %s160 = sphi 0, %s159
    %s174 = sphi 0, %s160
    %s180 = sphi 0, %s182
    %s183 = sphi 0, %s180
    %s184 = sphi 0, %s183
    %s200 = sphi 0, %s184
  $region4: #{content_encoder_forward.4} parent=0 // loop_header_branch
    %16 = sbr.rel (%p14) target = $region8
  $region5: #{content_encoder_forward.4} parent=0 // loop_body
    %s18 = ssub.s32 %s13, 1
    %s19 = ssub.s32 %s13, 2
    %s20 = sadd.s32 %s13, 1
    %s21 = ssub.s32 %s13, %s20
    %p22 = scmp.eq.s32.totalorder %s21, 0
    %s24 = sadd.s32 %s23, 1
    %s25 = scalar_select %p22, %s23, %s24
    %p28 = pneg %p22
    %p29 = scmp.eq.s32.totalorder %s13, 1
    %p30 = por %p28, %p29
    %p31 = scmp.ne.s32.totalorder %s23, %s26
    %p32 = scmp.eq.s32.totalorder %s13, 0
    %p33 = por %p31, %p32
    %p34 = scmp.ne.s32.totalorder %s23, %s26
    %p35 = scmp.eq.s32.totalorder %s18, 1
    %p36 = por %p34, %p35
    %p37 = scmp.ne.s32.totalorder %s26, %s27
    %p38 = scmp.eq.s32.totalorder %s18, 0
    %p39 = por %p37, %p38
    %p40 = scmp.ne.s32.totalorder %s26, %s27
    %p41 = scmp.eq.s32.totalorder %s19, 1
    %p42 = por %p40, %p41
    %p44 = scmp.ne.s32.totalorder %s27, %s43
    %p45 = scmp.eq.s32.totalorder %s19, 0
    %p46 = por %p44, %p45
    %s47 = ssub.s32 %s13, %s20
    %p48 = scmp.eq.s32.totalorder %s47, 0
    %s50 = sadd.s32 %s49, 1
    %s51 = scalar_select %p48, %s49, %s50
    %p54 = pneg %p48
    %p55 = scmp.eq.s32.totalorder %s13, 1
    %p56 = por %p54, %p55
    %p57 = scmp.ne.s32.totalorder %s49, %s52
    %p58 = scmp.eq.s32.totalorder %s13, 0
    %p59 = por %p57, %p58
    %p60 = scmp.ne.s32.totalorder %s49, %s52
    %p61 = scmp.eq.s32.totalorder %s18, 1
    %p62 = por %p60, %p61
    %p63 = scmp.ne.s32.totalorder %s52, %s53
    %p64 = scmp.eq.s32.totalorder %s18, 0
    %p65 = por %p63, %p64
    %p66 = scmp.ne.s32.totalorder %s52, %s53
    %p67 = scmp.eq.s32.totalorder %s19, 1
    %p68 = por %p66, %p67
    %p70 = scmp.ne.s32.totalorder %s53, %s69
    %p71 = scmp.eq.s32.totalorder %s19, 0
    %p72 = por %p70, %p71
    %s74 = sadd.s32 %s73, 1
    %p77 = scmp.eq.s32.totalorder %s13, 1
    %p78 = scmp.ne.s32.totalorder %s73, %s75
    %p79 = scmp.eq.s32.totalorder %s13, 0
    %p80 = por %p78, %p79
    %p81 = scmp.ne.s32.totalorder %s73, %s75
    %p82 = scmp.eq.s32.totalorder %s18, 1
    %p83 = por %p81, %p82
    %p84 = scmp.ne.s32.totalorder %s75, %s76
    %p85 = scmp.eq.s32.totalorder %s18, 0
    %p86 = por %p84, %p85
    %p87 = scmp.ne.s32.totalorder %s75, %s76
    %p88 = scmp.eq.s32.totalorder %s19, 1
    %p89 = por %p87, %p88
    %p91 = scmp.ne.s32.totalorder %s76, %s90
    %p92 = scmp.eq.s32.totalorder %s19, 0
    %p93 = por %p91, %p92
    %s95 = sadd.s32 %s94, 1
    %p98 = scmp.eq.s32.totalorder %s13, 1
    %p99 = scmp.ne.s32.totalorder %s94, %s96
    %p100 = scmp.eq.s32.totalorder %s13, 0
    %p101 = por %p99, %p100
    %p102 = scmp.ne.s32.totalorder %s94, %s96
    %p103 = scmp.eq.s32.totalorder %s18, 1
    %p104 = por %p102, %p103
    %p105 = scmp.ne.s32.totalorder %s96, %s97
    %p106 = scmp.eq.s32.totalorder %s18, 0
    %p107 = por %p105, %p106
    %p108 = scmp.ne.s32.totalorder %s96, %s97
    %p109 = scmp.eq.s32.totalorder %s19, 1
    %p110 = por %p108, %p109
    %p112 = scmp.ne.s32.totalorder %s97, %s111
    %p113 = scmp.eq.s32.totalorder %s19, 0
    %p114 = por %p112, %p113
    %s116 = sadd.s32 %s115, 1
    %p119 = scmp.eq.s32.totalorder %s13, 1
    %p120 = scmp.ne.s32.totalorder %s115, %s117
    %p121 = scmp.eq.s32.totalorder %s13, 0
    %p122 = por %p120, %p121
    %p123 = scmp.ne.s32.totalorder %s115, %s117
    %p124 = scmp.eq.s32.totalorder %s18, 1
    %p125 = por %p123, %p124
    %p126 = scmp.ne.s32.totalorder %s117, %s118
    %p127 = scmp.eq.s32.totalorder %s18, 0
    %p128 = por %p126, %p127
    %p129 = scmp.ne.s32.totalorder %s117, %s118
    %p130 = scmp.eq.s32.totalorder %s19, 1
    %p131 = por %p129, %p130
    %p133 = scmp.ne.s32.totalorder %s118, %s132
    %p134 = scmp.eq.s32.totalorder %s19, 0
    %p135 = por %p133, %p134
    %s137 = sadd.s32 %s136, 1
    %p140 = scmp.eq.s32.totalorder %s13, 1
    %p141 = scmp.ne.s32.totalorder %s136, %s138
    %p142 = scmp.eq.s32.totalorder %s13, 0
    %p143 = por %p141, %p142
    %p144 = scmp.ne.s32.totalorder %s136, %s138
    %p145 = scmp.eq.s32.totalorder %s18, 1
    %p146 = por %p144, %p145
    %p147 = scmp.ne.s32.totalorder %s138, %s139
    %p148 = scmp.eq.s32.totalorder %s18, 0
    %p149 = por %p147, %p148
    %p150 = scmp.ne.s32.totalorder %s138, %s139
    %p151 = scmp.eq.s32.totalorder %s19, 1
    %p152 = por %p150, %p151
    %p154 = scmp.ne.s32.totalorder %s139, %s153
    %p155 = scmp.eq.s32.totalorder %s19, 0
    %p156 = por %p154, %p155
    %s158 = sadd.s32 %s157, 1
    %p161 = scmp.eq.s32.totalorder %s13, 1
    %p162 = scmp.ne.s32.totalorder %s157, %s159
    %p163 = scmp.eq.s32.totalorder %s13, 0
    %p164 = por %p162, %p163
    %p165 = scmp.ne.s32.totalorder %s157, %s159
    %p166 = scmp.eq.s32.totalorder %s18, 1
    %p167 = por %p165, %p166
    %p168 = scmp.ne.s32.totalorder %s159, %s160
    %p169 = scmp.eq.s32.totalorder %s18, 0
    %p170 = por %p168, %p169
    %p171 = scmp.ne.s32.totalorder %s159, %s160
    %p172 = scmp.eq.s32.totalorder %s19, 1
    %p173 = por %p171, %p172
    %p175 = scmp.ne.s32.totalorder %s160, %s174
    %p176 = scmp.eq.s32.totalorder %s19, 0
    %p177 = por %p175, %p176
    %s178 = ssub.s32 %s13, %s20
    %p179 = scmp.eq.s32.totalorder %s178, 0
    %s181 = sadd.s32 %s180, 1
    %s182 = scalar_select %p179, %s180, %s181
    %p185 = pneg %p179
    %p186 = scmp.eq.s32.totalorder %s13, 1
    %p187 = por %p185, %p186
    %p188 = scmp.ne.s32.totalorder %s180, %s183
    %p189 = scmp.eq.s32.totalorder %s13, 0
    %p190 = por %p188, %p189
    %p191 = scmp.ne.s32.totalorder %s180, %s183
    %p192 = scmp.eq.s32.totalorder %s18, 1
    %p193 = por %p191, %p192
    %p194 = scmp.ne.s32.totalorder %s183, %s184
    %p195 = scmp.eq.s32.totalorder %s18, 0
    %p196 = por %p194, %p195
    %p197 = scmp.ne.s32.totalorder %s183, %s184
    %p198 = scmp.eq.s32.totalorder %s19, 1
    %p199 = por %p197, %p198
    %p201 = scmp.ne.s32.totalorder %s184, %s200
    %p202 = scmp.eq.s32.totalorder %s19, 0
    %p203 = por %p201, %p202
    %p204 = scmp.le.s32.totalorder 1, %s13
    %p205 = scmp.lt.s32.totalorder %s13, 3
    %p206 = pnand %p204, %p205
    %p207 = pneg %p206
    // Predicated region
    $region9: #{content_encoder_forward.4} parent=5 // pred_check
      _
    $region10: #{content_encoder_forward.4} parent=5 // pred_check_branch
      %209 = sbr.rel (%p206) target = $region12
    $region11: #{content_encoder_forward.4} parent=5 // pred_region
      %s210 = ssub.s32 %s13, 1
      // Predicated region
      $region13: #{content_encoder_forward.4} parent=11 // pred_check
        %p211 = pneg %p86
      $region14: #{content_encoder_forward.4} parent=11 // pred_check_branch
        %213 = sbr.rel (%p211) target = $region16
      $region15: #{content_encoder_forward.4} parent=11 // pred_region
        _
      $region16: #{content_encoder_forward.4} parent=11 // pred_fallthru
        _
      // Predicated region
      $region17: #{content_encoder_forward.4} parent=11 // pred_check
        %p214 = pneg %p107
      $region18: #{content_encoder_forward.4} parent=11 // pred_check_branch
        %216 = sbr.rel (%p214) target = $region20
      $region19: #{content_encoder_forward.4} parent=11 // pred_region
        _
      $region20: #{content_encoder_forward.4} parent=11 // pred_fallthru
        _
      // Predicated region
      $region21: #{content_encoder_forward.4} parent=11 // pred_check
        %p217 = pneg %p128
      $region22: #{content_encoder_forward.4} parent=11 // pred_check_branch
        %219 = sbr.rel (%p217) target = $region24
      $region23: #{content_encoder_forward.4} parent=11 // pred_region
        _
      $region24: #{content_encoder_forward.4} parent=11 // pred_fallthru
        _
      // Predicated region
      $region25: #{content_encoder_forward.4} parent=11 // pred_check
        %p220 = pneg %p149
      $region26: #{content_encoder_forward.4} parent=11 // pred_check_branch
        %222 = sbr.rel (%p220) target = $region28
      $region27: #{content_encoder_forward.4} parent=11 // pred_region
        _
      $region28: #{content_encoder_forward.4} parent=11 // pred_fallthru
        _
      // Predicated region
      $region29: #{content_encoder_forward.4} parent=11 // pred_check
        %p223 = pneg %p170
      $region30: #{content_encoder_forward.4} parent=11 // pred_check_branch
        %225 = sbr.rel (%p223) target = $region32
      $region31: #{content_encoder_forward.4} parent=11 // pred_region
        _
      $region32: #{content_encoder_forward.4} parent=11 // pred_fallthru
        _
    $region12: #{content_encoder_forward.4} parent=5 // pred_fallthru
      _
    %p226 = scmp.lt.s32.totalorder %s13, 2
    // Predicated region
    $region33: #{content_encoder_forward.4} parent=5 // pred_check
      %p227 = pneg %p226
    $region34: #{content_encoder_forward.4} parent=5 // pred_check_branch
      %229 = sbr.rel (%p227) target = $region36
    $region35: #{content_encoder_forward.4} parent=5 // pred_region
      // Predicated region
      $region37: #{content_encoder_forward.4} parent=35 // pred_check
        %p230 = pneg %p33
      $region38: #{content_encoder_forward.4} parent=35 // pred_check_branch
        %232 = sbr.rel (%p230) target = $region40
      $region39: #{content_encoder_forward.4} parent=35 // pred_region
        %p233 = scmp.lt.s32.totalorder %s13, 1
        %s234 = scalar_select %p233, %s13, 1
        %s235 = smul.addr %s234, 2
        %s236 = smul.addr %s235, 8
        %s237 = scalar_lea.vmem %s0, %s236
      $region40: #{content_encoder_forward.4} parent=35 // pred_fallthru
        _
      // Predicated region
      $region41: #{content_encoder_forward.4} parent=35 // pred_check
        %p238 = pneg %p59
      $region42: #{content_encoder_forward.4} parent=35 // pred_check_branch
        %240 = sbr.rel (%p238) target = $region44
      $region43: #{content_encoder_forward.4} parent=35 // pred_region
        %p241 = scmp.lt.s32.totalorder %s13, 1
        %s242 = scalar_select %p241, %s13, 1
        %s243 = smul.addr %s242, 2
        %s244 = smul.addr %s243, 8
        %s245 = scalar_lea.vmem %s1, %s244
      $region44: #{content_encoder_forward.4} parent=35 // pred_fallthru
        _
    $region36: #{content_encoder_forward.4} parent=5 // pred_fallthru
      _
    %p246 = scmp.le.s32.totalorder 1, %s13
    %p247 = scmp.lt.s32.totalorder %s13, 3
    %p248 = pnand %p246, %p247
    %p249 = pneg %p248
    // Predicated region
    $region45: #{content_encoder_forward.4} parent=5 // pred_check
      _
    $region46: #{content_encoder_forward.4} parent=5 // pred_check_branch
      %251 = sbr.rel (%p248) target = $region48
    $region47: #{content_encoder_forward.4} parent=5 // pred_region
      %s252 = ssub.s32 %s13, 1
      %p253 = scmp.lt.s32.totalorder %s18, 1
      %s254 = scalar_select %p253, %s18, 1
      %s255 = smul.addr %s254, 2
      %s256 = smul.addr %s255, 8
      %s257 = scalar_lea.vmem %s0, %s256
      %p258 = pneg %p39
      %p259 = pneg %p36
      %p260 = scmp.lt.s32.totalorder %s18, 1
      %s261 = scalar_select %p260, %s18, 1
      %s262 = smul.addr %s261, 2
      %s263 = smul.addr %s262, 8
      %s264 = scalar_lea.vmem %s1, %s263
      %p265 = pneg %p65
      %p266 = pneg %p62
      %p267 = pneg %p86
      %p268 = pneg %p83
      %p269 = pneg %p107
      %p270 = pneg %p104
      %p271 = pneg %p128
      %p272 = pneg %p125
      %p273 = pneg %p149
      %p274 = pneg %p146
      %p275 = pneg %p170
      %p276 = pneg %p167
      %p277 = pneg %p196
      %p278 = pneg %p193
      %p279 = scmp.lt.s32.totalorder %s18, 1
      %s280 = scalar_select %p279, %s18, 1
      %s281 = smul.addr %s280, 2
      %s282 = smul.addr %s281, 4
      %s283 = scalar_lea.vmem %s7, %s282
      %p284 = scmp.lt.s32.totalorder %s18, 1
      %s285 = scalar_select %p284, %s18, 1
      %s286 = smul.addr %s285, 2
      %s287 = smul.addr %s286, 8
      %s288 = scalar_lea.vmem %s0, %s287
      %p289 = scmp.lt.s32.totalorder %s18, 1
      %s290 = scalar_select %p289, %s18, 1
      %s291 = smul.addr %s290, 2
      %s292 = smul.addr %s291, 8
      %s293 = scalar_lea.vmem %s1, %s292
      %p294 = scmp.lt.s32.totalorder %s18, 1
      %s295 = scalar_select %p294, %s18, 1
      %s296 = smul.addr %s295, 2
      %s297 = smul.addr %s296, 4
      %s298 = scalar_lea.vmem %s7, %s297
      %v300 = vld [vmem:[%s288] sm:$0xff]
      %v301 = vld [vmem:[%s288 + $0x8] sm:$0xff]
      %v302 = vpack.c.bf16 %v301, %v300
      %v303 = vld [vmem:[%s2] sm:$0xf]
      %v304 = vld [vmem:[%s2 + $0x4] sm:$0xf]
      %v305 = vld [vmem:[%s3] sm:$0x1]
      %v307 = vlaneseq
      %v308 = vshrl.u32 %v307, 7
      %v309 = vsub.s32 0, %v308
      %v310 = vrot.slane %v305, %v309
      %v314 = vunpack.c.l.b16 %v303
      %v315 = vunpack.c.l.b16 %v304
      %v316 = vpack.c.b16 %v315, %v314
      %vm318 = vcmask 130048
      %v320 = vsel %vm318, %v302, 0
      %322 = vmatprep.subr.bf16.mxu0 0
      %323 = vmatpush1.bf16.msra.mxu0 0
      %324 = vmatprep.subr.bf16.mxu0 0
      %325 = vmatpush1.bf16.msra.mxu0 0
      %326 = vmatprep.subr.bf16.mxu0 0
      %327 = vmatpush1.bf16.msra.mxu0 0
      %328 = vmatprep.subr.bf16.mxu0 0
      %329 = vmatpush1.bf16.msra.mxu0 0
      %330 = vmatprep.subr.bf16.mxu0 0
      %331 = vmatpush1.bf16.msra.mxu0 0
      %332 = vmatprep.subr.bf16.mxu0 0
      %333 = vmatpush1.bf16.msra.mxu0 0
      %334 = vmatprep.subr.bf16.mxu0 0
      %335 = vmatpush1.bf16.msra.mxu0 0
      %336 = vmatprep.subr.bf16.mxu0 0
      %337 = vmatpush1.bf16.msra.mxu0 %v316
      %338 = vmatprep.subr.bf16.mxu0 0
      %339 = vmatpush2.bf16.msra.mxu0 0
      %340 = vmatprep.subr.bf16.mxu0 0
      %341 = vmatpush2.bf16.msra.mxu0 0
      %342 = vmatprep.subr.bf16.mxu0 0
      %343 = vmatpush2.bf16.msra.mxu0 0
      %344 = vmatprep.subr.bf16.mxu0 0
      %345 = vmatpush2.bf16.msra.mxu0 0
      %346 = vmatprep.subr.bf16.mxu0 0
      %347 = vmatpush2.bf16.msra.mxu0 0
      %348 = vmatprep.subr.bf16.mxu0 0
      %349 = vmatpush2.bf16.msra.mxu0 0
      %350 = vmatprep.subr.bf16.mxu0 0
      %351 = vmatpush2.bf16.msra.mxu0 0
      %352 = vmatprep.subr.bf16.mxu0 0
      %353 = vmatpush2.bf16.msra.mxu0 0
      %354 = vmatprep.mubr.bf16.mxu0 0
      %355 = vmatmul.mubr.bf16.gmra.mxu0 %v320
      %v356 = vpop.f32.mrf.mxu0
      %v357 = vadd.f32 %v310, %v356
      %v358 = vpop.f32.mrf.mxu0
      %v359 = vpop.f32.mrf.mxu0
      %v360 = vadd.f32 %v310, %v359
      %v361 = vpop.f32.mrf.mxu0
      %362 = vdwg.mxu0
      %v363 = vmax.f32 %v357, 0.0
      %v364 = vmax.f32 %v360, 0.0
      %v365 = vpack.c.bf16 %v364, %v363
      %v366 = vld [vmem:[%s4] sm:$0xf]
      %v367 = vld [vmem:[%s293] sm:$0xff]
      %v368 = vld [vmem:[%s293 + $0x8] sm:$0xff]
      %v369 = vpack.c.bf16 %v368, %v367
      %v370 = vld [vmem:[%s5] sm:$0x3]
      %vm371 = vcmask 31744
      %v373 = vsel %vm371, %v369, 0
      %vm375 = vcmask 1041408
      %v377 = vsel %vm375, %v370, 0
      %379 = vmatprep.subr.bf16.mxu0 0
      %380 = vmatpush1.bf16.msra.mxu0 0
      %381 = vmatprep.subr.bf16.mxu0 0
      %382 = vmatpush1.bf16.msra.mxu0 0
      %383 = vmatprep.subr.bf16.mxu0 0
      %384 = vmatpush1.bf16.msra.mxu0 0
      %385 = vmatprep.subr.bf16.mxu0 0
      %386 = vmatpush1.bf16.msra.mxu0 0
      %387 = vmatprep.subr.bf16.mxu0 0
      %388 = vmatpush1.bf16.msra.mxu0 0
      %389 = vmatprep.subr.bf16.mxu0 0
      %390 = vmatpush1.bf16.msra.mxu0 0
      %391 = vmatprep.subr.bf16.mxu0 0
      %392 = vmatpush1.bf16.msra.mxu0 0
      %393 = vmatprep.subr.bf16.mxu0 0
      %394 = vmatpush1.bf16.msra.mxu0 %v377
      %395 = vmatprep.subr.bf16.mxu0 0
      %396 = vmatpush2.bf16.msra.mxu0 0
      %397 = vmatprep.subr.bf16.mxu0 0
      %398 = vmatpush2.bf16.msra.mxu0 0
      %399 = vmatprep.subr.bf16.mxu0 0
      %400 = vmatpush2.bf16.msra.mxu0 0
      %401 = vmatprep.subr.bf16.mxu0 0
      %402 = vmatpush2.bf16.msra.mxu0 0
      %403 = vmatprep.subr.bf16.mxu0 0
      %404 = vmatpush2.bf16.msra.mxu0 0
      %405 = vmatprep.subr.bf16.mxu0 0
      %406 = vmatpush2.bf16.msra.mxu0 0
      %407 = vmatprep.subr.bf16.mxu0 0
      %408 = vmatpush2.bf16.msra.mxu0 0
      %409 = vmatprep.subr.bf16.mxu0 0
      %410 = vmatpush2.bf16.msra.mxu0 0
      %411 = vmatprep.mubr.bf16.mxu0 0
      %412 = vmatmul.mubr.bf16.gmra.mxu0 %v373
      %v413 = vpop.f32.mrf.mxu0
      %v414 = vadd.f32 0.0, %v413
      %v415 = vpop.f32.mrf.mxu0
      %v416 = vpop.f32.mrf.mxu0
      %v417 = vadd.f32 0.0, %v416
      %v418 = vpop.f32.mrf.mxu0
      %419 = vdwg.mxu0
      %vm420 = vcmask 64512
      %v422 = vsel %vm420, %v365, 0
      %vm424 = vcmask 1043456
      %v426 = vsel %vm424, %v366, 0
      %428 = vmatprep.subr.bf16.mxu0 0
      %429 = vmatpush1.bf16.msra.mxu0 0
      %430 = vmatprep.subr.bf16.mxu0 0
      %431 = vmatpush1.bf16.msra.mxu0 0
      %432 = vmatprep.subr.bf16.mxu0 0
      %433 = vmatpush1.bf16.msra.mxu0 0
      %434 = vmatprep.subr.bf16.mxu0 0
      %435 = vmatpush1.bf16.msra.mxu0 0
      %436 = vmatprep.subr.bf16.mxu0 0
      %437 = vmatpush1.bf16.msra.mxu0 0
      %438 = vmatprep.subr.bf16.mxu0 0
      %439 = vmatpush1.bf16.msra.mxu0 0
      %440 = vmatprep.subr.bf16.mxu0 0
      %441 = vmatpush1.bf16.msra.mxu0 0
      %442 = vmatprep.subr.bf16.mxu0 0
      %443 = vmatpush1.bf16.msra.mxu0 %v426
      %444 = vmatprep.subr.bf16.mxu0 0
      %445 = vmatpush2.bf16.msra.mxu0 0
      %446 = vmatprep.subr.bf16.mxu0 0
      %447 = vmatpush2.bf16.msra.mxu0 0
      %448 = vmatprep.subr.bf16.mxu0 0
      %449 = vmatpush2.bf16.msra.mxu0 0
      %450 = vmatprep.subr.bf16.mxu0 0
      %451 = vmatpush2.bf16.msra.mxu0 0
      %452 = vmatprep.subr.bf16.mxu0 0
      %453 = vmatpush2.bf16.msra.mxu0 0
      %454 = vmatprep.subr.bf16.mxu0 0
      %455 = vmatpush2.bf16.msra.mxu0 0
      %456 = vmatprep.subr.bf16.mxu0 0
      %457 = vmatpush2.bf16.msra.mxu0 0
      %458 = vmatprep.subr.bf16.mxu0 0
      %459 = vmatpush2.bf16.msra.mxu0 0
      %460 = vmatprep.mubr.bf16.mxu0 0
      %461 = vmatmul.mubr.bf16.gmra.mxu0 %v422
      %v462 = vpop.f32.mrf.mxu0
      %v463 = vadd.f32 %v414, %v462
      %v464 = vpop.f32.mrf.mxu0
      %v465 = vpop.f32.mrf.mxu0
      %v466 = vadd.f32 %v417, %v465
      %v467 = vpop.f32.mrf.mxu0
      %468 = vdwg.mxu0
      %v469 = vld [vmem:[%s6] sm:$0x1]
      %v471 = vlaneseq
      %v472 = vshrl.u32 %v471, 7
      %v473 = vsub.s32 0, %v472
      %v474 = vrot.slane %v469, %v473
      %v476 = vadd.f32 %v463, %v474
      %v477 = vadd.f32 %v466, %v474
      %v478 = vadd.f32 %v476, %v477
      %v479 = vrot.slane %v478, 4
      %v480 = vadd.f32 %v478, %v479
      %v481 = vrot.slane %v480, 2
      %v482 = vadd.f32 %v480, %v481
      %v483 = vrot.slane %v482, 1
      %v484 = vadd.f32 %v482, %v483
      %v485 = vrcp.pop 16.0
      %v486 = vmul.f32 %v484, %v485
      %v487 = vsub.f32 %v476, %v486
      %v488 = vsub.f32 %v477, %v486
      %v489 = vmul.f32 %v487, %v487
      %v490 = vmul.f32 %v488, %v488
      %v491 = vadd.f32 %v489, %v490
      %v492 = vrot.slane %v491, 4
      %v493 = vadd.f32 %v491, %v492
      %v494 = vrot.slane %v493, 2
      %v495 = vadd.f32 %v493, %v494
      %v496 = vrot.slane %v495, 1
      %v497 = vadd.f32 %v495, %v496
      %v498 = vmul.f32 %v497, %v485
      %v499 = vadd.f32 %v498, 1e-05
      %v500 = vrsqrt.pop %v499
      %v501 = vmul.f32 %v487, %v500
      %v502 = vmul.f32 %v488, %v500
      %v503 = vmax.f32 %v501, 0.0
      %v504 = vmax.f32 %v502, 0.0
      %v505 = vpack.c.bf16 %v504, %v503
      %v507 = vunpack.c.l.b16 %v505
      %v508 = vunpack.c.h.b16 %v505
      %v509 = vpack.c.b16 %v507, %v507
      %v510 = vpack.c.b16 %v508, %v508
      %513 = vst [vmem:[%s298] sm:$0xf] %v509
      %514 = vst [vmem:[%s298 + $0x4] sm:$0xf] %v510
      %p515 = scmp.lt.s32.totalorder %s18, 1
      %s516 = scalar_select %p515, %s18, 1
      %s517 = smul.addr %s516, 2
      %s518 = smul.addr %s517, 4
      %s519 = scalar_lea.vmem %s7, %s518
      // Predicated region
      $region49: #{content_encoder_forward.4} parent=47 // pred_check
        %p520 = pneg %p193
      $region50: #{content_encoder_forward.4} parent=47 // pred_check_branch
        %522 = sbr.rel (%p520) target = $region52
      $region51: #{content_encoder_forward.4} parent=47 // pred_region
        _
      $region52: #{content_encoder_forward.4} parent=47 // pred_fallthru
        _
    $region48: #{content_encoder_forward.4} parent=5 // pred_fallthru
      _
    %p523 = scmp.le.s32.totalorder 2, %s13
    // Predicated region
    $region53: #{content_encoder_forward.4} parent=5 // pred_check
      %p524 = pneg %p523
    $region54: #{content_encoder_forward.4} parent=5 // pred_check_branch
      %526 = sbr.rel (%p524) target = $region56
    $region55: #{content_encoder_forward.4} parent=5 // pred_region
      %s527 = ssub.s32 %s13, 2
      // Predicated region
      $region57: #{content_encoder_forward.4} parent=55 // pred_check
        %p528 = pneg %p199
      $region58: #{content_encoder_forward.4} parent=55 // pred_check_branch
        %530 = sbr.rel (%p528) target = $region60
      $region59: #{content_encoder_forward.4} parent=55 // pred_region
        %p531 = scmp.lt.s32.totalorder %s19, 1
        %s532 = scalar_select %p531, %s19, 1
        %s533 = smul.addr %s532, 2
        %s534 = smul.addr %s533, 4
        %s535 = scalar_lea.vmem %s7, %s534
      $region60: #{content_encoder_forward.4} parent=55 // pred_fallthru
        _
    $region56: #{content_encoder_forward.4} parent=5 // pred_fallthru
      _
  $region6: #{content_encoder_forward.4} parent=0 // loop_footer
    %s17 = sadd.s32 1, %s13
  $region7: #{content_encoder_forward.4} parent=0 // loop_footer_branch
    %12 = sbr.rel target = $region3
  $region8: #{content_encoder_forward.4} parent=0 // loop_exit
    _

// kernel: content_encoder_forward.5
$region0: #{content_encoder_forward.5}
  #allocation0 [shape = 'u32[]', space=smem, size = 0x4, offset = 0x4, fixed_abs, tag = 'smem constant byte address 0x4 - core index']
  #allocation1 [shape = 'u32[144,128]{1,0:T(1,128)}', space=vmem, size = 0x12000, scoped, tag = 'internal scratch']
  #allocation2 [shape = 'f32[18,128]{1,0:T(8,128)}', space=vmem, size = 0x3000, scoped, tag = 'scratch operand']
  %s0 = inlined_call_operand.vmem [shape: bf16[2,16,128], index: 0, kind: input, shape index: {}]
  %s1 = inlined_call_operand.vmem [shape: bf16[384,128], index: 1, kind: input, shape index: {}]
  %s2 = inlined_call_operand.vmem [shape: f32[1,128], index: 2, kind: input, shape index: {}]
  %s3 = inlined_call_operand.hbm [shape: bf16[384,128], index: 3, kind: input, shape index: {}]
  %s4 = inlined_call_operand.vmem [shape: f32[1,128], index: 4, kind: input, shape index: {}]
  %s5 = inlined_call_operand.vmem [shape: bf16[2,16,128], index: 5, kind: output, shape index: {}]
  %s6 = sld [smem:[#allocation0]]
  $region57: #{content_encoder_forward.5} parent=0
    _
  %s8 = ssub.s32 1, %s6
  %s9 = scalar_select 0, %s8, %s6
  $region1: #{content_encoder_forward.5} parent=0
    #allocation3 [shape = 'u8[98304]{0}', space=vmem, size = 0x18000, scoped, tag = 'input window, operand 3, single buffered']
    #allocation4 [shape = 's32[2]{0}', space=sflag, size = 0x8, scoped, tag = 'scoped memory for content_encoder_forward.5']
    %10 = vsyncpa [#allocation4], 0
    loop: start=0, step=1, limit=4
    $region2: #{content_encoder_forward.5} parent=1 // loop_pre_header
      _
    $region3: #{content_encoder_forward.5} parent=1 // loop_header
      %s12 = sphi 0, %s16
      %p13 = scmp.ge.s32.totalorder %s12, 4
      %s22 = sphi 0, %s24
      %s25 = sphi 0, %s22
      %s26 = sphi 0, %s25
      %s42 = sphi 0, %s26
      %s46 = sphi 0, %s46
      %s48 = sphi 0, %s46
      %s49 = sphi 0, %s48
      %s63 = sphi 0, %s49
      %s67 = sphi 0, %s67
      %s69 = sphi 0, %s67
      %s70 = sphi 0, %s69
      %s84 = sphi 0, %s70
      %s88 = sphi 0, %s88
      %s90 = sphi 0, %s88
      %s91 = sphi 0, %s90
      %s105 = sphi 0, %s91
      %s109 = sphi 0, %s109
      %s111 = sphi 0, %s109
      %s112 = sphi 0, %s111
      %s126 = sphi 0, %s112
      %s132 = sphi 0, %s134
      %s135 = sphi 0, %s132
      %s136 = sphi 0, %s135
      %s152 = sphi 0, %s136
    $region4: #{content_encoder_forward.5} parent=1 // loop_header_branch
      %15 = sbr.rel (%p13) target = $region8
    $region5: #{content_encoder_forward.5} parent=1 // loop_body
      %s17 = ssub.s32 %s12, 1
      %s18 = ssub.s32 %s12, 2
      %s19 = sadd.s32 %s12, 1
      %s20 = ssub.s32 %s12, %s19
      %p21 = scmp.eq.s32.totalorder %s20, 0
      %s23 = sadd.s32 %s22, 1
      %s24 = scalar_select %p21, %s22, %s23
      %p27 = pneg %p21
      %p28 = scmp.eq.s32.totalorder %s12, 1
      %p29 = por %p27, %p28
      %p30 = scmp.ne.s32.totalorder %s22, %s25
      %p31 = scmp.eq.s32.totalorder %s12, 0
      %p32 = por %p30, %p31
      %p33 = scmp.ne.s32.totalorder %s22, %s25
      %p34 = scmp.eq.s32.totalorder %s17, 1
      %p35 = por %p33, %p34
      %p36 = scmp.ne.s32.totalorder %s25, %s26
      %p37 = scmp.eq.s32.totalorder %s17, 0
      %p38 = por %p36, %p37
      %p39 = scmp.ne.s32.totalorder %s25, %s26
      %p40 = scmp.eq.s32.totalorder %s18, 1
      %p41 = por %p39, %p40
      %p43 = scmp.ne.s32.totalorder %s26, %s42
      %p44 = scmp.eq.s32.totalorder %s18, 0
      %p45 = por %p43, %p44
      %s47 = sadd.s32 %s46, 1
      %p50 = scmp.eq.s32.totalorder %s12, 1
      %p51 = scmp.ne.s32.totalorder %s46, %s48
      %p52 = scmp.eq.s32.totalorder %s12, 0
      %p53 = por %p51, %p52
      %p54 = scmp.ne.s32.totalorder %s46, %s48
      %p55 = scmp.eq.s32.totalorder %s17, 1
      %p56 = por %p54, %p55
      %p57 = scmp.ne.s32.totalorder %s48, %s49
      %p58 = scmp.eq.s32.totalorder %s17, 0
      %p59 = por %p57, %p58
      %p60 = scmp.ne.s32.totalorder %s48, %s49
      %p61 = scmp.eq.s32.totalorder %s18, 1
      %p62 = por %p60, %p61
      %p64 = scmp.ne.s32.totalorder %s49, %s63
      %p65 = scmp.eq.s32.totalorder %s18, 0
      %p66 = por %p64, %p65
      %s68 = sadd.s32 %s67, 1
      %p71 = scmp.eq.s32.totalorder %s12, 1
      %p72 = scmp.ne.s32.totalorder %s67, %s69
      %p73 = scmp.eq.s32.totalorder %s12, 0
      %p74 = por %p72, %p73
      %p75 = scmp.ne.s32.totalorder %s67, %s69
      %p76 = scmp.eq.s32.totalorder %s17, 1
      %p77 = por %p75, %p76
      %p78 = scmp.ne.s32.totalorder %s69, %s70
      %p79 = scmp.eq.s32.totalorder %s17, 0
      %p80 = por %p78, %p79
      %p81 = scmp.ne.s32.totalorder %s69, %s70
      %p82 = scmp.eq.s32.totalorder %s18, 1
      %p83 = por %p81, %p82
      %p85 = scmp.ne.s32.totalorder %s70, %s84
      %p86 = scmp.eq.s32.totalorder %s18, 0
      %p87 = por %p85, %p86
      %s89 = sadd.s32 %s88, 1
      %p92 = scmp.eq.s32.totalorder %s12, 1
      %p93 = scmp.ne.s32.totalorder %s88, %s90
      %p94 = scmp.eq.s32.totalorder %s12, 0
      %p95 = por %p93, %p94
      %p96 = scmp.ne.s32.totalorder %s88, %s90
      %p97 = scmp.eq.s32.totalorder %s17, 1
      %p98 = por %p96, %p97
      %p99 = scmp.ne.s32.totalorder %s90, %s91
      %p100 = scmp.eq.s32.totalorder %s17, 0
      %p101 = por %p99, %p100
      %p102 = scmp.ne.s32.totalorder %s90, %s91
      %p103 = scmp.eq.s32.totalorder %s18, 1
      %p104 = por %p102, %p103
      %p106 = scmp.ne.s32.totalorder %s91, %s105
      %p107 = scmp.eq.s32.totalorder %s18, 0
      %p108 = por %p106, %p107
      %s110 = sadd.s32 %s109, 1
      %p113 = scmp.eq.s32.totalorder %s12, 1
      %p114 = scmp.ne.s32.totalorder %s109, %s111
      %p115 = scmp.eq.s32.totalorder %s12, 0
      %p116 = por %p114, %p115
      %p117 = scmp.ne.s32.totalorder %s109, %s111
      %p118 = scmp.eq.s32.totalorder %s17, 1
      %p119 = por %p117, %p118
      %p120 = scmp.ne.s32.totalorder %s111, %s112
      %p121 = scmp.eq.s32.totalorder %s17, 0
      %p122 = por %p120, %p121
      %p123 = scmp.ne.s32.totalorder %s111, %s112
      %p124 = scmp.eq.s32.totalorder %s18, 1
      %p125 = por %p123, %p124
      %p127 = scmp.ne.s32.totalorder %s112, %s126
      %p128 = scmp.eq.s32.totalorder %s18, 0
      %p129 = por %p127, %p128
      %s130 = ssub.s32 %s12, %s19
      %p131 = scmp.eq.s32.totalorder %s130, 0
      %s133 = sadd.s32 %s132, 1
      %s134 = scalar_select %p131, %s132, %s133
      %p137 = pneg %p131
      %p138 = scmp.eq.s32.totalorder %s12, 1
      %p139 = por %p137, %p138
      %p140 = scmp.ne.s32.totalorder %s132, %s135
      %p141 = scmp.eq.s32.totalorder %s12, 0
      %p142 = por %p140, %p141
      %p143 = scmp.ne.s32.totalorder %s132, %s135
      %p144 = scmp.eq.s32.totalorder %s17, 1
      %p145 = por %p143, %p144
      %p146 = scmp.ne.s32.totalorder %s135, %s136
      %p147 = scmp.eq.s32.totalorder %s17, 0
      %p148 = por %p146, %p147
      %p149 = scmp.ne.s32.totalorder %s135, %s136
      %p150 = scmp.eq.s32.totalorder %s18, 1
      %p151 = por %p149, %p150
      %p153 = scmp.ne.s32.totalorder %s136, %s152
      %p154 = scmp.eq.s32.totalorder %s18, 0
      %p155 = por %p153, %p154
      %p156 = scmp.le.s32.totalorder 1, %s12
      %p157 = scmp.lt.s32.totalorder %s12, 3
      %p158 = pnand %p156, %p157
      %p159 = pneg %p158
      // Predicated region
      $region9: #{content_encoder_forward.5} parent=5 // pred_check
        _
      $region10: #{content_encoder_forward.5} parent=5 // pred_check_branch
        %161 = sbr.rel (%p158) target = $region12
      $region11: #{content_encoder_forward.5} parent=5 // pred_region
        %s162 = ssub.s32 %s12, 1
        // Predicated region
        $region13: #{content_encoder_forward.5} parent=11 // pred_check
          %p163 = pneg %p59
        $region14: #{content_encoder_forward.5} parent=11 // pred_check_branch
          %165 = sbr.rel (%p163) target = $region16
        $region15: #{content_encoder_forward.5} parent=11 // pred_region
          _
        $region16: #{content_encoder_forward.5} parent=11 // pred_fallthru
          _
        // Predicated region
        $region17: #{content_encoder_forward.5} parent=11 // pred_check
          %p166 = pneg %p80
        $region18: #{content_encoder_forward.5} parent=11 // pred_check_branch
          %168 = sbr.rel (%p166) target = $region20
        $region19: #{content_encoder_forward.5} parent=11 // pred_region
          _
        $region20: #{content_encoder_forward.5} parent=11 // pred_fallthru
          _
        // Predicated region
        $region21: #{content_encoder_forward.5} parent=11 // pred_check
          %p169 = pneg %p101
        $region22: #{content_encoder_forward.5} parent=11 // pred_check_branch
          %171 = sbr.rel (%p169) target = $region24
        $region23: #{content_encoder_forward.5} parent=11 // pred_region
          %s173 = ssub.s32 3072, 3072
          %174 = vsyncadd [#allocation4], %s173
          %s175 = sshll.u32 [#allocation3], 4
          %s176 = int_to_ptr.vmem [resolvable:$true] %s175
          %181 = dma.hbm_to_vmem [thread:$0]  %s3, 3072, %s176, [#allocation4], 64, 64, 4
        $region24: #{content_encoder_forward.5} parent=11 // pred_fallthru
          _
        // Predicated region
        $region25: #{content_encoder_forward.5} parent=11 // pred_check
          %p182 = pneg %p122
        $region26: #{content_encoder_forward.5} parent=11 // pred_check_branch
          %184 = sbr.rel (%p182) target = $region28
        $region27: #{content_encoder_forward.5} parent=11 // pred_region
          _
        $region28: #{content_encoder_forward.5} parent=11 // pred_fallthru
          _
      $region12: #{content_encoder_forward.5} parent=5 // pred_fallthru
        _
      %p185 = scmp.lt.s32.totalorder %s12, 2
      // Predicated region
      $region29: #{content_encoder_forward.5} parent=5 // pred_check
        %p186 = pneg %p185
      $region30: #{content_encoder_forward.5} parent=5 // pred_check_branch
        %188 = sbr.rel (%p186) target = $region32
      $region31: #{content_encoder_forward.5} parent=5 // pred_region
        // Predicated region
        $region33: #{content_encoder_forward.5} parent=31 // pred_check
          %p189 = pneg %p32
        $region34: #{content_encoder_forward.5} parent=31 // pred_check_branch
          %191 = sbr.rel (%p189) target = $region36
        $region35: #{content_encoder_forward.5} parent=31 // pred_region
          %p192 = scmp.lt.s32.totalorder %s12, 1
          %s193 = scalar_select %p192, %s12, 1
          %s194 = smul.addr %s193, 2
          %s195 = smul.addr %s194, 4
          %s196 = scalar_lea.vmem %s0, %s195
        $region36: #{content_encoder_forward.5} parent=31 // pred_fallthru
          _
      $region32: #{content_encoder_forward.5} parent=5 // pred_fallthru
        _
      %p197 = scmp.le.s32.totalorder 1, %s12
      %p198 = scmp.lt.s32.totalorder %s12, 3
      %p199 = pnand %p197, %p198
      %p200 = pneg %p199
      // Predicated region
      $region37: #{content_encoder_forward.5} parent=5 // pred_check
        _
      $region38: #{content_encoder_forward.5} parent=5 // pred_check_branch
        %202 = sbr.rel (%p199) target = $region40
      $region39: #{content_encoder_forward.5} parent=5 // pred_region
        %s203 = ssub.s32 %s12, 1
        // Predicated region
        $region41: #{content_encoder_forward.5} parent=39 // pred_check
          %p204 = pneg %p101
        $region42: #{content_encoder_forward.5} parent=39 // pred_check_branch
          %206 = sbr.rel (%p204) target = $region44
        $region43: #{content_encoder_forward.5} parent=39 // pred_region
          %207 = dma.done [#allocation4], 3072
        $region44: #{content_encoder_forward.5} parent=39 // pred_fallthru
          _
        %p208 = scmp.lt.s32.totalorder %s17, 1
        %s209 = scalar_select %p208, %s17, 1
        %s210 = smul.addr %s209, 2
        %s211 = smul.addr %s210, 4
        %s212 = scalar_lea.vmem %s0, %s211
        %p213 = pneg %p38
        %p214 = pneg %p35
        %p215 = pneg %p59
        %p216 = pneg %p56
        %p217 = pneg %p80
        %p218 = pneg %p77
        %p219 = pneg %p101
        %p220 = pneg %p98
        %p221 = pneg %p122
        %p222 = pneg %p119
        %p223 = pneg %p148
        %p224 = pneg %p145
        %p225 = scmp.lt.s32.totalorder %s17, 1
        %s226 = scalar_select %p225, %s17, 1
        %s227 = smul.addr %s226, 2
        %s228 = smul.addr %s227, 4
        %s229 = scalar_lea.vmem %s5, %s228
        %p230 = scmp.lt.s32.totalorder %s17, 1
        %s231 = scalar_select %p230, %s17, 1
        %s232 = smul.addr %s231, 2
        %s233 = smul.addr %s232, 4
        %s234 = scalar_lea.vmem %s0, %s233
        %p235 = scmp.lt.s32.totalorder %s17, 1
        %s236 = scalar_select %p235, %s17, 1
        %s237 = smul.addr %s236, 2
        %s238 = smul.addr %s237, 4
        %s239 = scalar_lea.vmem %s5, %s238
        %v241 = vld [vmem:[%s234] sm:$0xf]
        %v242 = vld [vmem:[%s234 + $0x4] sm:$0xf]
        %v243 = vunpack.c.l.bf16 %v241
        %v244 = vunpack.c.l.bf16 %v242
        %245 = vst [vmem:[#allocation2 + $0x1] sm:$0xff] %v243
        %246 = vst [vmem:[#allocation2 + $0x9] sm:$0xff] %v244
        %247 = vst [vmem:[#allocation2 - $0x1] sm:$0x2] %v243
        %248 = vst [vmem:[#allocation2 + $0xb] sm:$0x40] %v244
        %v249 = vld [vmem:[#allocation2] sm:$0xff]
        %v250 = vld [vmem:[#allocation2 + $0x8] sm:$0xff]
        %v251 = vpack.c.bf16 %v250, %v249
        %v252 = vld [vmem:[#allocation2 + $0x1] sm:$0xff]
        %v253 = vld [vmem:[#allocation2 + $0x9] sm:$0xff]
        %v254 = vpack.c.bf16 %v253, %v252
        %v255 = vld [vmem:[#allocation2 + $0x2] sm:$0xff]
        %v256 = vld [vmem:[#allocation2 + $0xa] sm:$0xff]
        %v257 = vpack.c.bf16 %v256, %v255
        %v258 = vld [vmem:[%s1] sm:$0xf]
        %v259 = vld [vmem:[%s1 + $0x4] sm:$0xf]
        %v260 = vld [vmem:[%s1 + $0x8] sm:$0xf]
        %v261 = vld [vmem:[%s1 + $0xc] sm:$0xf]
        %v262 = vld [vmem:[%s1 + $0x10] sm:$0xf]
        %v263 = vld [vmem:[%s1 + $0x14] sm:$0xf]
        %v264 = vld [vmem:[%s1 + $0x18] sm:$0xf]
        %v265 = vld [vmem:[%s1 + $0x1c] sm:$0xf]
        %v266 = vld [vmem:[%s1 + $0x20] sm:$0xf]
        %v267 = vld [vmem:[%s1 + $0x24] sm:$0xf]
        %v268 = vld [vmem:[%s1 + $0x28] sm:$0xf]
        %v269 = vld [vmem:[%s1 + $0x2c] sm:$0xf]
        %v270 = vld [vmem:[%s1 + $0x30] sm:$0xf]
        %v271 = vld [vmem:[%s1 + $0x34] sm:$0xf]
        %v272 = vld [vmem:[%s1 + $0x38] sm:$0xf]
        %v273 = vld [vmem:[%s1 + $0x3c] sm:$0xf]
        %v274 = vld [vmem:[%s1 + $0x40] sm:$0xf]
        %v275 = vld [vmem:[%s1 + $0x44] sm:$0xf]
        %v276 = vld [vmem:[%s1 + $0x48] sm:$0xf]
        %v277 = vld [vmem:[%s1 + $0x4c] sm:$0xf]
        %v278 = vld [vmem:[%s1 + $0x50] sm:$0xf]
        %v279 = vld [vmem:[%s1 + $0x54] sm:$0xf]
        %v280 = vld [vmem:[%s1 + $0x58] sm:$0xf]
        %v281 = vld [vmem:[%s1 + $0x5c] sm:$0xf]
        %v282 = vld [vmem:[%s1 + $0x60] sm:$0xf]
        %v283 = vld [vmem:[%s1 + $0x64] sm:$0xf]
        %v284 = vld [vmem:[%s1 + $0x68] sm:$0xf]
        %v285 = vld [vmem:[%s1 + $0x6c] sm:$0xf]
        %v286 = vld [vmem:[%s1 + $0x70] sm:$0xf]
        %v287 = vld [vmem:[%s1 + $0x74] sm:$0xf]
        %v288 = vld [vmem:[%s1 + $0x78] sm:$0xf]
        %v289 = vld [vmem:[%s1 + $0x7c] sm:$0xf]
        %v290 = vld [vmem:[%s1 + $0x80] sm:$0xf]
        %v291 = vld [vmem:[%s1 + $0x84] sm:$0xf]
        %v292 = vld [vmem:[%s1 + $0x88] sm:$0xf]
        %v293 = vld [vmem:[%s1 + $0x8c] sm:$0xf]
        %v294 = vld [vmem:[%s1 + $0x90] sm:$0xf]
        %v295 = vld [vmem:[%s1 + $0x94] sm:$0xf]
        %v296 = vld [vmem:[%s1 + $0x98] sm:$0xf]
        %v297 = vld [vmem:[%s1 + $0x9c] sm:$0xf]
        %v298 = vld [vmem:[%s1 + $0xa0] sm:$0xf]
        %v299 = vld [vmem:[%s1 + $0xa4] sm:$0xf]
        %v300 = vld [vmem:[%s1 + $0xa8] sm:$0xf]
        %v301 = vld [vmem:[%s1 + $0xac] sm:$0xf]
        %v302 = vld [vmem:[%s1 + $0xb0] sm:$0xf]
        %v303 = vld [vmem:[%s1 + $0xb4] sm:$0xf]
        %v304 = vld [vmem:[%s1 + $0xb8] sm:$0xf]
        %v305 = vld [vmem:[%s1 + $0xbc] sm:$0xf]
        %v306 = vld [vmem:[%s2] sm:$0x1]
        %v308 = vlaneseq
        %v309 = vshrl.u32 %v308, 7
        %v310 = vsub.s32 0, %v309
        %v311 = vrot.slane %v306, %v310
        %v361 = vunpack.c.l.b16 %v258
        %v362 = vunpack.c.l.b16 %v259
        %v363 = vunpack.c.l.b16 %v260
        %v364 = vunpack.c.l.b16 %v261
        %v365 = vunpack.c.l.b16 %v262
        %v366 = vunpack.c.l.b16 %v263
        %v367 = vunpack.c.l.b16 %v264
        %v368 = vunpack.c.l.b16 %v265
        %v369 = vunpack.c.l.b16 %v266
        %v370 = vunpack.c.l.b16 %v267
        %v371 = vunpack.c.l.b16 %v268
        %v372 = vunpack.c.l.b16 %v269
        %v373 = vunpack.c.l.b16 %v270
        %v374 = vunpack.c.l.b16 %v271
        %v375 = vunpack.c.l.b16 %v272
        %v376 = vunpack.c.l.b16 %v273
        %v377 = vunpack.c.l.b16 %v274
        %v378 = vunpack.c.l.b16 %v275
        %v379 = vunpack.c.l.b16 %v276
        %v380 = vunpack.c.l.b16 %v277
        %v381 = vunpack.c.l.b16 %v278
        %v382 = vunpack.c.l.b16 %v279
        %v383 = vunpack.c.l.b16 %v280
        %v384 = vunpack.c.l.b16 %v281
        %v385 = vunpack.c.l.b16 %v282
        %v386 = vunpack.c.l.b16 %v283
        %v387 = vunpack.c.l.b16 %v284
        %v388 = vunpack.c.l.b16 %v285
        %v389 = vunpack.c.l.b16 %v286
        %v390 = vunpack.c.l.b16 %v287
        %v391 = vunpack.c.l.b16 %v288
        %v392 = vunpack.c.l.b16 %v289
        %v393 = vunpack.c.l.b16 %v290
        %v394 = vunpack.c.l.b16 %v291
        %v395 = vunpack.c.l.b16 %v292
        %v396 = vunpack.c.l.b16 %v293
        %v397 = vunpack.c.l.b16 %v294
        %v398 = vunpack.c.l.b16 %v295
        %v399 = vunpack.c.l.b16 %v296
        %v400 = vunpack.c.l.b16 %v297
        %v401 = vunpack.c.l.b16 %v298
        %v402 = vunpack.c.l.b16 %v299
        %v403 = vunpack.c.l.b16 %v300
        %v404 = vunpack.c.l.b16 %v301
        %v405 = vunpack.c.l.b16 %v302
        %v406 = vunpack.c.l.b16 %v303
        %v407 = vunpack.c.l.b16 %v304
        %v408 = vunpack.c.l.b16 %v305
        %v409 = vpack.c.b16 %v362, %v361
        %v410 = vpack.c.b16 %v364, %v363
        %v411 = vpack.c.b16 %v366, %v365
        %v412 = vpack.c.b16 %v368, %v367
        %v413 = vpack.c.b16 %v370, %v369
        %v414 = vpack.c.b16 %v372, %v371
        %v415 = vpack.c.b16 %v374, %v373
        %v416 = vpack.c.b16 %v376, %v375
        %v417 = vpack.c.b16 %v378, %v377
        %v418 = vpack.c.b16 %v380, %v379
        %v419 = vpack.c.b16 %v382, %v381
        %v420 = vpack.c.b16 %v384, %v383
        %v421 = vpack.c.b16 %v386, %v385
        %v422 = vpack.c.b16 %v388, %v387
        %v423 = vpack.c.b16 %v390, %v389
        %v424 = vpack.c.b16 %v392, %v391
        %v425 = vpack.c.b16 %v394, %v393
        %v426 = vpack.c.b16 %v396, %v395
        %v427 = vpack.c.b16 %v398, %v397
        %v428 = vpack.c.b16 %v400, %v399
        %v429 = vpack.c.b16 %v402, %v401
        %v430 = vpack.c.b16 %v404, %v403
        %v431 = vpack.c.b16 %v406, %v405
        %v432 = vpack.c.b16 %v408, %v407
        %457 = vmatprep.subr.bf16.mxu0 0
        %458 = vmatpush1.bf16.msra.mxu0 %v416
        %459 = vmatprep.subr.bf16.mxu0 0
        %460 = vmatpush1.bf16.msra.mxu0 %v415
        %461 = vmatprep.subr.bf16.mxu0 0
        %462 = vmatpush1.bf16.msra.mxu0 %v414
        %463 = vmatprep.subr.bf16.mxu0 0
        %464 = vmatpush1.bf16.msra.mxu0 %v413
        %465 = vmatprep.subr.bf16.mxu0 0
        %466 = vmatpush1.bf16.msra.mxu0 %v412
        %467 = vmatprep.subr.bf16.mxu0 0
        %468 = vmatpush1.bf16.msra.mxu0 %v411
        %469 = vmatprep.subr.bf16.mxu0 0
        %470 = vmatpush1.bf16.msra.mxu0 %v410
        %471 = vmatprep.subr.bf16.mxu0 0
        %472 = vmatpush1.bf16.msra.mxu0 %v409
        %473 = vmatprep.subr.bf16.mxu0 0
        %474 = vmatpush2.bf16.msra.mxu0 %v424
        %475 = vmatprep.subr.bf16.mxu0 0
        %476 = vmatpush2.bf16.msra.mxu0 %v423
        %477 = vmatprep.subr.bf16.mxu0 0
        %478 = vmatpush2.bf16.msra.mxu0 %v422
        %479 = vmatprep.subr.bf16.mxu0 0
        %480 = vmatpush2.bf16.msra.mxu0 %v421
        %481 = vmatprep.subr.bf16.mxu0 0
        %482 = vmatpush2.bf16.msra.mxu0 %v420
        %483 = vmatprep.subr.bf16.mxu0 0
        %484 = vmatpush2.bf16.msra.mxu0 %v419
        %485 = vmatprep.subr.bf16.mxu0 0
        %486 = vmatpush2.bf16.msra.mxu0 %v418
        %487 = vmatprep.subr.bf16.mxu0 0
        %488 = vmatpush2.bf16.msra.mxu0 %v417
        %489 = vmatprep.mubr.bf16.mxu0 %v254
        %490 = vmatmul.mubr.bf16.gmra.mxu0 %v251
        %v491 = vpop.f32.mrf.mxu0
        %v492 = vadd.f32 %v311, %v491
        %v493 = vpop.f32.mrf.mxu0
        %v494 = vpop.f32.mrf.mxu0
        %v495 = vadd.f32 %v311, %v494
        %v496 = vpop.f32.mrf.mxu0
        %497 = vdwg.mxu0
        %498 = vmatprep.subr.bf16.mxu0 0
        %499 = vmatpush1.bf16.msra.mxu0 %v432
        %500 = vmatprep.subr.bf16.mxu0 0
        %501 = vmatpush1.bf16.msra.mxu0 %v431
        %502 = vmatprep.subr.bf16.mxu0 0
        %503 = vmatpush1.bf16.msra.mxu0 %v430
        %504 = vmatprep.subr.bf16.mxu0 0
        %505 = vmatpush1.bf16.msra.mxu0 %v429
        %506 = vmatprep.subr.bf16.mxu0 0
        %507 = vmatpush1.bf16.msra.mxu0 %v428
        %508 = vmatprep.subr.bf16.mxu0 0
        %509 = vmatpush1.bf16.msra.mxu0 %v427
        %510 = vmatprep.subr.bf16.mxu0 0
        %511 = vmatpush1.bf16.msra.mxu0 %v426
        %512 = vmatprep.subr.bf16.mxu0 0
        %513 = vmatpush1.bf16.msra.mxu0 %v425
        %514 = vmatprep.subr.bf16.mxu0 0
        %515 = vmatpush2.bf16.msra.mxu0 0
        %516 = vmatprep.subr.bf16.mxu0 0
        %517 = vmatpush2.bf16.msra.mxu0 0
        %518 = vmatprep.subr.bf16.mxu0 0
        %519 = vmatpush2.bf16.msra.mxu0 0
        %520 = vmatprep.subr.bf16.mxu0 0
        %521 = vmatpush2.bf16.msra.mxu0 0
        %522 = vmatprep.subr.bf16.mxu0 0
        %523 = vmatpush2.bf16.msra.mxu0 0
        %524 = vmatprep.subr.bf16.mxu0 0
        %525 = vmatpush2.bf16.msra.mxu0 0
        %526 = vmatprep.subr.bf16.mxu0 0
        %527 = vmatpush2.bf16.msra.mxu0 0
        %528 = vmatprep.subr.bf16.mxu0 0
        %529 = vmatpush2.bf16.msra.mxu0 0
        %530 = vmatprep.mubr.bf16.mxu0 0
        %531 = vmatmul.mubr.bf16.gmra.mxu0 %v257
        %v532 = vpop.f32.mrf.mxu0
        %v533 = vadd.f32 %v492, %v532
        %v534 = vpop.f32.mrf.mxu0
        %v535 = vpop.f32.mrf.mxu0
        %v536 = vadd.f32 %v495, %v535
        %v537 = vpop.f32.mrf.mxu0
        %538 = vdwg.mxu0
        %v539 = vadd.f32 %v533, %v536
        %v540 = vrot.slane %v539, 4
        %v541 = vadd.f32 %v539, %v540
        %v542 = vrot.slane %v541, 2
        %v543 = vadd.f32 %v541, %v542
        %v544 = vrot.slane %v543, 1
        %v545 = vadd.f32 %v543, %v544
        %v546 = vrcp.pop 16.0
        %v547 = vmul.f32 %v545, %v546
        %v548 = vsub.f32 %v533, %v547
        %v549 = vsub.f32 %v536, %v547
        %v550 = vmul.f32 %v548, %v548
        %v551 = vmul.f32 %v549, %v549
        %v552 = vadd.f32 %v550, %v551
        %v553 = vrot.slane %v552, 4
        %v554 = vadd.f32 %v552, %v553
        %v555 = vrot.slane %v554, 2
        %v556 = vadd.f32 %v554, %v555
        %v557 = vrot.slane %v556, 1
        %v558 = vadd.f32 %v556, %v557
        %v559 = vmul.f32 %v558, %v546
        %v560 = vadd.f32 %v559, 1e-05
        %v561 = vrsqrt.pop %v560
        %v562 = vmul.f32 %v548, %v561
        %v563 = vmul.f32 %v549, %v561
        %v564 = vmax.f32 %v562, 0.0
        %v565 = vmax.f32 %v563, 0.0
        %566 = vst [vmem:[#allocation2 + $0x1] sm:$0xff] %v564
        %567 = vst [vmem:[#allocation2 + $0x9] sm:$0xff] %v565
        %568 = vst [vmem:[#allocation2 - $0x1] sm:$0x2] %v564
        %569 = vst [vmem:[#allocation2 + $0xb] sm:$0x40] %v565
        %v570 = vld [vmem:[#allocation2] sm:$0xff]
        %v571 = vld [vmem:[#allocation2 + $0x8] sm:$0xff]
        %v572 = vpack.c.bf16 %v571, %v570
        %v573 = vld [vmem:[#allocation2 + $0x1] sm:$0xff]
        %v574 = vld [vmem:[#allocation2 + $0x9] sm:$0xff]
        %v575 = vpack.c.bf16 %v574, %v573
        %v576 = vld [vmem:[#allocation2 + $0x2] sm:$0xff]
        %v577 = vld [vmem:[#allocation2 + $0xa] sm:$0xff]
        %v578 = vpack.c.bf16 %v577, %v576
        %v579 = vld [vmem:[#allocation3] sm:$0xf]
        %v580 = vld [vmem:[#allocation3 + $0x4] sm:$0xf]
        %v581 = vld [vmem:[#allocation3 + $0x8] sm:$0xf]
        %v582 = vld [vmem:[#allocation3 + $0xc] sm:$0xf]
        %v583 = vld [vmem:[#allocation3 + $0x10] sm:$0xf]
        %v584 = vld [vmem:[#allocation3 + $0x14] sm:$0xf]
        %v585 = vld [vmem:[#allocation3 + $0x18] sm:$0xf]
        %v586 = vld [vmem:[#allocation3 + $0x1c] sm:$0xf]
        %v587 = vld [vmem:[#allocation3 + $0x20] sm:$0xf]
        %v588 = vld [vmem:[#allocation3 + $0x24] sm:$0xf]
        %v589 = vld [vmem:[#allocation3 + $0x28] sm:$0xf]
        %v590 = vld [vmem:[#allocation3 + $0x2c] sm:$0xf]
        %v591 = vld [vmem:[#allocation3 + $0x30] sm:$0xf]
        %v592 = vld [vmem:[#allocation3 + $0x34] sm:$0xf]
        %v593 = vld [vmem:[#allocation3 + $0x38] sm:$0xf]
        %v594 = vld [vmem:[#allocation3 + $0x3c] sm:$0xf]
        %v595 = vld [vmem:[#allocation3 + $0x40] sm:$0xf]
        %v596 = vld [vmem:[#allocation3 + $0x44] sm:$0xf]
        %v597 = vld [vmem:[#allocation3 + $0x48] sm:$0xf]
        %v598 = vld [vmem:[#allocation3 + $0x4c] sm:$0xf]
        %v599 = vld [vmem:[#allocation3 + $0x50] sm:$0xf]
        %v600 = vld [vmem:[#allocation3 + $0x54] sm:$0xf]
        %v601 = vld [vmem:[#allocation3 + $0x58] sm:$0xf]
        %v602 = vld [vmem:[#allocation3 + $0x5c] sm:$0xf]
        %v603 = vld [vmem:[#allocation3 + $0x60] sm:$0xf]
        %v604 = vld [vmem:[#allocation3 + $0x64] sm:$0xf]
        %v605 = vld [vmem:[#allocation3 + $0x68] sm:$0xf]
        %v606 = vld [vmem:[#allocation3 + $0x6c] sm:$0xf]
        %v607 = vld [vmem:[#allocation3 + $0x70] sm:$0xf]
        %v608 = vld [vmem:[#allocation3 + $0x74] sm:$0xf]
        %v609 = vld [vmem:[#allocation3 + $0x78] sm:$0xf]
        %v610 = vld [vmem:[#allocation3 + $0x7c] sm:$0xf]
        %v611 = vld [vmem:[#allocation3 + $0x80] sm:$0xf]
        %v612 = vld [vmem:[#allocation3 + $0x84] sm:$0xf]
        %v613 = vld [vmem:[#allocation3 + $0x88] sm:$0xf]
        %v614 = vld [vmem:[#allocation3 + $0x8c] sm:$0xf]
        %v615 = vld [vmem:[#allocation3 + $0x90] sm:$0xf]
        %v616 = vld [vmem:[#allocation3 + $0x94] sm:$0xf]
        %v617 = vld [vmem:[#allocation3 + $0x98] sm:$0xf]
        %v618 = vld [vmem:[#allocation3 + $0x9c] sm:$0xf]
        %v619 = vld [vmem:[#allocation3 + $0xa0] sm:$0xf]
        %v620 = vld [vmem:[#allocation3 + $0xa4] sm:$0xf]
        %v621 = vld [vmem:[#allocation3 + $0xa8] sm:$0xf]
        %v622 = vld [vmem:[#allocation3 + $0xac] sm:$0xf]
        %v623 = vld [vmem:[#allocation3 + $0xb0] sm:$0xf]
        %v624 = vld [vmem:[#allocation3 + $0xb4] sm:$0xf]
        %v625 = vld [vmem:[#allocation3 + $0xb8] sm:$0xf]
        %v626 = vld [vmem:[#allocation3 + $0xbc] sm:$0xf]
        %v627 = vld [vmem:[%s4] sm:$0x1]
        %v629 = vlaneseq
        %v630 = vshrl.u32 %v629, 7
        %v631 = vsub.s32 0, %v630
        %v632 = vrot.slane %v627, %v631
        %v682 = vunpack.c.l.b16 %v579
        %v683 = vunpack.c.l.b16 %v580
        %v684 = vunpack.c.l.b16 %v581
        %v685 = vunpack.c.l.b16 %v582
        %v686 = vunpack.c.l.b16 %v583
        %v687 = vunpack.c.l.b16 %v584
        %v688 = vunpack.c.l.b16 %v585
        %v689 = vunpack.c.l.b16 %v586
        %v690 = vunpack.c.l.b16 %v587
        %v691 = vunpack.c.l.b16 %v588
        %v692 = vunpack.c.l.b16 %v589
        %v693 = vunpack.c.l.b16 %v590
        %v694 = vunpack.c.l.b16 %v591
        %v695 = vunpack.c.l.b16 %v592
        %v696 = vunpack.c.l.b16 %v593
        %v697 = vunpack.c.l.b16 %v594
        %v698 = vunpack.c.l.b16 %v595
        %v699 = vunpack.c.l.b16 %v596
        %v700 = vunpack.c.l.b16 %v597
        %v701 = vunpack.c.l.b16 %v598
        %v702 = vunpack.c.l.b16 %v599
        %v703 = vunpack.c.l.b16 %v600
        %v704 = vunpack.c.l.b16 %v601
        %v705 = vunpack.c.l.b16 %v602
        %v706 = vunpack.c.l.b16 %v603
        %v707 = vunpack.c.l.b16 %v604
        %v708 = vunpack.c.l.b16 %v605
        %v709 = vunpack.c.l.b16 %v606
        %v710 = vunpack.c.l.b16 %v607
        %v711 = vunpack.c.l.b16 %v608
        %v712 = vunpack.c.l.b16 %v609
        %v713 = vunpack.c.l.b16 %v610
        %v714 = vunpack.c.l.b16 %v611
        %v715 = vunpack.c.l.b16 %v612
        %v716 = vunpack.c.l.b16 %v613
        %v717 = vunpack.c.l.b16 %v614
        %v718 = vunpack.c.l.b16 %v615
        %v719 = vunpack.c.l.b16 %v616
        %v720 = vunpack.c.l.b16 %v617
        %v721 = vunpack.c.l.b16 %v618
        %v722 = vunpack.c.l.b16 %v619
        %v723 = vunpack.c.l.b16 %v620
        %v724 = vunpack.c.l.b16 %v621
        %v725 = vunpack.c.l.b16 %v622
        %v726 = vunpack.c.l.b16 %v623
        %v727 = vunpack.c.l.b16 %v624
        %v728 = vunpack.c.l.b16 %v625
        %v729 = vunpack.c.l.b16 %v626
        %v730 = vpack.c.b16 %v683, %v682
        %v731 = vpack.c.b16 %v685, %v684
        %v732 = vpack.c.b16 %v687, %v686
        %v733 = vpack.c.b16 %v689, %v688
        %v734 = vpack.c.b16 %v691, %v690
        %v735 = vpack.c.b16 %v693, %v692
        %v736 = vpack.c.b16 %v695, %v694
        %v737 = vpack.c.b16 %v697, %v696
        %v738 = vpack.c.b16 %v699, %v698
        %v739 = vpack.c.b16 %v701, %v700
        %v740 = vpack.c.b16 %v703, %v702
        %v741 = vpack.c.b16 %v705, %v704
        %v742 = vpack.c.b16 %v707, %v706
        %v743 = vpack.c.b16 %v709, %v708
        %v744 = vpack.c.b16 %v711, %v710
        %v745 = vpack.c.b16 %v713, %v712
        %v746 = vpack.c.b16 %v715, %v714
        %v747 = vpack.c.b16 %v717, %v716
        %v748 = vpack.c.b16 %v719, %v718
        %v749 = vpack.c.b16 %v721, %v720
        %v750 = vpack.c.b16 %v723, %v722
        %v751 = vpack.c.b16 %v725, %v724
        %v752 = vpack.c.b16 %v727, %v726
        %v753 = vpack.c.b16 %v729, %v728
        %778 = vmatprep.subr.bf16.mxu0 0
        %779 = vmatpush1.bf16.msra.mxu0 %v737
        %780 = vmatprep.subr.bf16.mxu0 0
        %781 = vmatpush1.bf16.msra.mxu0 %v736
        %782 = vmatprep.subr.bf16.mxu0 0
        %783 = vmatpush1.bf16.msra.mxu0 %v735
        %784 = vmatprep.subr.bf16.mxu0 0
        %785 = vmatpush1.bf16.msra.mxu0 %v734
        %786 = vmatprep.subr.bf16.mxu0 0
        %787 = vmatpush1.bf16.msra.mxu0 %v733
        %788 = vmatprep.subr.bf16.mxu0 0
        %789 = vmatpush1.bf16.msra.mxu0 %v732
        %790 = vmatprep.subr.bf16.mxu0 0
        %791 = vmatpush1.bf16.msra.mxu0 %v731
        %792 = vmatprep.subr.bf16.mxu0 0
        %793 = vmatpush1.bf16.msra.mxu0 %v730
        %794 = vmatprep.subr.bf16.mxu0 0
        %795 = vmatpush2.bf16.msra.mxu0 %v745
        %796 = vmatprep.subr.bf16.mxu0 0
        %797 = vmatpush2.bf16.msra.mxu0 %v744
        %798 = vmatprep.subr.bf16.mxu0 0
        %799 = vmatpush2.bf16.msra.mxu0 %v743
        %800 = vmatprep.subr.bf16.mxu0 0
        %801 = vmatpush2.bf16.msra.mxu0 %v742
        %802 = vmatprep.subr.bf16.mxu0 0
        %803 = vmatpush2.bf16.msra.mxu0 %v741
        %804 = vmatprep.subr.bf16.mxu0 0
        %805 = vmatpush2.bf16.msra.mxu0 %v740
        %806 = vmatprep.subr.bf16.mxu0 0
        %807 = vmatpush2.bf16.msra.mxu0 %v739
        %808 = vmatprep.subr.bf16.mxu0 0
        %809 = vmatpush2.bf16.msra.mxu0 %v738
        %810 = vmatprep.mubr.bf16.mxu0 %v575
        %811 = vmatmul.mubr.bf16.gmra.mxu0 %v572
        %v812 = vpop.f32.mrf.mxu0
        %v813 = vadd.f32 %v632, %v812
        %v814 = vpop.f32.mrf.mxu0
        %v815 = vpop.f32.mrf.mxu0
        %v816 = vadd.f32 %v632, %v815
        %v817 = vpop.f32.mrf.mxu0
        %818 = vdwg.mxu0
        %819 = vmatprep.subr.bf16.mxu0 0
        %820 = vmatpush1.bf16.msra.mxu0 %v753
        %821 = vmatprep.subr.bf16.mxu0 0
        %822 = vmatpush1.bf16.msra.mxu0 %v752
        %823 = vmatprep.subr.bf16.mxu0 0
        %824 = vmatpush1.bf16.msra.mxu0 %v751
        %825 = vmatprep.subr.bf16.mxu0 0
        %826 = vmatpush1.bf16.msra.mxu0 %v750
        %827 = vmatprep.subr.bf16.mxu0 0
        %828 = vmatpush1.bf16.msra.mxu0 %v749
        %829 = vmatprep.subr.bf16.mxu0 0
        %830 = vmatpush1.bf16.msra.mxu0 %v748
        %831 = vmatprep.subr.bf16.mxu0 0
        %832 = vmatpush1.bf16.msra.mxu0 %v747
        %833 = vmatprep.subr.bf16.mxu0 0
        %834 = vmatpush1.bf16.msra.mxu0 %v746
        %835 = vmatprep.subr.bf16.mxu0 0
        %836 = vmatpush2.bf16.msra.mxu0 0
        %837 = vmatprep.subr.bf16.mxu0 0
        %838 = vmatpush2.bf16.msra.mxu0 0
        %839 = vmatprep.subr.bf16.mxu0 0
        %840 = vmatpush2.bf16.msra.mxu0 0
        %841 = vmatprep.subr.bf16.mxu0 0
        %842 = vmatpush2.bf16.msra.mxu0 0
        %843 = vmatprep.subr.bf16.mxu0 0
        %844 = vmatpush2.bf16.msra.mxu0 0
        %845 = vmatprep.subr.bf16.mxu0 0
        %846 = vmatpush2.bf16.msra.mxu0 0
        %847 = vmatprep.subr.bf16.mxu0 0
        %848 = vmatpush2.bf16.msra.mxu0 0
        %849 = vmatprep.subr.bf16.mxu0 0
        %850 = vmatpush2.bf16.msra.mxu0 0
        %851 = vmatprep.mubr.bf16.mxu0 0
        %852 = vmatmul.mubr.bf16.gmra.mxu0 %v578
        %v853 = vpop.f32.mrf.mxu0
        %v854 = vadd.f32 %v813, %v853
        %v855 = vpop.f32.mrf.mxu0
        %v856 = vpop.f32.mrf.mxu0
        %v857 = vadd.f32 %v816, %v856
        %v858 = vpop.f32.mrf.mxu0
        %859 = vdwg.mxu0
        %v860 = vadd.f32 %v854, %v857
        %v861 = vrot.slane %v860, 4
        %v862 = vadd.f32 %v860, %v861
        %v863 = vrot.slane %v862, 2
        %v864 = vadd.f32 %v862, %v863
        %v865 = vrot.slane %v864, 1
        %v866 = vadd.f32 %v864, %v865
        %v867 = vmul.f32 %v866, %v546
        %v868 = vsub.f32 %v854, %v867
        %v869 = vsub.f32 %v857, %v867
        %v870 = vmul.f32 %v868, %v868
        %v871 = vmul.f32 %v869, %v869
        %v872 = vadd.f32 %v870, %v871
        %v873 = vrot.slane %v872, 4
        %v874 = vadd.f32 %v872, %v873
        %v875 = vrot.slane %v874, 2
        %v876 = vadd.f32 %v874, %v875
        %v877 = vrot.slane %v876, 1
        %v878 = vadd.f32 %v876, %v877
        %v879 = vmul.f32 %v878, %v546
        %v880 = vadd.f32 %v879, 1e-05
        %v881 = vrsqrt.pop %v880
        %v882 = vmul.f32 %v868, %v881
        %v883 = vmul.f32 %v869, %v881
        %v884 = vmax.f32 %v882, 0.0
        %v885 = vmax.f32 %v883, 0.0
        %v886 = vadd.f32 %v884, %v243
        %v887 = vadd.f32 %v885, %v244
        %v888 = vpack.c.bf16 %v887, %v886
        %v890 = vunpack.c.l.b16 %v888
        %v891 = vunpack.c.h.b16 %v888
        %v892 = vpack.c.b16 %v890, %v890
        %v893 = vpack.c.b16 %v891, %v891
        %896 = vst [vmem:[%s239] sm:$0xf] %v892
        %897 = vst [vmem:[%s239 + $0x4] sm:$0xf] %v893
        %p898 = scmp.lt.s32.totalorder %s17, 1
        %s899 = scalar_select %p898, %s17, 1
        %s900 = smul.addr %s899, 2
        %s901 = smul.addr %s900, 4
        %s902 = scalar_lea.vmem %s5, %s901
        // Predicated region
        $region45: #{content_encoder_forward.5} parent=39 // pred_check
          %p903 = pneg %p145
        $region46: #{content_encoder_forward.5} parent=39 // pred_check_branch
          %905 = sbr.rel (%p903) target = $region48
        $region47: #{content_encoder_forward.5} parent=39 // pred_region
          _
        $region48: #{content_encoder_forward.5} parent=39 // pred_fallthru
          _
      $region40: #{content_encoder_forward.5} parent=5 // pred_fallthru
        _
      %p906 = scmp.le.s32.totalorder 2, %s12
      // Predicated region
      $region49: #{content_encoder_forward.5} parent=5 // pred_check
        %p907 = pneg %p906
      $region50: #{content_encoder_forward.5} parent=5 // pred_check_branch
        %909 = sbr.rel (%p907) target = $region52
      $region51: #{content_encoder_forward.5} parent=5 // pred_region
        %s910 = ssub.s32 %s12, 2
        // Predicated region
        $region53: #{content_encoder_forward.5} parent=51 // pred_check
          %p911 = pneg %p151
        $region54: #{content_encoder_forward.5} parent=51 // pred_check_branch
          %913 = sbr.rel (%p911) target = $region56
        $region55: #{content_encoder_forward.5} parent=51 // pred_region
          %p914 = scmp.lt.s32.totalorder %s18, 1
          %s915 = scalar_select %p914, %s18, 1
          %s916 = smul.addr %s915, 2
          %s917 = smul.addr %s916, 4
          %s918 = scalar_lea.vmem %s5, %s917
        $region56: #{content_encoder_forward.5} parent=51 // pred_fallthru
          _
      $region52: #{content_encoder_forward.5} parent=5 // pred_fallthru
        _
    $region6: #{content_encoder_forward.5} parent=1 // loop_footer
      %s16 = sadd.s32 1, %s12
    $region7: #{content_encoder_forward.5} parent=1 // loop_footer_branch
      %11 = sbr.rel target = $region3
    $region8: #{content_encoder_forward.5} parent=1 // loop_exit
      _
    %919 = vsyncpa [#allocation4], 1
    %s920 = scalar_lea.sflag [#allocation4], 1
    %921 = vsyncpa %s920, 1

// kernel: content_encoder_forward.6
$region0: #{content_encoder_forward.6}
  #allocation0 [shape = 'u32[]', space=smem, size = 0x4, offset = 0x4, fixed_abs, tag = 'smem constant byte address 0x4 - core index']
  #allocation1 [shape = 'u32[144,128]{1,0:T(1,128)}', space=vmem, size = 0x12000, scoped, tag = 'internal scratch']
  #allocation2 [shape = 'f32[18,128]{1,0:T(8,128)}', space=vmem, size = 0x3000, scoped, tag = 'scratch operand']
  %s0 = inlined_call_operand.vmem [shape: bf16[2,16,128], index: 0, kind: input, shape index: {}]
  %s1 = inlined_call_operand.vmem [shape: bf16[384,128], index: 1, kind: input, shape index: {}]
  %s2 = inlined_call_operand.vmem [shape: f32[1,128], index: 2, kind: input, shape index: {}]
  %s3 = inlined_call_operand.vmem [shape: bf16[384,128], index: 3, kind: input, shape index: {}]
  %s4 = inlined_call_operand.vmem [shape: f32[1,128], index: 4, kind: input, shape index: {}]
  %s5 = inlined_call_operand.vmem [shape: bf16[2,8,128], index: 5, kind: output, shape index: {}]
  %s6 = sld [smem:[#allocation0]]
  $region53: #{content_encoder_forward.6} parent=0
    _
  %s8 = ssub.s32 1, %s6
  %s9 = scalar_select 0, %s8, %s6
  loop: start=0, step=1, limit=4
  $region2: #{content_encoder_forward.6} parent=0 // loop_pre_header
    _
  $region3: #{content_encoder_forward.6} parent=0 // loop_header
    %s11 = sphi 0, %s15
    %p12 = scmp.ge.s32.totalorder %s11, 4
    %s21 = sphi 0, %s23
    %s24 = sphi 0, %s21
    %s25 = sphi 0, %s24
    %s41 = sphi 0, %s25
    %s45 = sphi 0, %s45
    %s47 = sphi 0, %s45
    %s48 = sphi 0, %s47
    %s62 = sphi 0, %s48
    %s66 = sphi 0, %s66
    %s68 = sphi 0, %s66
    %s69 = sphi 0, %s68
    %s83 = sphi 0, %s69
    %s87 = sphi 0, %s87
    %s89 = sphi 0, %s87
    %s90 = sphi 0, %s89
    %s104 = sphi 0, %s90
    %s108 = sphi 0, %s108
    %s110 = sphi 0, %s108
    %s111 = sphi 0, %s110
    %s125 = sphi 0, %s111
    %s131 = sphi 0, %s133
    %s134 = sphi 0, %s131
    %s135 = sphi 0, %s134
    %s151 = sphi 0, %s135
  $region4: #{content_encoder_forward.6} parent=0 // loop_header_branch
    %14 = sbr.rel (%p12) target = $region8
  $region5: #{content_encoder_forward.6} parent=0 // loop_body
    %s16 = ssub.s32 %s11, 1
    %s17 = ssub.s32 %s11, 2
    %s18 = sadd.s32 %s11, 1
    %s19 = ssub.s32 %s11, %s18
    %p20 = scmp.eq.s32.totalorder %s19, 0
    %s22 = sadd.s32 %s21, 1
    %s23 = scalar_select %p20, %s21, %s22
    %p26 = pneg %p20
    %p27 = scmp.eq.s32.totalorder %s11, 1
    %p28 = por %p26, %p27
    %p29 = scmp.ne.s32.totalorder %s21, %s24
    %p30 = scmp.eq.s32.totalorder %s11, 0
    %p31 = por %p29, %p30
    %p32 = scmp.ne.s32.totalorder %s21, %s24
    %p33 = scmp.eq.s32.totalorder %s16, 1
    %p34 = por %p32, %p33
    %p35 = scmp.ne.s32.totalorder %s24, %s25
    %p36 = scmp.eq.s32.totalorder %s16, 0
    %p37 = por %p35, %p36
    %p38 = scmp.ne.s32.totalorder %s24, %s25
    %p39 = scmp.eq.s32.totalorder %s17, 1
    %p40 = por %p38, %p39
    %p42 = scmp.ne.s32.totalorder %s25, %s41
    %p43 = scmp.eq.s32.totalorder %s17, 0
    %p44 = por %p42, %p43
    %s46 = sadd.s32 %s45, 1
    %p49 = scmp.eq.s32.totalorder %s11, 1
    %p50 = scmp.ne.s32.totalorder %s45, %s47
    %p51 = scmp.eq.s32.totalorder %s11, 0
    %p52 = por %p50, %p51
    %p53 = scmp.ne.s32.totalorder %s45, %s47
    %p54 = scmp.eq.s32.totalorder %s16, 1
    %p55 = por %p53, %p54
    %p56 = scmp.ne.s32.totalorder %s47, %s48
    %p57 = scmp.eq.s32.totalorder %s16, 0
    %p58 = por %p56, %p57
    %p59 = scmp.ne.s32.totalorder %s47, %s48
    %p60 = scmp.eq.s32.totalorder %s17, 1
    %p61 = por %p59, %p60
    %p63 = scmp.ne.s32.totalorder %s48, %s62
    %p64 = scmp.eq.s32.totalorder %s17, 0
    %p65 = por %p63, %p64
    %s67 = sadd.s32 %s66, 1
    %p70 = scmp.eq.s32.totalorder %s11, 1
    %p71 = scmp.ne.s32.totalorder %s66, %s68
    %p72 = scmp.eq.s32.totalorder %s11, 0
    %p73 = por %p71, %p72
    %p74 = scmp.ne.s32.totalorder %s66, %s68
    %p75 = scmp.eq.s32.totalorder %s16, 1
    %p76 = por %p74, %p75
    %p77 = scmp.ne.s32.totalorder %s68, %s69
    %p78 = scmp.eq.s32.totalorder %s16, 0
    %p79 = por %p77, %p78
    %p80 = scmp.ne.s32.totalorder %s68, %s69
    %p81 = scmp.eq.s32.totalorder %s17, 1
    %p82 = por %p80, %p81
    %p84 = scmp.ne.s32.totalorder %s69, %s83
    %p85 = scmp.eq.s32.totalorder %s17, 0
    %p86 = por %p84, %p85
    %s88 = sadd.s32 %s87, 1
    %p91 = scmp.eq.s32.totalorder %s11, 1
    %p92 = scmp.ne.s32.totalorder %s87, %s89
    %p93 = scmp.eq.s32.totalorder %s11, 0
    %p94 = por %p92, %p93
    %p95 = scmp.ne.s32.totalorder %s87, %s89
    %p96 = scmp.eq.s32.totalorder %s16, 1
    %p97 = por %p95, %p96
    %p98 = scmp.ne.s32.totalorder %s89, %s90
    %p99 = scmp.eq.s32.totalorder %s16, 0
    %p100 = por %p98, %p99
    %p101 = scmp.ne.s32.totalorder %s89, %s90
    %p102 = scmp.eq.s32.totalorder %s17, 1
    %p103 = por %p101, %p102
    %p105 = scmp.ne.s32.totalorder %s90, %s104
    %p106 = scmp.eq.s32.totalorder %s17, 0
    %p107 = por %p105, %p106
    %s109 = sadd.s32 %s108, 1
    %p112 = scmp.eq.s32.totalorder %s11, 1
    %p113 = scmp.ne.s32.totalorder %s108, %s110
    %p114 = scmp.eq.s32.totalorder %s11, 0
    %p115 = por %p113, %p114
    %p116 = scmp.ne.s32.totalorder %s108, %s110
    %p117 = scmp.eq.s32.totalorder %s16, 1
    %p118 = por %p116, %p117
    %p119 = scmp.ne.s32.totalorder %s110, %s111
    %p120 = scmp.eq.s32.totalorder %s16, 0
    %p121 = por %p119, %p120
    %p122 = scmp.ne.s32.totalorder %s110, %s111
    %p123 = scmp.eq.s32.totalorder %s17, 1
    %p124 = por %p122, %p123
    %p126 = scmp.ne.s32.totalorder %s111, %s125
    %p127 = scmp.eq.s32.totalorder %s17, 0
    %p128 = por %p126, %p127
    %s129 = ssub.s32 %s11, %s18
    %p130 = scmp.eq.s32.totalorder %s129, 0
    %s132 = sadd.s32 %s131, 1
    %s133 = scalar_select %p130, %s131, %s132
    %p136 = pneg %p130
    %p137 = scmp.eq.s32.totalorder %s11, 1
    %p138 = por %p136, %p137
    %p139 = scmp.ne.s32.totalorder %s131, %s134
    %p140 = scmp.eq.s32.totalorder %s11, 0
    %p141 = por %p139, %p140
    %p142 = scmp.ne.s32.totalorder %s131, %s134
    %p143 = scmp.eq.s32.totalorder %s16, 1
    %p144 = por %p142, %p143
    %p145 = scmp.ne.s32.totalorder %s134, %s135
    %p146 = scmp.eq.s32.totalorder %s16, 0
    %p147 = por %p145, %p146
    %p148 = scmp.ne.s32.totalorder %s134, %s135
    %p149 = scmp.eq.s32.totalorder %s17, 1
    %p150 = por %p148, %p149
    %p152 = scmp.ne.s32.totalorder %s135, %s151
    %p153 = scmp.eq.s32.totalorder %s17, 0
    %p154 = por %p152, %p153
    %p155 = scmp.le.s32.totalorder 1, %s11
    %p156 = scmp.lt.s32.totalorder %s11, 3
    %p157 = pnand %p155, %p156
    %p158 = pneg %p157
    // Predicated region
    $region9: #{content_encoder_forward.6} parent=5 // pred_check
      _
    $region10: #{content_encoder_forward.6} parent=5 // pred_check_branch
      %160 = sbr.rel (%p157) target = $region12
    $region11: #{content_encoder_forward.6} parent=5 // pred_region
      %s161 = ssub.s32 %s11, 1
      // Predicated region
      $region13: #{content_encoder_forward.6} parent=11 // pred_check
        %p162 = pneg %p58
      $region14: #{content_encoder_forward.6} parent=11 // pred_check_branch
        %164 = sbr.rel (%p162) target = $region16
      $region15: #{content_encoder_forward.6} parent=11 // pred_region
        _
      $region16: #{content_encoder_forward.6} parent=11 // pred_fallthru
        _
      // Predicated region
      $region17: #{content_encoder_forward.6} parent=11 // pred_check
        %p165 = pneg %p79
      $region18: #{content_encoder_forward.6} parent=11 // pred_check_branch
        %167 = sbr.rel (%p165) target = $region20
      $region19: #{content_encoder_forward.6} parent=11 // pred_region
        _
      $region20: #{content_encoder_forward.6} parent=11 // pred_fallthru
        _
      // Predicated region
      $region21: #{content_encoder_forward.6} parent=11 // pred_check
        %p168 = pneg %p100
      $region22: #{content_encoder_forward.6} parent=11 // pred_check_branch
        %170 = sbr.rel (%p168) target = $region24
      $region23: #{content_encoder_forward.6} parent=11 // pred_region
        _
      $region24: #{content_encoder_forward.6} parent=11 // pred_fallthru
        _
      // Predicated region
      $region25: #{content_encoder_forward.6} parent=11 // pred_check
        %p171 = pneg %p121
      $region26: #{content_encoder_forward.6} parent=11 // pred_check_branch
        %173 = sbr.rel (%p171) target = $region28
      $region27: #{content_encoder_forward.6} parent=11 // pred_region
        _
      $region28: #{content_encoder_forward.6} parent=11 // pred_fallthru
        _
    $region12: #{content_encoder_forward.6} parent=5 // pred_fallthru
      _
    %p174 = scmp.lt.s32.totalorder %s11, 2
    // Predicated region
    $region29: #{content_encoder_forward.6} parent=5 // pred_check
      %p175 = pneg %p174
    $region30: #{content_encoder_forward.6} parent=5 // pred_check_branch
      %177 = sbr.rel (%p175) target = $region32
    $region31: #{content_encoder_forward.6} parent=5 // pred_region
      // Predicated region
      $region33: #{content_encoder_forward.6} parent=31 // pred_check
        %p178 = pneg %p31
      $region34: #{content_encoder_forward.6} parent=31 // pred_check_branch
        %180 = sbr.rel (%p178) target = $region36
      $region35: #{content_encoder_forward.6} parent=31 // pred_region
        %p181 = scmp.lt.s32.totalorder %s11, 1
        %s182 = scalar_select %p181, %s11, 1
        %s183 = smul.addr %s182, 2
        %s184 = smul.addr %s183, 4
        %s185 = scalar_lea.vmem %s0, %s184
      $region36: #{content_encoder_forward.6} parent=31 // pred_fallthru
        _
    $region32: #{content_encoder_forward.6} parent=5 // pred_fallthru
      _
    %p186 = scmp.le.s32.totalorder 1, %s11
    %p187 = scmp.lt.s32.totalorder %s11, 3
    %p188 = pnand %p186, %p187
    %p189 = pneg %p188
    // Predicated region
    $region37: #{content_encoder_forward.6} parent=5 // pred_check
      _
    $region38: #{content_encoder_forward.6} parent=5 // pred_check_branch
      %191 = sbr.rel (%p188) target = $region40
    $region39: #{content_encoder_forward.6} parent=5 // pred_region
      %s192 = ssub.s32 %s11, 1
      %p193 = scmp.lt.s32.totalorder %s16, 1
      %s194 = scalar_select %p193, %s16, 1
      %s195 = smul.addr %s194, 2
      %s196 = smul.addr %s195, 4
      %s197 = scalar_lea.vmem %s0, %s196
      %p198 = pneg %p37
      %p199 = pneg %p34
      %p200 = pneg %p58
      %p201 = pneg %p55
      %p202 = pneg %p79
      %p203 = pneg %p76
      %p204 = pneg %p100
      %p205 = pneg %p97
      %p206 = pneg %p121
      %p207 = pneg %p118
      %p208 = pneg %p147
      %p209 = pneg %p144
      %p210 = scmp.lt.s32.totalorder %s16, 1
      %s211 = scalar_select %p210, %s16, 1
      %s212 = smul.addr %s211, 4
      %s213 = scalar_lea.vmem %s5, %s212
      %p214 = scmp.lt.s32.totalorder %s16, 1
      %s215 = scalar_select %p214, %s16, 1
      %s216 = smul.addr %s215, 2
      %s217 = smul.addr %s216, 4
      %s218 = scalar_lea.vmem %s0, %s217
      %p219 = scmp.lt.s32.totalorder %s16, 1
      %s220 = scalar_select %p219, %s16, 1
      %s221 = smul.addr %s220, 4
      %s222 = scalar_lea.vmem %s5, %s221
      %v224 = vld [vmem:[%s218] sm:$0xf]
      %v225 = vld [vmem:[%s218 + $0x4] sm:$0xf]
      %v226 = vunpack.c.l.bf16 %v224
      %v227 = vunpack.c.l.bf16 %v225
      %228 = vst [vmem:[#allocation2 + $0x1] sm:$0xff] %v226
      %229 = vst [vmem:[#allocation2 + $0x9] sm:$0xff] %v227
      %230 = vst [vmem:[#allocation2 - $0x1] sm:$0x2] %v226
      %231 = vst [vmem:[#allocation2 + $0xb] sm:$0x40] %v227
      %v232 = vld [vmem:[#allocation2] sm:$0xff]
      %v233 = vld [vmem:[#allocation2 + $0x8] sm:$0xff]
      %v234 = vpack.c.bf16 %v233, %v232
      %v235 = vld [vmem:[#allocation2 + $0x1] sm:$0xff]
      %v236 = vld [vmem:[#allocation2 + $0x9] sm:$0xff]
      %v237 = vpack.c.bf16 %v236, %v235
      %v238 = vld [vmem:[#allocation2 + $0x2] sm:$0xff]
      %v239 = vld [vmem:[#allocation2 + $0xa] sm:$0xff]
      %v240 = vpack.c.bf16 %v239, %v238
      %v241 = vld [vmem:[%s1] sm:$0xf]
      %v242 = vld [vmem:[%s1 + $0x4] sm:$0xf]
      %v243 = vld [vmem:[%s1 + $0x8] sm:$0xf]
      %v244 = vld [vmem:[%s1 + $0xc] sm:$0xf]
      %v245 = vld [vmem:[%s1 + $0x10] sm:$0xf]
      %v246 = vld [vmem:[%s1 + $0x14] sm:$0xf]
      %v247 = vld [vmem:[%s1 + $0x18] sm:$0xf]
      %v248 = vld [vmem:[%s1 + $0x1c] sm:$0xf]
      %v249 = vld [vmem:[%s1 + $0x20] sm:$0xf]
      %v250 = vld [vmem:[%s1 + $0x24] sm:$0xf]
      %v251 = vld [vmem:[%s1 + $0x28] sm:$0xf]
      %v252 = vld [vmem:[%s1 + $0x2c] sm:$0xf]
      %v253 = vld [vmem:[%s1 + $0x30] sm:$0xf]
      %v254 = vld [vmem:[%s1 + $0x34] sm:$0xf]
      %v255 = vld [vmem:[%s1 + $0x38] sm:$0xf]
      %v256 = vld [vmem:[%s1 + $0x3c] sm:$0xf]
      %v257 = vld [vmem:[%s1 + $0x40] sm:$0xf]
      %v258 = vld [vmem:[%s1 + $0x44] sm:$0xf]
      %v259 = vld [vmem:[%s1 + $0x48] sm:$0xf]
      %v260 = vld [vmem:[%s1 + $0x4c] sm:$0xf]
      %v261 = vld [vmem:[%s1 + $0x50] sm:$0xf]
      %v262 = vld [vmem:[%s1 + $0x54] sm:$0xf]
      %v263 = vld [vmem:[%s1 + $0x58] sm:$0xf]
      %v264 = vld [vmem:[%s1 + $0x5c] sm:$0xf]
      %v265 = vld [vmem:[%s1 + $0x60] sm:$0xf]
      %v266 = vld [vmem:[%s1 + $0x64] sm:$0xf]
      %v267 = vld [vmem:[%s1 + $0x68] sm:$0xf]
      %v268 = vld [vmem:[%s1 + $0x6c] sm:$0xf]
      %v269 = vld [vmem:[%s1 + $0x70] sm:$0xf]
      %v270 = vld [vmem:[%s1 + $0x74] sm:$0xf]
      %v271 = vld [vmem:[%s1 + $0x78] sm:$0xf]
      %v272 = vld [vmem:[%s1 + $0x7c] sm:$0xf]
      %v273 = vld [vmem:[%s1 + $0x80] sm:$0xf]
      %v274 = vld [vmem:[%s1 + $0x84] sm:$0xf]
      %v275 = vld [vmem:[%s1 + $0x88] sm:$0xf]
      %v276 = vld [vmem:[%s1 + $0x8c] sm:$0xf]
      %v277 = vld [vmem:[%s1 + $0x90] sm:$0xf]
      %v278 = vld [vmem:[%s1 + $0x94] sm:$0xf]
      %v279 = vld [vmem:[%s1 + $0x98] sm:$0xf]
      %v280 = vld [vmem:[%s1 + $0x9c] sm:$0xf]
      %v281 = vld [vmem:[%s1 + $0xa0] sm:$0xf]
      %v282 = vld [vmem:[%s1 + $0xa4] sm:$0xf]
      %v283 = vld [vmem:[%s1 + $0xa8] sm:$0xf]
      %v284 = vld [vmem:[%s1 + $0xac] sm:$0xf]
      %v285 = vld [vmem:[%s1 + $0xb0] sm:$0xf]
      %v286 = vld [vmem:[%s1 + $0xb4] sm:$0xf]
      %v287 = vld [vmem:[%s1 + $0xb8] sm:$0xf]
      %v288 = vld [vmem:[%s1 + $0xbc] sm:$0xf]
      %v289 = vld [vmem:[%s2] sm:$0x1]
      %v291 = vlaneseq
      %v292 = vshrl.u32 %v291, 7
      %v293 = vsub.s32 0, %v292
      %v294 = vrot.slane %v289, %v293
      %v344 = vunpack.c.l.b16 %v241
      %v345 = vunpack.c.l.b16 %v242
      %v346 = vunpack.c.l.b16 %v243
      %v347 = vunpack.c.l.b16 %v244
      %v348 = vunpack.c.l.b16 %v245
      %v349 = vunpack.c.l.b16 %v246
      %v350 = vunpack.c.l.b16 %v247
      %v351 = vunpack.c.l.b16 %v248
      %v352 = vunpack.c.l.b16 %v249
      %v353 = vunpack.c.l.b16 %v250
      %v354 = vunpack.c.l.b16 %v251
      %v355 = vunpack.c.l.b16 %v252
      %v356 = vunpack.c.l.b16 %v253
      %v357 = vunpack.c.l.b16 %v254
      %v358 = vunpack.c.l.b16 %v255
      %v359 = vunpack.c.l.b16 %v256
      %v360 = vunpack.c.l.b16 %v257
      %v361 = vunpack.c.l.b16 %v258
      %v362 = vunpack.c.l.b16 %v259
      %v363 = vunpack.c.l.b16 %v260
      %v364 = vunpack.c.l.b16 %v261
      %v365 = vunpack.c.l.b16 %v262
      %v366 = vunpack.c.l.b16 %v263
      %v367 = vunpack.c.l.b16 %v264
      %v368 = vunpack.c.l.b16 %v265
      %v369 = vunpack.c.l.b16 %v266
      %v370 = vunpack.c.l.b16 %v267
      %v371 = vunpack.c.l.b16 %v268
      %v372 = vunpack.c.l.b16 %v269
      %v373 = vunpack.c.l.b16 %v270
      %v374 = vunpack.c.l.b16 %v271
      %v375 = vunpack.c.l.b16 %v272
      %v376 = vunpack.c.l.b16 %v273
      %v377 = vunpack.c.l.b16 %v274
      %v378 = vunpack.c.l.b16 %v275
      %v379 = vunpack.c.l.b16 %v276
      %v380 = vunpack.c.l.b16 %v277
      %v381 = vunpack.c.l.b16 %v278
      %v382 = vunpack.c.l.b16 %v279
      %v383 = vunpack.c.l.b16 %v280
      %v384 = vunpack.c.l.b16 %v281
      %v385 = vunpack.c.l.b16 %v282
      %v386 = vunpack.c.l.b16 %v283
      %v387 = vunpack.c.l.b16 %v284
      %v388 = vunpack.c.l.b16 %v285
      %v389 = vunpack.c.l.b16 %v286
      %v390 = vunpack.c.l.b16 %v287
      %v391 = vunpack.c.l.b16 %v288
      %v392 = vpack.c.b16 %v345, %v344
      %v393 = vpack.c.b16 %v347, %v346
      %v394 = vpack.c.b16 %v349, %v348
      %v395 = vpack.c.b16 %v351, %v350
      %v396 = vpack.c.b16 %v353, %v352
      %v397 = vpack.c.b16 %v355, %v354
      %v398 = vpack.c.b16 %v357, %v356
      %v399 = vpack.c.b16 %v359, %v358
      %v400 = vpack.c.b16 %v361, %v360
      %v401 = vpack.c.b16 %v363, %v362
      %v402 = vpack.c.b16 %v365, %v364
      %v403 = vpack.c.b16 %v367, %v366
      %v404 = vpack.c.b16 %v369, %v368
      %v405 = vpack.c.b16 %v371, %v370
      %v406 = vpack.c.b16 %v373, %v372
      %v407 = vpack.c.b16 %v375, %v374
      %v408 = vpack.c.b16 %v377, %v376
      %v409 = vpack.c.b16 %v379, %v378
      %v410 = vpack.c.b16 %v381, %v380
      %v411 = vpack.c.b16 %v383, %v382
      %v412 = vpack.c.b16 %v385, %v384
      %v413 = vpack.c.b16 %v387, %v386
      %v414 = vpack.c.b16 %v389, %v388
      %v415 = vpack.c.b16 %v391, %v390
      %440 = vmatprep.subr.bf16.mxu0 0
      %441 = vmatpush1.bf16.msra.mxu0 %v399
      %442 = vmatprep.subr.bf16.mxu0 0
      %443 = vmatpush1.bf16.msra.mxu0 %v398
      %444 = vmatprep.subr.bf16.mxu0 0
      %445 = vmatpush1.bf16.msra.mxu0 %v397
      %446 = vmatprep.subr.bf16.mxu0 0
      %447 = vmatpush1.bf16.msra.mxu0 %v396
      %448 = vmatprep.subr.bf16.mxu0 0
      %449 = vmatpush1.bf16.msra.mxu0 %v395
      %450 = vmatprep.subr.bf16.mxu0 0
      %451 = vmatpush1.bf16.msra.mxu0 %v394
      %452 = vmatprep.subr.bf16.mxu0 0
      %453 = vmatpush1.bf16.msra.mxu0 %v393
      %454 = vmatprep.subr.bf16.mxu0 0
      %455 = vmatpush1.bf16.msra.mxu0 %v392
      %456 = vmatprep.subr.bf16.mxu0 0
      %457 = vmatpush2.bf16.msra.mxu0 %v407
      %458 = vmatprep.subr.bf16.mxu0 0
      %459 = vmatpush2.bf16.msra.mxu0 %v406
      %460 = vmatprep.subr.bf16.mxu0 0
      %461 = vmatpush2.bf16.msra.mxu0 %v405
      %462 = vmatprep.subr.bf16.mxu0 0
      %463 = vmatpush2.bf16.msra.mxu0 %v404
      %464 = vmatprep.subr.bf16.mxu0 0
      %465 = vmatpush2.bf16.msra.mxu0 %v403
      %466 = vmatprep.subr.bf16.mxu0 0
      %467 = vmatpush2.bf16.msra.mxu0 %v402
      %468 = vmatprep.subr.bf16.mxu0 0
      %469 = vmatpush2.bf16.msra.mxu0 %v401
      %470 = vmatprep.subr.bf16.mxu0 0
      %471 = vmatpush2.bf16.msra.mxu0 %v400
      %472 = vmatprep.mubr.bf16.mxu0 %v237
      %473 = vmatmul.mubr.bf16.gmra.mxu0 %v234
      %v474 = vpop.f32.mrf.mxu0
      %v475 = vadd.f32 %v294, %v474
      %v476 = vpop.f32.mrf.mxu0
      %v477 = vpop.f32.mrf.mxu0
      %v478 = vadd.f32 %v294, %v477
      %v479 = vpop.f32.mrf.mxu0
      %480 = vdwg.mxu0
      %481 = vmatprep.subr.bf16.mxu0 0
      %482 = vmatpush1.bf16.msra.mxu0 %v415
      %483 = vmatprep.subr.bf16.mxu0 0
      %484 = vmatpush1.bf16.msra.mxu0 %v414
      %485 = vmatprep.subr.bf16.mxu0 0
      %486 = vmatpush1.bf16.msra.mxu0 %v413
      %487 = vmatprep.subr.bf16.mxu0 0
      %488 = vmatpush1.bf16.msra.mxu0 %v412
      %489 = vmatprep.subr.bf16.mxu0 0
      %490 = vmatpush1.bf16.msra.mxu0 %v411
      %491 = vmatprep.subr.bf16.mxu0 0
      %492 = vmatpush1.bf16.msra.mxu0 %v410
      %493 = vmatprep.subr.bf16.mxu0 0
      %494 = vmatpush1.bf16.msra.mxu0 %v409
      %495 = vmatprep.subr.bf16.mxu0 0
      %496 = vmatpush1.bf16.msra.mxu0 %v408
      %497 = vmatprep.subr.bf16.mxu0 0
      %498 = vmatpush2.bf16.msra.mxu0 0
      %499 = vmatprep.subr.bf16.mxu0 0
      %500 = vmatpush2.bf16.msra.mxu0 0
      %501 = vmatprep.subr.bf16.mxu0 0
      %502 = vmatpush2.bf16.msra.mxu0 0
      %503 = vmatprep.subr.bf16.mxu0 0
      %504 = vmatpush2.bf16.msra.mxu0 0
      %505 = vmatprep.subr.bf16.mxu0 0
      %506 = vmatpush2.bf16.msra.mxu0 0
      %507 = vmatprep.subr.bf16.mxu0 0
      %508 = vmatpush2.bf16.msra.mxu0 0
      %509 = vmatprep.subr.bf16.mxu0 0
      %510 = vmatpush2.bf16.msra.mxu0 0
      %511 = vmatprep.subr.bf16.mxu0 0
      %512 = vmatpush2.bf16.msra.mxu0 0
      %513 = vmatprep.mubr.bf16.mxu0 0
      %514 = vmatmul.mubr.bf16.gmra.mxu0 %v240
      %v515 = vpop.f32.mrf.mxu0
      %v516 = vadd.f32 %v475, %v515
      %v517 = vpop.f32.mrf.mxu0
      %v518 = vpop.f32.mrf.mxu0
      %v519 = vadd.f32 %v478, %v518
      %v520 = vpop.f32.mrf.mxu0
      %521 = vdwg.mxu0
      %v522 = vadd.f32 %v516, %v519
      %v523 = vrot.slane %v522, 4
      %v524 = vadd.f32 %v522, %v523
      %v525 = vrot.slane %v524, 2
      %v526 = vadd.f32 %v524, %v525
      %v527 = vrot.slane %v526, 1
      %v528 = vadd.f32 %v526, %v527
      %v529 = vrcp.pop 16.0
      %v530 = vmul.f32 %v528, %v529
      %v531 = vsub.f32 %v516, %v530
      %v532 = vsub.f32 %v519, %v530
      %v533 = vmul.f32 %v531, %v531
      %v534 = vmul.f32 %v532, %v532
      %v535 = vadd.f32 %v533, %v534
      %v536 = vrot.slane %v535, 4
      %v537 = vadd.f32 %v535, %v536
      %v538 = vrot.slane %v537, 2
      %v539 = vadd.f32 %v537, %v538
      %v540 = vrot.slane %v539, 1
      %v541 = vadd.f32 %v539, %v540
      %v542 = vmul.f32 %v541, %v529
      %v543 = vadd.f32 %v542, 1e-05
      %v544 = vrsqrt.pop %v543
      %v545 = vmul.f32 %v531, %v544
      %v546 = vmul.f32 %v532, %v544
      %v547 = vmax.f32 %v545, 0.0
      %v548 = vmax.f32 %v546, 0.0
      %s549 = scalar_lea.vmem [#allocation2], 1
      %v550 = vld [vmem:[%s549] ss:$2 sm:$0x7f]
      %s551 = scalar_lea.vmem [#allocation2], 2
      %v552 = vld [vmem:[%s551] ss:$2 sm:$0x7f]
      %v553 = vadd.f32 %v550, %v552
      %v554 = vmul.f32 %v553, 0.5
      %v555 = vld [vmem:[#allocation2 + $0xf] sm:$0x1]
      %v556 = vld [vmem:[#allocation2 + $0x10] sm:$0x1]
      %v557 = vadd.f32 %v555, %v556
      %v558 = vmul.f32 %v557, 0.5
      %559 = vst [vmem:[#allocation2 + $0x1] sm:$0xff] %v547
      %560 = vst [vmem:[#allocation2 + $0x9] sm:$0xff] %v548
      %561 = vst [vmem:[#allocation2 - $0x1] sm:$0x2] %v547
      %562 = vst [vmem:[#allocation2 + $0xb] sm:$0x40] %v548
      %v563 = vld [vmem:[#allocation2] ss:$2 sm:$0xff]
      %v564 = vpack.c.bf16 %v563, %v563
      %v565 = vld [vmem:[%s549] ss:$2 sm:$0xff]
      %v566 = vpack.c.bf16 %v565, %v565
      %s567 = scalar_lea.vmem [#allocation2], 2
      %v568 = vld [vmem:[%s567] ss:$2 sm:$0xff]
      %v569 = vpack.c.bf16 %v568, %v568
      %v570 = vld [vmem:[%s3] sm:$0xf]
      %v571 = vld [vmem:[%s3 + $0x4] sm:$0xf]
      %v572 = vld [vmem:[%s3 + $0x8] sm:$0xf]
      %v573 = vld [vmem:[%s3 + $0xc] sm:$0xf]
      %v574 = vld [vmem:[%s3 + $0x10] sm:$0xf]
      %v575 = vld [vmem:[%s3 + $0x14] sm:$0xf]
      %v576 = vld [vmem:[%s3 + $0x18] sm:$0xf]
      %v577 = vld [vmem:[%s3 + $0x1c] sm:$0xf]
      %v578 = vld [vmem:[%s3 + $0x20] sm:$0xf]
      %v579 = vld [vmem:[%s3 + $0x24] sm:$0xf]
      %v580 = vld [vmem:[%s3 + $0x28] sm:$0xf]
      %v581 = vld [vmem:[%s3 + $0x2c] sm:$0xf]
      %v582 = vld [vmem:[%s3 + $0x30] sm:$0xf]
      %v583 = vld [vmem:[%s3 + $0x34] sm:$0xf]
      %v584 = vld [vmem:[%s3 + $0x38] sm:$0xf]
      %v585 = vld [vmem:[%s3 + $0x3c] sm:$0xf]
      %v586 = vld [vmem:[%s3 + $0x40] sm:$0xf]
      %v587 = vld [vmem:[%s3 + $0x44] sm:$0xf]
      %v588 = vld [vmem:[%s3 + $0x48] sm:$0xf]
      %v589 = vld [vmem:[%s3 + $0x4c] sm:$0xf]
      %v590 = vld [vmem:[%s3 + $0x50] sm:$0xf]
      %v591 = vld [vmem:[%s3 + $0x54] sm:$0xf]
      %v592 = vld [vmem:[%s3 + $0x58] sm:$0xf]
      %v593 = vld [vmem:[%s3 + $0x5c] sm:$0xf]
      %v594 = vld [vmem:[%s3 + $0x60] sm:$0xf]
      %v595 = vld [vmem:[%s3 + $0x64] sm:$0xf]
      %v596 = vld [vmem:[%s3 + $0x68] sm:$0xf]
      %v597 = vld [vmem:[%s3 + $0x6c] sm:$0xf]
      %v598 = vld [vmem:[%s3 + $0x70] sm:$0xf]
      %v599 = vld [vmem:[%s3 + $0x74] sm:$0xf]
      %v600 = vld [vmem:[%s3 + $0x78] sm:$0xf]
      %v601 = vld [vmem:[%s3 + $0x7c] sm:$0xf]
      %v602 = vld [vmem:[%s3 + $0x80] sm:$0xf]
      %v603 = vld [vmem:[%s3 + $0x84] sm:$0xf]
      %v604 = vld [vmem:[%s3 + $0x88] sm:$0xf]
      %v605 = vld [vmem:[%s3 + $0x8c] sm:$0xf]
      %v606 = vld [vmem:[%s3 + $0x90] sm:$0xf]
      %v607 = vld [vmem:[%s3 + $0x94] sm:$0xf]
      %v608 = vld [vmem:[%s3 + $0x98] sm:$0xf]
      %v609 = vld [vmem:[%s3 + $0x9c] sm:$0xf]
      %v610 = vld [vmem:[%s3 + $0xa0] sm:$0xf]
      %v611 = vld [vmem:[%s3 + $0xa4] sm:$0xf]
      %v612 = vld [vmem:[%s3 + $0xa8] sm:$0xf]
      %v613 = vld [vmem:[%s3 + $0xac] sm:$0xf]
      %v614 = vld [vmem:[%s3 + $0xb0] sm:$0xf]
      %v615 = vld [vmem:[%s3 + $0xb4] sm:$0xf]
      %v616 = vld [vmem:[%s3 + $0xb8] sm:$0xf]
      %v617 = vld [vmem:[%s3 + $0xbc] sm:$0xf]
      %v618 = vld [vmem:[%s4] sm:$0x1]
      %v620 = vlaneseq
      %v621 = vshrl.u32 %v620, 7
      %v622 = vsub.s32 0, %v621
      %v623 = vrot.slane %v618, %v622
      %v673 = vunpack.c.l.b16 %v570
      %v674 = vunpack.c.l.b16 %v571
      %v675 = vunpack.c.l.b16 %v572
      %v676 = vunpack.c.l.b16 %v573
      %v677 = vunpack.c.l.b16 %v574
      %v678 = vunpack.c.l.b16 %v575
      %v679 = vunpack.c.l.b16 %v576
      %v680 = vunpack.c.l.b16 %v577
      %v681 = vunpack.c.l.b16 %v578
      %v682 = vunpack.c.l.b16 %v579
      %v683 = vunpack.c.l.b16 %v580
      %v684 = vunpack.c.l.b16 %v581
      %v685 = vunpack.c.l.b16 %v582
      %v686 = vunpack.c.l.b16 %v583
      %v687 = vunpack.c.l.b16 %v584
      %v688 = vunpack.c.l.b16 %v585
      %v689 = vunpack.c.l.b16 %v586
      %v690 = vunpack.c.l.b16 %v587
      %v691 = vunpack.c.l.b16 %v588
      %v692 = vunpack.c.l.b16 %v589
      %v693 = vunpack.c.l.b16 %v590
      %v694 = vunpack.c.l.b16 %v591
      %v695 = vunpack.c.l.b16 %v592
      %v696 = vunpack.c.l.b16 %v593
      %v697 = vunpack.c.l.b16 %v594
      %v698 = vunpack.c.l.b16 %v595
      %v699 = vunpack.c.l.b16 %v596
      %v700 = vunpack.c.l.b16 %v597
      %v701 = vunpack.c.l.b16 %v598
      %v702 = vunpack.c.l.b16 %v599
      %v703 = vunpack.c.l.b16 %v600
      %v704 = vunpack.c.l.b16 %v601
      %v705 = vunpack.c.l.b16 %v602
      %v706 = vunpack.c.l.b16 %v603
      %v707 = vunpack.c.l.b16 %v604
      %v708 = vunpack.c.l.b16 %v605
      %v709 = vunpack.c.l.b16 %v606
      %v710 = vunpack.c.l.b16 %v607
      %v711 = vunpack.c.l.b16 %v608
      %v712 = vunpack.c.l.b16 %v609
      %v713 = vunpack.c.l.b16 %v610
      %v714 = vunpack.c.l.b16 %v611
      %v715 = vunpack.c.l.b16 %v612
      %v716 = vunpack.c.l.b16 %v613
      %v717 = vunpack.c.l.b16 %v614
      %v718 = vunpack.c.l.b16 %v615
      %v719 = vunpack.c.l.b16 %v616
      %v720 = vunpack.c.l.b16 %v617
      %v721 = vpack.c.b16 %v674, %v673
      %v722 = vpack.c.b16 %v676, %v675
      %v723 = vpack.c.b16 %v678, %v677
      %v724 = vpack.c.b16 %v680, %v679
      %v725 = vpack.c.b16 %v682, %v681
      %v726 = vpack.c.b16 %v684, %v683
      %v727 = vpack.c.b16 %v686, %v685
      %v728 = vpack.c.b16 %v688, %v687
      %v729 = vpack.c.b16 %v690, %v689
      %v730 = vpack.c.b16 %v692, %v691
      %v731 = vpack.c.b16 %v694, %v693
      %v732 = vpack.c.b16 %v696, %v695
      %v733 = vpack.c.b16 %v698, %v697
      %v734 = vpack.c.b16 %v700, %v699
      %v735 = vpack.c.b16 %v702, %v701
      %v736 = vpack.c.b16 %v704, %v703
      %v737 = vpack.c.b16 %v706, %v705
      %v738 = vpack.c.b16 %v708, %v707
      %v739 = vpack.c.b16 %v710, %v709
      %v740 = vpack.c.b16 %v712, %v711
      %v741 = vpack.c.b16 %v714, %v713
      %v742 = vpack.c.b16 %v716, %v715
      %v743 = vpack.c.b16 %v718, %v717
      %v744 = vpack.c.b16 %v720, %v719
      %769 = vmatprep.subr.bf16.mxu0 0
      %770 = vmatpush1.bf16.msra.mxu0 %v728
      %771 = vmatprep.subr.bf16.mxu0 0
      %772 = vmatpush1.bf16.msra.mxu0 %v727
      %773 = vmatprep.subr.bf16.mxu0 0
      %774 = vmatpush1.bf16.msra.mxu0 %v726
      %775 = vmatprep.subr.bf16.mxu0 0
      %776 = vmatpush1.bf16.msra.mxu0 %v725
      %777 = vmatprep.subr.bf16.mxu0 0
      %778 = vmatpush1.bf16.msra.mxu0 %v724
      %779 = vmatprep.subr.bf16.mxu0 0
      %780 = vmatpush1.bf16.msra.mxu0 %v723
      %781 = vmatprep.subr.bf16.mxu0 0
      %782 = vmatpush1.bf16.msra.mxu0 %v722
      %783 = vmatprep.subr.bf16.mxu0 0
      %784 = vmatpush1.bf16.msra.mxu0 %v721
      %785 = vmatprep.subr.bf16.mxu0 0
      %786 = vmatpush2.bf16.msra.mxu0 %v736
      %787 = vmatprep.subr.bf16.mxu0 0
      %788 = vmatpush2.bf16.msra.mxu0 %v735
      %789 = vmatprep.subr.bf16.mxu0 0
      %790 = vmatpush2.bf16.msra.mxu0 %v734
      %791 = vmatprep.subr.bf16.mxu0 0
      %792 = vmatpush2.bf16.msra.mxu0 %v733
      %793 = vmatprep.subr.bf16.mxu0 0
      %794 = vmatpush2.bf16.msra.mxu0 %v732
      %795 = vmatprep.subr.bf16.mxu0 0
      %796 = vmatpush2.bf16.msra.mxu0 %v731
      %797 = vmatprep.subr.bf16.mxu0 0
      %798 = vmatpush2.bf16.msra.mxu0 %v730
      %799 = vmatprep.subr.bf16.mxu0 0
      %800 = vmatpush2.bf16.msra.mxu0 %v729
      %801 = vmatprep.mubr.bf16.mxu0 %v566
      %802 = vmatmul.mubr.bf16.gmra.mxu0 %v564
      %v803 = vpop.f32.mrf.mxu0
      %v804 = vadd.f32 %v623, %v803
      %v805 = vpop.f32.mrf.mxu0
      %v806 = vpop.f32.mrf.mxu0
      %v807 = vpop.f32.mrf.mxu0
      %808 = vdwg.mxu0
      %809 = vmatprep.subr.bf16.mxu0 0
      %810 = vmatpush1.bf16.msra.mxu0 %v744
      %811 = vmatprep.subr.bf16.mxu0 0
      %812 = vmatpush1.bf16.msra.mxu0 %v743
      %813 = vmatprep.subr.bf16.mxu0 0
      %814 = vmatpush1.bf16.msra.mxu0 %v742
      %815 = vmatprep.subr.bf16.mxu0 0
      %816 = vmatpush1.bf16.msra.mxu0 %v741
      %817 = vmatprep.subr.bf16.mxu0 0
      %818 = vmatpush1.bf16.msra.mxu0 %v740
      %819 = vmatprep.subr.bf16.mxu0 0
      %820 = vmatpush1.bf16.msra.mxu0 %v739
      %821 = vmatprep.subr.bf16.mxu0 0
      %822 = vmatpush1.bf16.msra.mxu0 %v738
      %823 = vmatprep.subr.bf16.mxu0 0
      %824 = vmatpush1.bf16.msra.mxu0 %v737
      %825 = vmatprep.subr.bf16.mxu0 0
      %826 = vmatpush2.bf16.msra.mxu0 0
      %827 = vmatprep.subr.bf16.mxu0 0
      %828 = vmatpush2.bf16.msra.mxu0 0
      %829 = vmatprep.subr.bf16.mxu0 0
      %830 = vmatpush2.bf16.msra.mxu0 0
      %831 = vmatprep.subr.bf16.mxu0 0
      %832 = vmatpush2.bf16.msra.mxu0 0
      %833 = vmatprep.subr.bf16.mxu0 0
      %834 = vmatpush2.bf16.msra.mxu0 0
      %835 = vmatprep.subr.bf16.mxu0 0
      %836 = vmatpush2.bf16.msra.mxu0 0
      %837 = vmatprep.subr.bf16.mxu0 0
      %838 = vmatpush2.bf16.msra.mxu0 0
      %839 = vmatprep.subr.bf16.mxu0 0
      %840 = vmatpush2.bf16.msra.mxu0 0
      %841 = vmatprep.mubr.bf16.mxu0 0
      %842 = vmatmul.mubr.bf16.gmra.mxu0 %v569
      %v843 = vpop.f32.mrf.mxu0
      %v844 = vadd.f32 %v804, %v843
      %v845 = vpop.f32.mrf.mxu0
      %v846 = vpop.f32.mrf.mxu0
      %v847 = vpop.f32.mrf.mxu0
      %848 = vdwg.mxu0
      %v849 = vrot.slane %v844, 4
      %v850 = vadd.f32 %v844, %v849
      %v851 = vrot.slane %v850, 2
      %v852 = vadd.f32 %v850, %v851
      %v853 = vrot.slane %v852, 1
      %v854 = vadd.f32 %v852, %v853
      %v855 = vrcp.pop 8.0
      %v856 = vmul.f32 %v854, %v855
      %v857 = vsub.f32 %v844, %v856
      %v858 = vmul.f32 %v857, %v857
      %v859 = vrot.slane %v858, 4
      %v860 = vadd.f32 %v858, %v859
      %v861 = vrot.slane %v860, 2
      %v862 = vadd.f32 %v860, %v861
      %v863 = vrot.slane %v862, 1
      %v864 = vadd.f32 %v862, %v863
      %v865 = vmul.f32 %v864, %v855
      %v866 = vadd.f32 %v865, 1e-05
      %v867 = vrsqrt.pop %v866
      %v868 = vmul.f32 %v857, %v867
      %v869 = vmax.f32 %v868, 0.0
      %v870 = vadd.f32 %v869, %v554
      %v871 = vpack.c.bf16 %v870, %v870
      %vm872 = vcmask 1043456
      %vm873 = vsmask.f32 3328
      %vm874 = vmand %vm872, %vm873
      %v875 = vld [vmem:[%s222] sm:$0xf]
      %v876 = vsel %vm874, %v871, %v875
      %877 = vst [vmem:[%s222] sm:$0xf] %v876
      %v879 = vrot.slane %v558, 1
      %v881 = vadd.f32 %v869, %v879
      %v882 = vpack.c.bf16 %v881, %v881
      %vm883 = vcmask 1043459
      %vm884 = vsmask.f32 7950
      %vm885 = vmand %vm883, %vm884
      %v886 = vld [vmem:[%s222] sm:$0x8]
      %v887 = vsel %vm885, %v882, %v886
      %888 = vst [vmem:[%s222] sm:$0x8] %v887
      %p889 = scmp.lt.s32.totalorder %s16, 1
      %s890 = scalar_select %p889, %s16, 1
      %s891 = smul.addr %s890, 4
      %s892 = scalar_lea.vmem %s5, %s891
      // Predicated region
      $region41: #{content_encoder_forward.6} parent=39 // pred_check
        %p893 = pneg %p144
      $region42: #{content_encoder_forward.6} parent=39 // pred_check_branch
        %895 = sbr.rel (%p893) target = $region44
      $region43: #{content_encoder_forward.6} parent=39 // pred_region
        _
      $region44: #{content_encoder_forward.6} parent=39 // pred_fallthru
        _
    $region40: #{content_encoder_forward.6} parent=5 // pred_fallthru
      _
    %p896 = scmp.le.s32.totalorder 2, %s11
    // Predicated region
    $region45: #{content_encoder_forward.6} parent=5 // pred_check
      %p897 = pneg %p896
    $region46: #{content_encoder_forward.6} parent=5 // pred_check_branch
      %899 = sbr.rel (%p897) target = $region48
    $region47: #{content_encoder_forward.6} parent=5 // pred_region
      %s900 = ssub.s32 %s11, 2
      // Predicated region
      $region49: #{content_encoder_forward.6} parent=47 // pred_check
        %p901 = pneg %p150
      $region50: #{content_encoder_forward.6} parent=47 // pred_check_branch
        %903 = sbr.rel (%p901) target = $region52
      $region51: #{content_encoder_forward.6} parent=47 // pred_region
        %p904 = scmp.lt.s32.totalorder %s17, 1
        %s905 = scalar_select %p904, %s17, 1
        %s906 = smul.addr %s905, 4
        %s907 = scalar_lea.vmem %s5, %s906
      $region52: #{content_encoder_forward.6} parent=47 // pred_fallthru
        _
    $region48: #{content_encoder_forward.6} parent=5 // pred_fallthru
      _
  $region6: #{content_encoder_forward.6} parent=0 // loop_footer
    %s15 = sadd.s32 1, %s11
  $region7: #{content_encoder_forward.6} parent=0 // loop_footer_branch
    %10 = sbr.rel target = $region3
  $region8: #{content_encoder_forward.6} parent=0 // loop_exit
    _

</llo_original>
